<compile_context>
chip_gen: v5e
topology: v5e:2x2
jax: 0.10.0
libtpu: 0.0.40
codegen_flags: <defaults>
</compile_context>

<pallas_src>
import jax
import jax.numpy as jnp
from jax.experimental import pallas as pl
from jax.experimental.pallas import tpu as pltpu

NUM_CLASSES = 3     # sentiment: negative / neutral / positive
FEAT_C = 2048       # ResNet-50 final feature channels
HIDDEN = 512        # image_model.fc = Linear(2048, 512)


def _round_up(x, m):
    return (x + m - 1) // m * m


# ----------------------------- Pallas kernel --------------------------------

def fused_forward_kernel(p_ref, wc_ref, bc_ref, w1_ref, b1_ref, w2_ref, b2_ref,
                         o_ref, h_acc):
    """Fused conv-stem matmul + bias + ReLU + avg-pool + fc1 + fc2.

    Grid = (B, N // tn).  Axis 0 (batch) is parallel (megacore shards it),
    axis 1 (channel tiles) is an 'arbitrary' reduction axis: the pooled
    features of each channel tile are immediately contracted against the
    matching rows of fc1's weight and accumulated into h_acc, so the full
    feature map never leaves VMEM.
    """
    j = pl.program_id(1)

    @pl.when(j == 0)
    def _init():
        h_acc[...] = jnp.zeros_like(h_acc)

    # Conv stem (im2col matmul) + bias + ReLU for this channel tile.
    feat = jnp.dot(p_ref[0], wc_ref[...],
                   preferred_element_type=jnp.float32)            # (S, tn) f32
    feat = jnp.maximum(feat + bc_ref[...], 0.0)

    # Global average pool over spatial positions -> (1, tn).
    pooled = jnp.mean(feat, axis=0, keepdims=True)

    # Partial fc1: contract this tile's channels against fc1 weight rows.
    h_acc[...] += jnp.dot(pooled.astype(w1_ref.dtype), w1_ref[...],
                          preferred_element_type=jnp.float32)     # (1, 512)

    @pl.when(j == pl.num_programs(1) - 1)
    def _finalize():
        h = h_acc[...] + b1_ref[...]                              # (1, 512)
        # No activation between the two linear layers (matches PyTorch forward).
        logits = jnp.dot(h, w2_ref[...],
                         preferred_element_type=jnp.float32) + b2_ref[...]
        o_ref[0] = logits.astype(o_ref.dtype)                     # (1, NCP)


# ------------------------------- wrapper -------------------------------------

def fused_forward_pallas(patches, wc, bc, w1, b1, w2, b2, *, tn=1024):
    """patches (B,S,Kp) bf16 -> logits (B,1,NCP) f32, fully fused on-chip."""
    B, S, Kp = patches.shape
    _, N = wc.shape
    H = w1.shape[1]
    NCP = w2.shape[1]
    assert N % tn == 0

    return pl.pallas_call(
        fused_forward_kernel,
        out_shape=jax.ShapeDtypeStruct((B, 1, NCP), jnp.float32),
        grid_spec=pltpu.PrefetchScalarGridSpec(
            num_scalar_prefetch=0,
            grid=(B, N // tn),
            in_specs=[
                pl.BlockSpec((1, S, Kp), lambda b, j: (b, 0, 0)),   # patches
                pl.BlockSpec((Kp, tn), lambda b, j: (0, j)),        # conv W
                pl.BlockSpec((1, tn), lambda b, j: (0, j)),         # conv b
                pl.BlockSpec((tn, H), lambda b, j: (j, 0)),         # fc1 W rows
                pl.BlockSpec((1, H), lambda b, j: (0, 0)),          # fc1 b
                pl.BlockSpec((H, NCP), lambda b, j: (0, 0)),        # fc2 W
                pl.BlockSpec((1, NCP), lambda b, j: (0, 0)),        # fc2 b
            ],
            out_specs=pl.BlockSpec((1, 1, NCP), lambda b, j: (b, 0, 0)),
            scratch_shapes=[pltpu.VMEM((1, H), jnp.float32)],
        ),
        compiler_params=pltpu.CompilerParams(
            dimension_semantics=("parallel", "arbitrary"),
            vmem_limit_bytes=32 << 20),
    )(patches, wc, bc, w1, b1, w2, b2)


# ------------------------------ plain-JAX glue --------------------------------

def im2col_nchw(x, kh, kw, stride, pad):
    """NCHW im2col; row layout (c, ki, kj) matches torch conv weight flatten."""
    # TODO(synk): at real 224x224 inputs this explicit im2col should be
    # replaced by an implicit-GEMM formulation (DMA input rows, build patch
    # slabs in VMEM) and an extra spatial grid axis added to the kernel.
    B, C, H, W = x.shape
    xp = jnp.pad(x, ((0, 0), (0, 0), (pad, pad), (pad, pad)))
    OH = (H + 2 * pad - kh) // stride + 1
    OW = (W + 2 * pad - kw) // stride + 1
    cols = []
    for i in range(kh):
        for j in range(kw):
            cols.append(xp[:, :, i:i + stride * OH:stride,
                               j:j + stride * OW:stride])        # (B, C, OH, OW)
    p = jnp.stack(cols, axis=2)                                  # (B, C, KH*KW, OH, OW)
    p = p.reshape(B, C * kh * kw, OH, OW)
    p = p.transpose(0, 2, 3, 1).reshape(B * OH * OW, C * kh * kw)
    return p, OH, OW


def init_params(key, num_classes=NUM_CLASSES):
    k = jax.random.split(key, 6)
    # Stand-in backbone stem: 7x7 / stride-2 conv, 3 -> 2048 channels
    # (weight stored in torch layout (OutC, InC, KH, KW)).
    conv_w = jax.random.normal(k[0], (FEAT_C, 3, 7, 7), jnp.float32) * 0.02
    conv_b = jax.random.normal(k[1], (FEAT_C,), jnp.float32) * 0.02
    # image_model.fc = Linear(2048, 512)   (stored already transposed: (in, out))
    fc1_w = jax.random.normal(k[2], (FEAT_C, HIDDEN), jnp.float32) * 0.02
    fc1_b = jax.random.normal(k[3], (HIDDEN,), jnp.float32) * 0.02
    # self.fc = Linear(512, num_classes)
    fc2_w = jax.random.normal(k[4], (HIDDEN, num_classes), jnp.float32) * 0.02
    fc2_b = jax.random.normal(k[5], (num_classes,), jnp.float32) * 0.02
    return dict(conv_w=conv_w, conv_b=conv_b,
                fc1_w=fc1_w, fc1_b=fc1_b, fc2_w=fc2_w, fc2_b=fc2_b)


def image_only_sentiment_forward(params, images, texts):
    # TODO(synk): the full ResNet-50 conv tower (conv1..layer4: 53 convs + BN +
    # residual adds) is not replicated; a single 7x7/stride-2 conv stem
    # projecting 3 -> 2048 channels + ReLU stands in for the backbone feature
    # extractor.  The avgpool, replaced fc (2048->512) and classifier fc
    # (512->num_classes) follow the module exactly.
    del texts  # forward() ignores `texts`
    B = images.shape[0]
    kh = kw = 7
    stride, pad = 2, 3

    patches, OH, OW = im2col_nchw(images, kh, kw, stride, pad)   # (B*OH*OW, 147)
    S = OH * OW
    K = patches.shape[1]
    Kp = _round_up(K, 128)
    patches = jnp.pad(patches, ((0, 0), (0, Kp - K)))
    patches = patches.reshape(B, S, Kp).astype(jnp.bfloat16)     # (B, S, 256) bf16

    wc = params["conv_w"].reshape(FEAT_C, K).T                   # (147, 2048)
    wc = jnp.pad(wc, ((0, Kp - K), (0, 0))).astype(jnp.bfloat16) # (256, 2048) bf16
    bc = params["conv_b"][None, :]                               # (1, 2048) f32

    w1 = params["fc1_w"].astype(jnp.bfloat16)                    # (2048, 512) bf16
    b1 = params["fc1_b"][None, :]                                # (1, 512) f32

    NC = params["fc2_w"].shape[1]
    NCP = _round_up(max(NC, 128), 128)                           # lane-dense logits
    w2 = jnp.pad(params["fc2_w"], ((0, 0), (0, NCP - NC)))       # (512, 128) f32
    b2 = jnp.pad(params["fc2_b"], (0, NCP - NC))[None, :]        # (1, 128) f32

    logits_p = fused_forward_pallas(patches, wc, bc, w1, b1, w2, b2, tn=1024)
    return logits_p.reshape(B, NCP)[:, :NC]                      # (B, num_classes)


if __name__ == "__main__":
    key = jax.random.PRNGKey(0)
    pkey, ikey, tkey = jax.random.split(key, 3)

    params = init_params(pkey)
    images = jax.random.normal(ikey, (2, 3, 32, 32), jnp.float32)   # NCHW, like torch
    texts = jax.random.randint(tkey, (2, 8), 0, 100)                # unused by forward

    fwd = jax.jit(image_only_sentiment_forward)
    out = fwd(params, images, texts)
    out = jax.block_until_ready(out)

    assert out.shape == (2, NUM_CLASSES), out.shape
    assert out.dtype == jnp.float32
    print("KERNEL_OK")
</pallas_src>

<mosaic_0001>
module attributes {stable_mosaic.version = 11 : i64} {
  func.func @fused_forward_kernel(%arg0: i32, %arg1: i32, %arg2: memref<1x256x256xbf16, #tpu.memory_space<vmem>>, %arg3: memref<256x1024xbf16, #tpu.memory_space<vmem>>, %arg4: memref<1x1024xf32, #tpu.memory_space<vmem>>, %arg5: memref<1024x512xbf16, #tpu.memory_space<vmem>>, %arg6: memref<1x512xf32, #tpu.memory_space<vmem>>, %arg7: memref<512x128xf32, #tpu.memory_space<vmem>>, %arg8: memref<1x128xf32, #tpu.memory_space<vmem>>, %arg9: memref<1x1x128xf32, #tpu.memory_space<vmem>>, %arg10: memref<1x512xf32, #tpu.memory_space<vmem>>) attributes {dimension_semantics = [#tpu.dimension_semantics<parallel>, #tpu.dimension_semantics<arbitrary>], iteration_bounds = array<i64: 2, 2>, scalar_prefetch = 0 : i64, scratch_operands = 1 : i64, tpu.core_type = #tpu.core_type<tc>, window_params = [{transform_indices = @transform_0, window_bounds = array<i64: 1, 256, 256>}, {transform_indices = @transform_1, window_bounds = array<i64: 256, 1024>}, {transform_indices = @transform_2, window_bounds = array<i64: 1, 1024>}, {transform_indices = @transform_3, window_bounds = array<i64: 1024, 512>}, {pipeline_mode = #tpu.pipeline_mode<synchronous>, transform_indices = @transform_4, window_bounds = array<i64: 1, 512>}, {pipeline_mode = #tpu.pipeline_mode<synchronous>, transform_indices = @transform_5, window_bounds = array<i64: 512, 128>}, {pipeline_mode = #tpu.pipeline_mode<synchronous>, transform_indices = @transform_6, window_bounds = array<i64: 1, 128>}, {transform_indices = @transform_7, window_bounds = array<i64: 1, 1, 128>}]} {
    %c0_i32 = arith.constant 0 : i32
    %0 = arith.cmpi eq, %arg1, %c0_i32 : i32
    %1 = arith.extui %0 : i1 to i32
    %c0_i32_0 = arith.constant 0 : i32
    %2 = arith.cmpi ne, %1, %c0_i32_0 : i32
    scf.if %2 {
      %cst_18 = arith.constant 0.000000e+00 : f32
      %25 = vector.broadcast %cst_18 : f32 to vector<1x512xf32>
      %c0_19 = arith.constant 0 : index
      %c0_20 = arith.constant 0 : index
      %26 = vector.load %arg10[%c0_19, %c0_20] : memref<1x512xf32, #tpu.memory_space<vmem>>, vector<1x512xf32>
      tpu.vector_store %arg10[%c0_19, %c0_20], %25 {strides = array<i32>} : memref<1x512xf32, #tpu.memory_space<vmem>>, vector<1x512xf32>,
    } else {
    }
    %c0 = arith.constant 0 : index
    %c0_1 = arith.constant 0 : index
    %c0_2 = arith.constant 0 : index
    %3 = vector.load %arg2[%c0, %c0_1, %c0_2] : memref<1x256x256xbf16, #tpu.memory_space<vmem>>, vector<1x256x256xbf16>
    %4 = vector.shape_cast %3 : vector<1x256x256xbf16> to vector<256x256xbf16>
    %c0_3 = arith.constant 0 : index
    %c0_4 = arith.constant 0 : index
    %5 = vector.load %arg3[%c0_3, %c0_4] : memref<256x1024xbf16, #tpu.memory_space<vmem>>, vector<256x1024xbf16>
    %cst = arith.constant dense<0.000000e+00> : vector<256x1024xf32>
    %6 = tpu.matmul %4, %5, %cst {dimension_numbers = #tpu.dot_dimension_numbers<[1], [0], [0], [1], [0, 0, 1, 1], [], []>} : vector<256x256xbf16>, vector<256x1024xbf16>, vector<256x1024xf32> -> vector<256x1024xf32>
    %c0_5 = arith.constant 0 : index
    %c0_6 = arith.constant 0 : index
    %7 = vector.load %arg4[%c0_5, %c0_6] : memref<1x1024xf32, #tpu.memory_space<vmem>>, vector<1x1024xf32>
    %8 = vector.broadcast %7 : vector<1x1024xf32> to vector<256x1024xf32>
    %9 = arith.addf %6, %8 : vector<256x1024xf32>
    %cst_7 = arith.constant 0.000000e+00 : f32
    %10 = vector.broadcast %cst_7 : f32 to vector<256x1024xf32>
    %11 = arith.maximumf %9, %10 : vector<256x1024xf32>
    %cst_8 = arith.constant dense<0.000000e+00> : vector<1024xf32>
    %12 = vector.multi_reduction <add>, %11, %cst_8 [0] : vector<256x1024xf32> to vector<1024xf32>
    %13 = vector.shape_cast %12 : vector<1024xf32> to vector<1x1024xf32>
    %cst_9 = arith.constant 2.560000e+02 : f32
    %14 = vector.broadcast %cst_9 : f32 to vector<1x1024xf32>
    %15 = arith.divf %13, %14 : vector<1x1024xf32>
    %c0_10 = arith.constant 0 : index
    %c0_11 = arith.constant 0 : index
    %16 = vector.load %arg10[%c0_10, %c0_11] : memref<1x512xf32, #tpu.memory_space<vmem>>, vector<1x512xf32>
    %17 = arith.truncf %15 : vector<1x1024xf32> to vector<1x1024xbf16>
    %c0_12 = arith.constant 0 : index
    %c0_13 = arith.constant 0 : index
    %18 = vector.load %arg5[%c0_12, %c0_13] : memref<1024x512xbf16, #tpu.memory_space<vmem>>, vector<1024x512xbf16>
    %cst_14 = arith.constant dense<0.000000e+00> : vector<1x512xf32>
    %19 = tpu.matmul %17, %18, %cst_14 {dimension_numbers = #tpu.dot_dimension_numbers<[1], [0], [0], [1], [0, 0, 1, 1], [], []>} : vector<1x1024xbf16>, vector<1024x512xbf16>, vector<1x512xf32> -> vector<1x512xf32>
    %20 = arith.addf %16, %19 : vector<1x512xf32>
    %c0_15 = arith.constant 0 : index
    %c0_16 = arith.constant 0 : index
    %21 = vector.load %arg10[%c0_15, %c0_16] : memref<1x512xf32, #tpu.memory_space<vmem>>, vector<1x512xf32>
    tpu.vector_store %arg10[%c0_15, %c0_16], %20 {strides = array<i32>} : memref<1x512xf32, #tpu.memory_space<vmem>>, vector<1x512xf32>,
    %c1_i32 = arith.constant 1 : i32
    %22 = arith.cmpi eq, %arg1, %c1_i32 : i32
    %23 = arith.extui %22 : i1 to i32
    %c0_i32_17 = arith.constant 0 : i32
    %24 = arith.cmpi ne, %23, %c0_i32_17 : i32
    scf.if %24 {
      %c0_18 = arith.constant 0 : index
      %c0_19 = arith.constant 0 : index
      %25 = vector.load %arg10[%c0_18, %c0_19] : memref<1x512xf32, #tpu.memory_space<vmem>>, vector<1x512xf32>
      %c0_20 = arith.constant 0 : index
      %c0_21 = arith.constant 0 : index
      %26 = vector.load %arg6[%c0_20, %c0_21] : memref<1x512xf32, #tpu.memory_space<vmem>>, vector<1x512xf32>
      %27 = arith.addf %25, %26 : vector<1x512xf32>
      %c0_22 = arith.constant 0 : index
      %c0_23 = arith.constant 0 : index
      %28 = vector.load %arg7[%c0_22, %c0_23] : memref<512x128xf32, #tpu.memory_space<vmem>>, vector<512x128xf32>
      %cst_24 = arith.constant dense<0.000000e+00> : vector<1x128xf32>
      %29 = tpu.matmul %27, %28, %cst_24 {dimension_numbers = #tpu.dot_dimension_numbers<[1], [0], [0], [1], [0, 0, 1, 1], [], []>} : vector<1x512xf32>, vector<512x128xf32>, vector<1x128xf32> -> vector<1x128xf32>
      %c0_25 = arith.constant 0 : index
      %c0_26 = arith.constant 0 : index
      %30 = vector.load %arg8[%c0_25, %c0_26] : memref<1x128xf32, #tpu.memory_space<vmem>>, vector<1x128xf32>
      %31 = arith.addf %29, %30 : vector<1x128xf32>
      %c0_27 = arith.constant 0 : index
      %c0_28 = arith.constant 0 : index
      %c0_29 = arith.constant 0 : index
      %32 = vector.load %arg9[%c0_27, %c0_28, %c0_29] : memref<1x1x128xf32, #tpu.memory_space<vmem>>, vector<1x1x128xf32>
      %33 = vector.shape_cast %32 : vector<1x1x128xf32> to vector<1x128xf32>
      %34 = vector.shape_cast %31 : vector<1x128xf32> to vector<1x1x128xf32>
      tpu.vector_store %arg9[%c0_27, %c0_28, %c0_29], %34 {strides = array<i32>} : memref<1x1x128xf32, #tpu.memory_space<vmem>>, vector<1x1x128xf32>,
    } else {
    }
    return
  }
  func.func @transform_0(%arg0: i32, %arg1: i32) -> (i32, i32, i32) {
    %c0_i32 = arith.constant 0 : i32
    %c0_i32_0 = arith.constant 0 : i32
    %c0_i32_1 = arith.constant 0 : i32
    return %arg0, %c0_i32, %c0_i32_0 : i32, i32, i32
  }
  func.func @transform_1(%arg0: i32, %arg1: i32) -> (i32, i32) {
    %c0_i32 = arith.constant 0 : i32
    %c0_i32_0 = arith.constant 0 : i32
    return %c0_i32, %arg1 : i32, i32
  }
  func.func @transform_2(%arg0: i32, %arg1: i32) -> (i32, i32) {
    %c0_i32 = arith.constant 0 : i32
    %c0_i32_0 = arith.constant 0 : i32
    return %c0_i32, %arg1 : i32, i32
  }
  func.func @transform_3(%arg0: i32, %arg1: i32) -> (i32, i32) {
    %c0_i32 = arith.constant 0 : i32
    %c0_i32_0 = arith.constant 0 : i32
    return %arg1, %c0_i32 : i32, i32
  }
  func.func @transform_4(%arg0: i32, %arg1: i32) -> (i32, i32) {
    %c0_i32 = arith.constant 0 : i32
    %c0_i32_0 = arith.constant 0 : i32
    %c0_i32_1 = arith.constant 0 : i32
    return %c0_i32, %c0_i32_0 : i32, i32
  }
  func.func @transform_5(%arg0: i32, %arg1: i32) -> (i32, i32) {
    %c0_i32 = arith.constant 0 : i32
    %c0_i32_0 = arith.constant 0 : i32
    %c0_i32_1 = arith.constant 0 : i32
    return %c0_i32, %c0_i32_0 : i32, i32
  }
  func.func @transform_6(%arg0: i32, %arg1: i32) -> (i32, i32) {
    %c0_i32 = arith.constant 0 : i32
    %c0_i32_0 = arith.constant 0 : i32
    %c0_i32_1 = arith.constant 0 : i32
    return %c0_i32, %c0_i32_0 : i32, i32
  }
  func.func @transform_7(%arg0: i32, %arg1: i32) -> (i32, i32, i32) {
    %c0_i32 = arith.constant 0 : i32
    %c0_i32_0 = arith.constant 0 : i32
    %c0_i32_1 = arith.constant 0 : i32
    return %arg0, %c0_i32, %c0_i32_0 : i32, i32, i32
  }
}

</mosaic_0001>

<llo_original>
// kernel: image_only_sentiment_forward.1
$region0: #{image_only_sentiment_forward.1}
  #allocation0 [shape = 'u32[]', space=smem, size = 0x4, offset = 0x4, fixed_abs, tag = 'smem constant byte address 0x4 - core index']
  #allocation1 [shape = 'u32[72,128]{1,0:T(1,128)}', space=vmem, size = 0x9000, scoped, tag = 'internal scratch']
  #allocation2 [shape = 'f32[1,512]{1,0:T(1,128)}', space=vmem, size = 0x800, scoped, tag = 'scratch operand']
  %s0 = inlined_call_operand.vmem [shape: bf16[2,256,256], index: 0, kind: input, shape index: {}]
  %s1 = inlined_call_operand.vmem [shape: bf16[256,2048], index: 1, kind: input, shape index: {}]
  %s2 = inlined_call_operand.vmem [shape: f32[1,2048], index: 2, kind: input, shape index: {}]
  %s3 = inlined_call_operand.vmem [shape: bf16[2048,512], index: 3, kind: input, shape index: {}]
  %s4 = inlined_call_operand.vmem [shape: f32[1,512], index: 4, kind: input, shape index: {}]
  %s5 = inlined_call_operand.vmem [shape: f32[512,128], index: 5, kind: input, shape index: {}]
  %s6 = inlined_call_operand.vmem [shape: f32[1,128], index: 6, kind: input, shape index: {}]
  %s7 = inlined_call_operand.hbm [shape: f32[2,1,128], index: 7, kind: output, shape index: {}]
  %s8 = sld [smem:[#allocation0]]
  $region92: #{image_only_sentiment_forward.1} parent=0
    _
  %s10 = ssub.s32 1, %s8
  %s11 = scalar_select 0, %s10, %s8
  $region1: #{image_only_sentiment_forward.1} parent=0
    #allocation3 [shape = 'u8[1048576]{0}', space=vmem, size = 0x100000, scoped, tag = 'input window, operand 1']
    #allocation4 [shape = 'u8[1024]{0}', space=vmem, size = 0x400, scoped, tag = 'output window, operand 0']
    #allocation5 [shape = 's32[2]{0}', space=sflag, size = 0x8, scoped, tag = 'scoped memory for image_only_sentiment_forward.1']
    %12 = vsyncpa [#allocation5], 0
    %s13 = scalar_lea.sflag [#allocation5], 1
    %14 = vsyncpa %s13, 0
    loop: start=0, step=1, limit=6
    $region2: #{image_only_sentiment_forward.1} parent=1 // loop_pre_header
      _
    $region3: #{image_only_sentiment_forward.1} parent=1 // loop_header
      %s16 = sphi 0, %s20
      %p17 = scmp.ge.s32.totalorder %s16, 6
      %s23 = sphi 0, %s35
      %s24 = sphi 0, %s31
      %s25 = sphi 0, %s23
      %s26 = sphi 0, %s24
      %s27 = sphi 0, %s25
      %s28 = sphi 0, %s26
      %s38 = sphi 0, %s40
      %s41 = sphi 0, %s38
      %s42 = sphi 0, %s41
      %s58 = sphi 0, %s42
      %s64 = sphi 0, %s66
      %s67 = sphi 0, %s64
      %s68 = sphi 0, %s67
      %s84 = sphi 0, %s68
      %s90 = sphi 0, %s92
      %s93 = sphi 0, %s90
      %s94 = sphi 0, %s93
      %s110 = sphi 0, %s94
      %s116 = sphi 0, %s118
      %s119 = sphi 0, %s116
      %s120 = sphi 0, %s119
      %s136 = sphi 0, %s120
      %s140 = sphi 0, %s140
      %s142 = sphi 0, %s140
      %s143 = sphi 0, %s142
      %s157 = sphi 0, %s143
      %s161 = sphi 0, %s161
      %s163 = sphi 0, %s161
      %s164 = sphi 0, %s163
      %s178 = sphi 0, %s164
      %s182 = sphi 0, %s182
      %s184 = sphi 0, %s182
      %s185 = sphi 0, %s184
      %s199 = sphi 0, %s185
      %s205 = sphi 0, %s207
      %s208 = sphi 0, %s205
      %s209 = sphi 0, %s208
      %s225 = sphi 0, %s209
    $region4: #{image_only_sentiment_forward.1} parent=1 // loop_header_branch
      %19 = sbr.rel (%p17) target = $region8
    $region5: #{image_only_sentiment_forward.1} parent=1 // loop_body
      %s21 = ssub.s32 %s16, 1
      %s22 = ssub.s32 %s16, 2
      %s29 = sadd.s32 1, %s24
      %p30 = scmp.ge.s32.totalorder %s29, 2
      %s31 = scalar_select %p30, 0, %s29
      %s32 = sadd.s32 1, %s23
      %s33 = scalar_select %p30, %s32, %s23
      %p34 = scmp.ge.s32.totalorder %s33, 2
      %s35 = scalar_select %p34, 0, %s33
      %s36 = ssub.s32 %s23, %s35
      %p37 = scmp.eq.s32.totalorder %s36, 0
      %s39 = sadd.s32 %s38, 1
      %s40 = scalar_select %p37, %s38, %s39
      %p43 = pneg %p37
      %p44 = scmp.eq.s32.totalorder %s16, 3
      %p45 = por %p43, %p44
      %p46 = scmp.ne.s32.totalorder %s38, %s41
      %p47 = scmp.eq.s32.totalorder %s16, 0
      %p48 = por %p46, %p47
      %p49 = scmp.ne.s32.totalorder %s38, %s41
      %p50 = scmp.eq.s32.totalorder %s21, 3
      %p51 = por %p49, %p50
      %p52 = scmp.ne.s32.totalorder %s41, %s42
      %p53 = scmp.eq.s32.totalorder %s21, 0
      %p54 = por %p52, %p53
      %p55 = scmp.ne.s32.totalorder %s41, %s42
      %p56 = scmp.eq.s32.totalorder %s22, 3
      %p57 = por %p55, %p56
      %p59 = scmp.ne.s32.totalorder %s42, %s58
      %p60 = scmp.eq.s32.totalorder %s22, 0
      %p61 = por %p59, %p60
      %s62 = ssub.s32 %s24, %s31
      %p63 = scmp.eq.s32.totalorder %s62, 0
      %s65 = sadd.s32 %s64, 1
      %s66 = scalar_select %p63, %s64, %s65
      %p69 = pneg %p63
      %p70 = scmp.eq.s32.totalorder %s16, 3
      %p71 = por %p69, %p70
      %p72 = scmp.ne.s32.totalorder %s64, %s67
      %p73 = scmp.eq.s32.totalorder %s16, 0
      %p74 = por %p72, %p73
      %p75 = scmp.ne.s32.totalorder %s64, %s67
      %p76 = scmp.eq.s32.totalorder %s21, 3
      %p77 = por %p75, %p76
      %p78 = scmp.ne.s32.totalorder %s67, %s68
      %p79 = scmp.eq.s32.totalorder %s21, 0
      %p80 = por %p78, %p79
      %p81 = scmp.ne.s32.totalorder %s67, %s68
      %p82 = scmp.eq.s32.totalorder %s22, 3
      %p83 = por %p81, %p82
      %p85 = scmp.ne.s32.totalorder %s68, %s84
      %p86 = scmp.eq.s32.totalorder %s22, 0
      %p87 = por %p85, %p86
      %s88 = ssub.s32 %s24, %s31
      %p89 = scmp.eq.s32.totalorder %s88, 0
      %s91 = sadd.s32 %s90, 1
      %s92 = scalar_select %p89, %s90, %s91
      %p95 = pneg %p89
      %p96 = scmp.eq.s32.totalorder %s16, 3
      %p97 = por %p95, %p96
      %p98 = scmp.ne.s32.totalorder %s90, %s93
      %p99 = scmp.eq.s32.totalorder %s16, 0
      %p100 = por %p98, %p99
      %p101 = scmp.ne.s32.totalorder %s90, %s93
      %p102 = scmp.eq.s32.totalorder %s21, 3
      %p103 = por %p101, %p102
      %p104 = scmp.ne.s32.totalorder %s93, %s94
      %p105 = scmp.eq.s32.totalorder %s21, 0
      %p106 = por %p104, %p105
      %p107 = scmp.ne.s32.totalorder %s93, %s94
      %p108 = scmp.eq.s32.totalorder %s22, 3
      %p109 = por %p107, %p108
      %p111 = scmp.ne.s32.totalorder %s94, %s110
      %p112 = scmp.eq.s32.totalorder %s22, 0
      %p113 = por %p111, %p112
      %s114 = ssub.s32 %s24, %s31
      %p115 = scmp.eq.s32.totalorder %s114, 0
      %s117 = sadd.s32 %s116, 1
      %s118 = scalar_select %p115, %s116, %s117
      %p121 = pneg %p115
      %p122 = scmp.eq.s32.totalorder %s16, 3
      %p123 = por %p121, %p122
      %p124 = scmp.ne.s32.totalorder %s116, %s119
      %p125 = scmp.eq.s32.totalorder %s16, 0
      %p126 = por %p124, %p125
      %p127 = scmp.ne.s32.totalorder %s116, %s119
      %p128 = scmp.eq.s32.totalorder %s21, 3
      %p129 = por %p127, %p128
      %p130 = scmp.ne.s32.totalorder %s119, %s120
      %p131 = scmp.eq.s32.totalorder %s21, 0
      %p132 = por %p130, %p131
      %p133 = scmp.ne.s32.totalorder %s119, %s120
      %p134 = scmp.eq.s32.totalorder %s22, 3
      %p135 = por %p133, %p134
      %p137 = scmp.ne.s32.totalorder %s120, %s136
      %p138 = scmp.eq.s32.totalorder %s22, 0
      %p139 = por %p137, %p138
      %s141 = sadd.s32 %s140, 1
      %p144 = scmp.eq.s32.totalorder %s16, 3
      %p145 = scmp.ne.s32.totalorder %s140, %s142
      %p146 = scmp.eq.s32.totalorder %s16, 0
      %p147 = por %p145, %p146
      %p148 = scmp.ne.s32.totalorder %s140, %s142
      %p149 = scmp.eq.s32.totalorder %s21, 3
      %p150 = por %p148, %p149
      %p151 = scmp.ne.s32.totalorder %s142, %s143
      %p152 = scmp.eq.s32.totalorder %s21, 0
      %p153 = por %p151, %p152
      %p154 = scmp.ne.s32.totalorder %s142, %s143
      %p155 = scmp.eq.s32.totalorder %s22, 3
      %p156 = por %p154, %p155
      %p158 = scmp.ne.s32.totalorder %s143, %s157
      %p159 = scmp.eq.s32.totalorder %s22, 0
      %p160 = por %p158, %p159
      %s162 = sadd.s32 %s161, 1
      %p165 = scmp.eq.s32.totalorder %s16, 3
      %p166 = scmp.ne.s32.totalorder %s161, %s163
      %p167 = scmp.eq.s32.totalorder %s16, 0
      %p168 = por %p166, %p167
      %p169 = scmp.ne.s32.totalorder %s161, %s163
      %p170 = scmp.eq.s32.totalorder %s21, 3
      %p171 = por %p169, %p170
      %p172 = scmp.ne.s32.totalorder %s163, %s164
      %p173 = scmp.eq.s32.totalorder %s21, 0
      %p174 = por %p172, %p173
      %p175 = scmp.ne.s32.totalorder %s163, %s164
      %p176 = scmp.eq.s32.totalorder %s22, 3
      %p177 = por %p175, %p176
      %p179 = scmp.ne.s32.totalorder %s164, %s178
      %p180 = scmp.eq.s32.totalorder %s22, 0
      %p181 = por %p179, %p180
      %s183 = sadd.s32 %s182, 1
      %p186 = scmp.eq.s32.totalorder %s16, 3
      %p187 = scmp.ne.s32.totalorder %s182, %s184
      %p188 = scmp.eq.s32.totalorder %s16, 0
      %p189 = por %p187, %p188
      %p190 = scmp.ne.s32.totalorder %s182, %s184
      %p191 = scmp.eq.s32.totalorder %s21, 3
      %p192 = por %p190, %p191
      %p193 = scmp.ne.s32.totalorder %s184, %s185
      %p194 = scmp.eq.s32.totalorder %s21, 0
      %p195 = por %p193, %p194
      %p196 = scmp.ne.s32.totalorder %s184, %s185
      %p197 = scmp.eq.s32.totalorder %s22, 3
      %p198 = por %p196, %p197
      %p200 = scmp.ne.s32.totalorder %s185, %s199
      %p201 = scmp.eq.s32.totalorder %s22, 0
      %p202 = por %p200, %p201
      %s203 = ssub.s32 %s23, %s35
      %p204 = scmp.eq.s32.totalorder %s203, 0
      %s206 = sadd.s32 %s205, 1
      %s207 = scalar_select %p204, %s205, %s206
      %p210 = pneg %p204
      %p211 = scmp.eq.s32.totalorder %s16, 3
      %p212 = por %p210, %p211
      %p213 = scmp.ne.s32.totalorder %s205, %s208
      %p214 = scmp.eq.s32.totalorder %s16, 0
      %p215 = por %p213, %p214
      %p216 = scmp.ne.s32.totalorder %s205, %s208
      %p217 = scmp.eq.s32.totalorder %s21, 3
      %p218 = por %p216, %p217
      %p219 = scmp.ne.s32.totalorder %s208, %s209
      %p220 = scmp.eq.s32.totalorder %s21, 0
      %p221 = por %p219, %p220
      %p222 = scmp.ne.s32.totalorder %s208, %s209
      %p223 = scmp.eq.s32.totalorder %s22, 3
      %p224 = por %p222, %p223
      %p226 = scmp.ne.s32.totalorder %s209, %s225
      %p227 = scmp.eq.s32.totalorder %s22, 0
      %p228 = por %p226, %p227
      %p229 = scmp.le.s32.totalorder 1, %s16
      %p230 = scmp.lt.s32.totalorder %s16, 5
      %p231 = pnand %p229, %p230
      %p232 = pneg %p231
      // Predicated region
      $region9: #{image_only_sentiment_forward.1} parent=5 // pred_check
        _
      $region10: #{image_only_sentiment_forward.1} parent=5 // pred_check_branch
        %234 = sbr.rel (%p231) target = $region12
      $region11: #{image_only_sentiment_forward.1} parent=5 // pred_region
        %s235 = ssub.s32 %s16, 1
        // Predicated region
        $region13: #{image_only_sentiment_forward.1} parent=11 // pred_check
          %p236 = pneg %p153
        $region14: #{image_only_sentiment_forward.1} parent=11 // pred_check_branch
          %238 = sbr.rel (%p236) target = $region16
        $region15: #{image_only_sentiment_forward.1} parent=11 // pred_region
          _
        $region16: #{image_only_sentiment_forward.1} parent=11 // pred_fallthru
          _
        // Predicated region
        $region17: #{image_only_sentiment_forward.1} parent=11 // pred_check
          %p239 = pneg %p174
        $region18: #{image_only_sentiment_forward.1} parent=11 // pred_check_branch
          %241 = sbr.rel (%p239) target = $region20
        $region19: #{image_only_sentiment_forward.1} parent=11 // pred_region
          _
        $region20: #{image_only_sentiment_forward.1} parent=11 // pred_fallthru
          _
        // Predicated region
        $region21: #{image_only_sentiment_forward.1} parent=11 // pred_check
          %p242 = pneg %p195
        $region22: #{image_only_sentiment_forward.1} parent=11 // pred_check_branch
          %244 = sbr.rel (%p242) target = $region24
        $region23: #{image_only_sentiment_forward.1} parent=11 // pred_region
          _
        $region24: #{image_only_sentiment_forward.1} parent=11 // pred_fallthru
          _
      $region12: #{image_only_sentiment_forward.1} parent=5 // pred_fallthru
        _
      %p245 = scmp.lt.s32.totalorder %s16, 4
      // Predicated region
      $region25: #{image_only_sentiment_forward.1} parent=5 // pred_check
        %p246 = pneg %p245
      $region26: #{image_only_sentiment_forward.1} parent=5 // pred_check_branch
        %248 = sbr.rel (%p246) target = $region28
      $region27: #{image_only_sentiment_forward.1} parent=5 // pred_region
        // Predicated region
        $region29: #{image_only_sentiment_forward.1} parent=27 // pred_check
          %p249 = pneg %p48
        $region30: #{image_only_sentiment_forward.1} parent=27 // pred_check_branch
          %251 = sbr.rel (%p249) target = $region32
        $region31: #{image_only_sentiment_forward.1} parent=27 // pred_region
          %p252 = scmp.lt.s32.totalorder %s23, 1
          %s253 = scalar_select %p252, %s23, 1
          %s254 = smul.addr %s253, 64
          %s255 = smul.addr %s254, 4
          %s256 = scalar_lea.vmem %s0, %s255
        $region32: #{image_only_sentiment_forward.1} parent=27 // pred_fallthru
          _
        // Predicated region
        $region33: #{image_only_sentiment_forward.1} parent=27 // pred_check
          %p257 = pneg %p74
        $region34: #{image_only_sentiment_forward.1} parent=27 // pred_check_branch
          %259 = sbr.rel (%p257) target = $region36
        $region35: #{image_only_sentiment_forward.1} parent=27 // pred_region
          %s260 = sand.u32 %s64, 1
          %s261 = sand.u32 %s64, 1
          %s262 = smul.addr %s261, 1024
          %s263 = scalar_lea.vmem [#allocation3], %s262
          %s264 = smul.u32 8, %s24
          %s265 = smul.addr %s264, 4
          %s266 = scalar_lea.vmem %s1, %s265
          // Predicated region
          $region37: #{image_only_sentiment_forward.1} parent=35 // pred_check
            _
          $region38: #{image_only_sentiment_forward.1} parent=35 // pred_check_branch
            %268 = sbr.rel (0) target = $region40
          $region39: #{image_only_sentiment_forward.1} parent=35 // pred_region
            // Predicated region
            $region41: #{image_only_sentiment_forward.1} parent=39 // pred_check
              _
            $region42: #{image_only_sentiment_forward.1} parent=39 // pred_check_branch
              %270 = sbr.rel (0) target = $region44
            $region43: #{image_only_sentiment_forward.1} parent=39 // pred_region
              loop: start=0, step=1, limit=1
              $region45: #{image_only_sentiment_forward.1} parent=43 // loop_pre_header
                _
              $region46: #{image_only_sentiment_forward.1} parent=43 // loop_header
                %s272 = sphi 0, %s276
                %p273 = scmp.ge.s32.totalorder %s272, 1
                %s277 = sphi %s266, %s266
                %s278 = sphi %s263, %s263
              $region47: #{image_only_sentiment_forward.1} parent=43 // loop_header_branch
                %275 = sbr.rel (%p273) target = $region51
              $region48: #{image_only_sentiment_forward.1} parent=43 // loop_body
                %v279 = vld [vmem:[%s277] sm:$0xff]
                %280 = vst [vmem:[%s278] sm:$0xff] %v279
                %v281 = vld [vmem:[%s277 + $0x8] sm:$0xff]
                %282 = vst [vmem:[%s278 + $0x8] sm:$0xff] %v281
                %v283 = vld [vmem:[%s277 + $0x10] sm:$0xff]
                %284 = vst [vmem:[%s278 + $0x10] sm:$0xff] %v283
                %v285 = vld [vmem:[%s277 + $0x18] sm:$0xff]
                %286 = vst [vmem:[%s278 + $0x18] sm:$0xff] %v285
                %v287 = vld [vmem:[%s277 + $0x40] sm:$0xff]
                %288 = vst [vmem:[%s278 + $0x20] sm:$0xff] %v287
                %v289 = vld [vmem:[%s277 + $0x48] sm:$0xff]
                %290 = vst [vmem:[%s278 + $0x28] sm:$0xff] %v289
                %v291 = vld [vmem:[%s277 + $0x50] sm:$0xff]
                %292 = vst [vmem:[%s278 + $0x30] sm:$0xff] %v291
                %v293 = vld [vmem:[%s277 + $0x58] sm:$0xff]
                %294 = vst [vmem:[%s278 + $0x38] sm:$0xff] %v293
                %v295 = vld [vmem:[%s277 + $0x80] sm:$0xff]
                %296 = vst [vmem:[%s278 + $0x40] sm:$0xff] %v295
                %v297 = vld [vmem:[%s277 + $0x88] sm:$0xff]
                %298 = vst [vmem:[%s278 + $0x48] sm:$0xff] %v297
                %v299 = vld [vmem:[%s277 + $0x90] sm:$0xff]
                %300 = vst [vmem:[%s278 + $0x50] sm:$0xff] %v299
                %v301 = vld [vmem:[%s277 + $0x98] sm:$0xff]
                %302 = vst [vmem:[%s278 + $0x58] sm:$0xff] %v301
                %v303 = vld [vmem:[%s277 + $0xc0] sm:$0xff]
                %304 = vst [vmem:[%s278 + $0x60] sm:$0xff] %v303
                %v305 = vld [vmem:[%s277 + $0xc8] sm:$0xff]
                %306 = vst [vmem:[%s278 + $0x68] sm:$0xff] %v305
                %v307 = vld [vmem:[%s277 + $0xd0] sm:$0xff]
                %308 = vst [vmem:[%s278 + $0x70] sm:$0xff] %v307
                %v309 = vld [vmem:[%s277 + $0xd8] sm:$0xff]
                %310 = vst [vmem:[%s278 + $0x78] sm:$0xff] %v309
                %v311 = vld [vmem:[%s277 + $0x100] sm:$0xff]
                %312 = vst [vmem:[%s278 + $0x80] sm:$0xff] %v311
                %v313 = vld [vmem:[%s277 + $0x108] sm:$0xff]
                %314 = vst [vmem:[%s278 + $0x88] sm:$0xff] %v313
                %v315 = vld [vmem:[%s277 + $0x110] sm:$0xff]
                %316 = vst [vmem:[%s278 + $0x90] sm:$0xff] %v315
                %v317 = vld [vmem:[%s277 + $0x118] sm:$0xff]
                %318 = vst [vmem:[%s278 + $0x98] sm:$0xff] %v317
                %v319 = vld [vmem:[%s277 + $0x140] sm:$0xff]
                %320 = vst [vmem:[%s278 + $0xa0] sm:$0xff] %v319
                %v321 = vld [vmem:[%s277 + $0x148] sm:$0xff]
                %322 = vst [vmem:[%s278 + $0xa8] sm:$0xff] %v321
                %v323 = vld [vmem:[%s277 + $0x150] sm:$0xff]
                %324 = vst [vmem:[%s278 + $0xb0] sm:$0xff] %v323
                %v325 = vld [vmem:[%s277 + $0x158] sm:$0xff]
                %326 = vst [vmem:[%s278 + $0xb8] sm:$0xff] %v325
                %v327 = vld [vmem:[%s277 + $0x180] sm:$0xff]
                %328 = vst [vmem:[%s278 + $0xc0] sm:$0xff] %v327
                %v329 = vld [vmem:[%s277 + $0x188] sm:$0xff]
                %330 = vst [vmem:[%s278 + $0xc8] sm:$0xff] %v329
                %v331 = vld [vmem:[%s277 + $0x190] sm:$0xff]
                %332 = vst [vmem:[%s278 + $0xd0] sm:$0xff] %v331
                %v333 = vld [vmem:[%s277 + $0x198] sm:$0xff]
                %334 = vst [vmem:[%s278 + $0xd8] sm:$0xff] %v333
                %v335 = vld [vmem:[%s277 + $0x1c0] sm:$0xff]
                %336 = vst [vmem:[%s278 + $0xe0] sm:$0xff] %v335
                %v337 = vld [vmem:[%s277 + $0x1c8] sm:$0xff]
                %338 = vst [vmem:[%s278 + $0xe8] sm:$0xff] %v337
                %v339 = vld [vmem:[%s277 + $0x1d0] sm:$0xff]
                %340 = vst [vmem:[%s278 + $0xf0] sm:$0xff] %v339
                %v341 = vld [vmem:[%s277 + $0x1d8] sm:$0xff]
                %342 = vst [vmem:[%s278 + $0xf8] sm:$0xff] %v341
                %v343 = vld [vmem:[%s277 + $0x200] sm:$0xff]
                %344 = vst [vmem:[%s278 + $0x100] sm:$0xff] %v343
                %v345 = vld [vmem:[%s277 + $0x208] sm:$0xff]
                %346 = vst [vmem:[%s278 + $0x108] sm:$0xff] %v345
                %v347 = vld [vmem:[%s277 + $0x210] sm:$0xff]
                %348 = vst [vmem:[%s278 + $0x110] sm:$0xff] %v347
                %v349 = vld [vmem:[%s277 + $0x218] sm:$0xff]
                %350 = vst [vmem:[%s278 + $0x118] sm:$0xff] %v349
                %v351 = vld [vmem:[%s277 + $0x240] sm:$0xff]
                %352 = vst [vmem:[%s278 + $0x120] sm:$0xff] %v351
                %v353 = vld [vmem:[%s277 + $0x248] sm:$0xff]
                %354 = vst [vmem:[%s278 + $0x128] sm:$0xff] %v353
                %v355 = vld [vmem:[%s277 + $0x250] sm:$0xff]
                %356 = vst [vmem:[%s278 + $0x130] sm:$0xff] %v355
                %v357 = vld [vmem:[%s277 + $0x258] sm:$0xff]
                %358 = vst [vmem:[%s278 + $0x138] sm:$0xff] %v357
                %v359 = vld [vmem:[%s277 + $0x280] sm:$0xff]
                %360 = vst [vmem:[%s278 + $0x140] sm:$0xff] %v359
                %v361 = vld [vmem:[%s277 + $0x288] sm:$0xff]
                %362 = vst [vmem:[%s278 + $0x148] sm:$0xff] %v361
                %v363 = vld [vmem:[%s277 + $0x290] sm:$0xff]
                %364 = vst [vmem:[%s278 + $0x150] sm:$0xff] %v363
                %v365 = vld [vmem:[%s277 + $0x298] sm:$0xff]
                %366 = vst [vmem:[%s278 + $0x158] sm:$0xff] %v365
                %v367 = vld [vmem:[%s277 + $0x2c0] sm:$0xff]
                %368 = vst [vmem:[%s278 + $0x160] sm:$0xff] %v367
                %v369 = vld [vmem:[%s277 + $0x2c8] sm:$0xff]
                %370 = vst [vmem:[%s278 + $0x168] sm:$0xff] %v369
                %v371 = vld [vmem:[%s277 + $0x2d0] sm:$0xff]
                %372 = vst [vmem:[%s278 + $0x170] sm:$0xff] %v371
                %v373 = vld [vmem:[%s277 + $0x2d8] sm:$0xff]
                %374 = vst [vmem:[%s278 + $0x178] sm:$0xff] %v373
                %v375 = vld [vmem:[%s277 + $0x300] sm:$0xff]
                %376 = vst [vmem:[%s278 + $0x180] sm:$0xff] %v375
                %v377 = vld [vmem:[%s277 + $0x308] sm:$0xff]
                %378 = vst [vmem:[%s278 + $0x188] sm:$0xff] %v377
                %v379 = vld [vmem:[%s277 + $0x310] sm:$0xff]
                %380 = vst [vmem:[%s278 + $0x190] sm:$0xff] %v379
                %v381 = vld [vmem:[%s277 + $0x318] sm:$0xff]
                %382 = vst [vmem:[%s278 + $0x198] sm:$0xff] %v381
                %v383 = vld [vmem:[%s277 + $0x340] sm:$0xff]
                %384 = vst [vmem:[%s278 + $0x1a0] sm:$0xff] %v383
                %v385 = vld [vmem:[%s277 + $0x348] sm:$0xff]
                %386 = vst [vmem:[%s278 + $0x1a8] sm:$0xff] %v385
                %v387 = vld [vmem:[%s277 + $0x350] sm:$0xff]
                %388 = vst [vmem:[%s278 + $0x1b0] sm:$0xff] %v387
                %v389 = vld [vmem:[%s277 + $0x358] sm:$0xff]
                %390 = vst [vmem:[%s278 + $0x1b8] sm:$0xff] %v389
                %v391 = vld [vmem:[%s277 + $0x380] sm:$0xff]
                %392 = vst [vmem:[%s278 + $0x1c0] sm:$0xff] %v391
                %v393 = vld [vmem:[%s277 + $0x388] sm:$0xff]
                %394 = vst [vmem:[%s278 + $0x1c8] sm:$0xff] %v393
                %v395 = vld [vmem:[%s277 + $0x390] sm:$0xff]
                %396 = vst [vmem:[%s278 + $0x1d0] sm:$0xff] %v395
                %v397 = vld [vmem:[%s277 + $0x398] sm:$0xff]
                %398 = vst [vmem:[%s278 + $0x1d8] sm:$0xff] %v397
                %v399 = vld [vmem:[%s277 + $0x3c0] sm:$0xff]
                %400 = vst [vmem:[%s278 + $0x1e0] sm:$0xff] %v399
                %v401 = vld [vmem:[%s277 + $0x3c8] sm:$0xff]
                %402 = vst [vmem:[%s278 + $0x1e8] sm:$0xff] %v401
                %v403 = vld [vmem:[%s277 + $0x3d0] sm:$0xff]
                %404 = vst [vmem:[%s278 + $0x1f0] sm:$0xff] %v403
                %v405 = vld [vmem:[%s277 + $0x3d8] sm:$0xff]
                %406 = vst [vmem:[%s278 + $0x1f8] sm:$0xff] %v405
                %v407 = vld [vmem:[%s277 + $0x400] sm:$0xff]
                %408 = vst [vmem:[%s278 + $0x200] sm:$0xff] %v407
                %v409 = vld [vmem:[%s277 + $0x408] sm:$0xff]
                %410 = vst [vmem:[%s278 + $0x208] sm:$0xff] %v409
                %v411 = vld [vmem:[%s277 + $0x410] sm:$0xff]
                %412 = vst [vmem:[%s278 + $0x210] sm:$0xff] %v411
                %v413 = vld [vmem:[%s277 + $0x418] sm:$0xff]
                %414 = vst [vmem:[%s278 + $0x218] sm:$0xff] %v413
                %v415 = vld [vmem:[%s277 + $0x440] sm:$0xff]
                %416 = vst [vmem:[%s278 + $0x220] sm:$0xff] %v415
                %v417 = vld [vmem:[%s277 + $0x448] sm:$0xff]
                %418 = vst [vmem:[%s278 + $0x228] sm:$0xff] %v417
                %v419 = vld [vmem:[%s277 + $0x450] sm:$0xff]
                %420 = vst [vmem:[%s278 + $0x230] sm:$0xff] %v419
                %v421 = vld [vmem:[%s277 + $0x458] sm:$0xff]
                %422 = vst [vmem:[%s278 + $0x238] sm:$0xff] %v421
                %v423 = vld [vmem:[%s277 + $0x480] sm:$0xff]
                %424 = vst [vmem:[%s278 + $0x240] sm:$0xff] %v423
                %v425 = vld [vmem:[%s277 + $0x488] sm:$0xff]
                %426 = vst [vmem:[%s278 + $0x248] sm:$0xff] %v425
                %v427 = vld [vmem:[%s277 + $0x490] sm:$0xff]
                %428 = vst [vmem:[%s278 + $0x250] sm:$0xff] %v427
                %v429 = vld [vmem:[%s277 + $0x498] sm:$0xff]
                %430 = vst [vmem:[%s278 + $0x258] sm:$0xff] %v429
                %v431 = vld [vmem:[%s277 + $0x4c0] sm:$0xff]
                %432 = vst [vmem:[%s278 + $0x260] sm:$0xff] %v431
                %v433 = vld [vmem:[%s277 + $0x4c8] sm:$0xff]
                %434 = vst [vmem:[%s278 + $0x268] sm:$0xff] %v433
                %v435 = vld [vmem:[%s277 + $0x4d0] sm:$0xff]
                %436 = vst [vmem:[%s278 + $0x270] sm:$0xff] %v435
                %v437 = vld [vmem:[%s277 + $0x4d8] sm:$0xff]
                %438 = vst [vmem:[%s278 + $0x278] sm:$0xff] %v437
                %v439 = vld [vmem:[%s277 + $0x500] sm:$0xff]
                %440 = vst [vmem:[%s278 + $0x280] sm:$0xff] %v439
                %v441 = vld [vmem:[%s277 + $0x508] sm:$0xff]
                %442 = vst [vmem:[%s278 + $0x288] sm:$0xff] %v441
                %v443 = vld [vmem:[%s277 + $0x510] sm:$0xff]
                %444 = vst [vmem:[%s278 + $0x290] sm:$0xff] %v443
                %v445 = vld [vmem:[%s277 + $0x518] sm:$0xff]
                %446 = vst [vmem:[%s278 + $0x298] sm:$0xff] %v445
                %v447 = vld [vmem:[%s277 + $0x540] sm:$0xff]
                %448 = vst [vmem:[%s278 + $0x2a0] sm:$0xff] %v447
                %v449 = vld [vmem:[%s277 + $0x548] sm:$0xff]
                %450 = vst [vmem:[%s278 + $0x2a8] sm:$0xff] %v449
                %v451 = vld [vmem:[%s277 + $0x550] sm:$0xff]
                %452 = vst [vmem:[%s278 + $0x2b0] sm:$0xff] %v451
                %v453 = vld [vmem:[%s277 + $0x558] sm:$0xff]
                %454 = vst [vmem:[%s278 + $0x2b8] sm:$0xff] %v453
                %v455 = vld [vmem:[%s277 + $0x580] sm:$0xff]
                %456 = vst [vmem:[%s278 + $0x2c0] sm:$0xff] %v455
                %v457 = vld [vmem:[%s277 + $0x588] sm:$0xff]
                %458 = vst [vmem:[%s278 + $0x2c8] sm:$0xff] %v457
                %v459 = vld [vmem:[%s277 + $0x590] sm:$0xff]
                %460 = vst [vmem:[%s278 + $0x2d0] sm:$0xff] %v459
                %v461 = vld [vmem:[%s277 + $0x598] sm:$0xff]
                %462 = vst [vmem:[%s278 + $0x2d8] sm:$0xff] %v461
                %v463 = vld [vmem:[%s277 + $0x5c0] sm:$0xff]
                %464 = vst [vmem:[%s278 + $0x2e0] sm:$0xff] %v463
                %v465 = vld [vmem:[%s277 + $0x5c8] sm:$0xff]
                %466 = vst [vmem:[%s278 + $0x2e8] sm:$0xff] %v465
                %v467 = vld [vmem:[%s277 + $0x5d0] sm:$0xff]
                %468 = vst [vmem:[%s278 + $0x2f0] sm:$0xff] %v467
                %v469 = vld [vmem:[%s277 + $0x5d8] sm:$0xff]
                %470 = vst [vmem:[%s278 + $0x2f8] sm:$0xff] %v469
                %v471 = vld [vmem:[%s277 + $0x600] sm:$0xff]
                %472 = vst [vmem:[%s278 + $0x300] sm:$0xff] %v471
                %v473 = vld [vmem:[%s277 + $0x608] sm:$0xff]
                %474 = vst [vmem:[%s278 + $0x308] sm:$0xff] %v473
                %v475 = vld [vmem:[%s277 + $0x610] sm:$0xff]
                %476 = vst [vmem:[%s278 + $0x310] sm:$0xff] %v475
                %v477 = vld [vmem:[%s277 + $0x618] sm:$0xff]
                %478 = vst [vmem:[%s278 + $0x318] sm:$0xff] %v477
                %v479 = vld [vmem:[%s277 + $0x640] sm:$0xff]
                %480 = vst [vmem:[%s278 + $0x320] sm:$0xff] %v479
                %v481 = vld [vmem:[%s277 + $0x648] sm:$0xff]
                %482 = vst [vmem:[%s278 + $0x328] sm:$0xff] %v481
                %v483 = vld [vmem:[%s277 + $0x650] sm:$0xff]
                %484 = vst [vmem:[%s278 + $0x330] sm:$0xff] %v483
                %v485 = vld [vmem:[%s277 + $0x658] sm:$0xff]
                %486 = vst [vmem:[%s278 + $0x338] sm:$0xff] %v485
                %v487 = vld [vmem:[%s277 + $0x680] sm:$0xff]
                %488 = vst [vmem:[%s278 + $0x340] sm:$0xff] %v487
                %v489 = vld [vmem:[%s277 + $0x688] sm:$0xff]
                %490 = vst [vmem:[%s278 + $0x348] sm:$0xff] %v489
                %v491 = vld [vmem:[%s277 + $0x690] sm:$0xff]
                %492 = vst [vmem:[%s278 + $0x350] sm:$0xff] %v491
                %v493 = vld [vmem:[%s277 + $0x698] sm:$0xff]
                %494 = vst [vmem:[%s278 + $0x358] sm:$0xff] %v493
                %v495 = vld [vmem:[%s277 + $0x6c0] sm:$0xff]
                %496 = vst [vmem:[%s278 + $0x360] sm:$0xff] %v495
                %v497 = vld [vmem:[%s277 + $0x6c8] sm:$0xff]
                %498 = vst [vmem:[%s278 + $0x368] sm:$0xff] %v497
                %v499 = vld [vmem:[%s277 + $0x6d0] sm:$0xff]
                %500 = vst [vmem:[%s278 + $0x370] sm:$0xff] %v499
                %v501 = vld [vmem:[%s277 + $0x6d8] sm:$0xff]
                %502 = vst [vmem:[%s278 + $0x378] sm:$0xff] %v501
                %v503 = vld [vmem:[%s277 + $0x700] sm:$0xff]
                %504 = vst [vmem:[%s278 + $0x380] sm:$0xff] %v503
                %v505 = vld [vmem:[%s277 + $0x708] sm:$0xff]
                %506 = vst [vmem:[%s278 + $0x388] sm:$0xff] %v505
                %v507 = vld [vmem:[%s277 + $0x710] sm:$0xff]
                %508 = vst [vmem:[%s278 + $0x390] sm:$0xff] %v507
                %v509 = vld [vmem:[%s277 + $0x718] sm:$0xff]
                %510 = vst [vmem:[%s278 + $0x398] sm:$0xff] %v509
                %v511 = vld [vmem:[%s277 + $0x740] sm:$0xff]
                %512 = vst [vmem:[%s278 + $0x3a0] sm:$0xff] %v511
                %v513 = vld [vmem:[%s277 + $0x748] sm:$0xff]
                %514 = vst [vmem:[%s278 + $0x3a8] sm:$0xff] %v513
                %v515 = vld [vmem:[%s277 + $0x750] sm:$0xff]
                %516 = vst [vmem:[%s278 + $0x3b0] sm:$0xff] %v515
                %v517 = vld [vmem:[%s277 + $0x758] sm:$0xff]
                %518 = vst [vmem:[%s278 + $0x3b8] sm:$0xff] %v517
                %v519 = vld [vmem:[%s277 + $0x780] sm:$0xff]
                %520 = vst [vmem:[%s278 + $0x3c0] sm:$0xff] %v519
                %v521 = vld [vmem:[%s277 + $0x788] sm:$0xff]
                %522 = vst [vmem:[%s278 + $0x3c8] sm:$0xff] %v521
                %v523 = vld [vmem:[%s277 + $0x790] sm:$0xff]
                %524 = vst [vmem:[%s278 + $0x3d0] sm:$0xff] %v523
                %v525 = vld [vmem:[%s277 + $0x798] sm:$0xff]
                %526 = vst [vmem:[%s278 + $0x3d8] sm:$0xff] %v525
                %v527 = vld [vmem:[%s277 + $0x7c0] sm:$0xff]
                %528 = vst [vmem:[%s278 + $0x3e0] sm:$0xff] %v527
                %v529 = vld [vmem:[%s277 + $0x7c8] sm:$0xff]
                %530 = vst [vmem:[%s278 + $0x3e8] sm:$0xff] %v529
                %v531 = vld [vmem:[%s277 + $0x7d0] sm:$0xff]
                %532 = vst [vmem:[%s278 + $0x3f0] sm:$0xff] %v531
                %v533 = vld [vmem:[%s277 + $0x7d8] sm:$0xff]
                %534 = vst [vmem:[%s278 + $0x3f8] sm:$0xff] %v533
              $region49: #{image_only_sentiment_forward.1} parent=43 // loop_footer
                %s276 = sadd.s32 1, %s272
              $region50: #{image_only_sentiment_forward.1} parent=43 // loop_footer_branch
                %271 = sbr.rel target = $region46
              $region51: #{image_only_sentiment_forward.1} parent=43 // loop_exit
                _
            $region44: #{image_only_sentiment_forward.1} parent=39 // pred_fallthru
              _
            // Predicated region
            $region52: #{image_only_sentiment_forward.1} parent=39 // pred_check
              _
            $region53: #{image_only_sentiment_forward.1} parent=39 // pred_check_branch
              %536 = sbr.rel target = $region55
            $region54: #{image_only_sentiment_forward.1} parent=39 // pred_region
              _
            $region55: #{image_only_sentiment_forward.1} parent=39 // pred_fallthru
              _
          $region40: #{image_only_sentiment_forward.1} parent=35 // pred_fallthru
            _
          %537 = vnop
        $region36: #{image_only_sentiment_forward.1} parent=27 // pred_fallthru
          _
        // Predicated region
        $region56: #{image_only_sentiment_forward.1} parent=27 // pred_check
          %p538 = pneg %p100
        $region57: #{image_only_sentiment_forward.1} parent=27 // pred_check_branch
          %540 = sbr.rel (%p538) target = $region59
        $region58: #{image_only_sentiment_forward.1} parent=27 // pred_region
          %s541 = smul.u32 8, %s24
          %p542 = scmp.lt.s32.totalorder %s541, 15
          %s543 = scalar_select %p542, %s541, 15
          %s544 = scalar_lea.vmem %s2, %s543
          %s545 = smul.u32 8, %s24
        $region59: #{image_only_sentiment_forward.1} parent=27 // pred_fallthru
          _
        // Predicated region
        $region60: #{image_only_sentiment_forward.1} parent=27 // pred_check
          %p546 = pneg %p126
        $region61: #{image_only_sentiment_forward.1} parent=27 // pred_check_branch
          %548 = sbr.rel (%p546) target = $region63
        $region62: #{image_only_sentiment_forward.1} parent=27 // pred_region
          %s549 = smul.u32 128, %s24
          %p550 = scmp.lt.s32.totalorder %s549, 255
          %s551 = scalar_select %p550, %s549, 255
          %s552 = smul.addr %s551, 4
          %s553 = smul.addr %s552, 4
          %s554 = scalar_lea.vmem %s3, %s553
          %s555 = smul.u32 128, %s24
        $region63: #{image_only_sentiment_forward.1} parent=27 // pred_fallthru
          _
      $region28: #{image_only_sentiment_forward.1} parent=5 // pred_fallthru
        _
      %p556 = scmp.le.s32.totalorder 1, %s16
      %p557 = scmp.lt.s32.totalorder %s16, 5
      %p558 = pnand %p556, %p557
      %p559 = pneg %p558
      // Predicated region
      $region64: #{image_only_sentiment_forward.1} parent=5 // pred_check
        _
      $region65: #{image_only_sentiment_forward.1} parent=5 // pred_check_branch
        %561 = sbr.rel (%p558) target = $region67
      $region66: #{image_only_sentiment_forward.1} parent=5 // pred_region
        %s562 = ssub.s32 %s16, 1
        %s563 = sand.u32 %s67, 1
        %s564 = sand.u32 %s67, 1
        %s565 = smul.addr %s564, 1024
        %s566 = scalar_lea.vmem [#allocation3], %s565
        // Predicated region
        $region68: #{image_only_sentiment_forward.1} parent=66 // pred_check
          %p567 = pneg %p80
        $region69: #{image_only_sentiment_forward.1} parent=66 // pred_check_branch
          %569 = sbr.rel (%p567) target = $region71
        $region70: #{image_only_sentiment_forward.1} parent=66 // pred_region
          _
        $region71: #{image_only_sentiment_forward.1} parent=66 // pred_fallthru
          _
        %p570 = scmp.lt.s32.totalorder %s25, 1
        %s571 = scalar_select %p570, %s25, 1
        %s572 = smul.addr %s571, 64
        %s573 = smul.addr %s572, 4
        %s574 = scalar_lea.vmem %s0, %s573
        %p575 = pneg %p54
        %p576 = pneg %p51
        %s577 = sand.u32 %s67, 1
        %s578 = sand.u32 %s67, 1
        %s579 = smul.addr %s578, 1024
        %s580 = scalar_lea.vmem [#allocation3], %s579
        %p581 = pneg %p80
        %p582 = pneg %p77
        %s583 = smul.u32 8, %s26
        %p584 = scmp.lt.s32.totalorder %s583, 15
        %s585 = scalar_select %p584, %s583, 15
        %s586 = scalar_lea.vmem %s2, %s585
        %p587 = pneg %p106
        %p588 = pneg %p103
        %s589 = smul.u32 128, %s26
        %p590 = scmp.lt.s32.totalorder %s589, 255
        %s591 = scalar_select %p590, %s589, 255
        %s592 = smul.addr %s591, 4
        %s593 = smul.addr %s592, 4
        %s594 = scalar_lea.vmem %s3, %s593
        %p595 = pneg %p132
        %p596 = pneg %p129
        %p597 = pneg %p153
        %p598 = pneg %p150
        %p599 = pneg %p174
        %p600 = pneg %p171
        %p601 = pneg %p195
        %p602 = pneg %p192
        %p603 = pneg %p221
        %p604 = pneg %p218
        %s605 = sand.u32 %s208, 1
        %s606 = scalar_lea.sflag [#allocation5], %s605
        %s607 = sand.u32 %s208, 1
        %s608 = scalar_lea.vmem [#allocation4], %s607
        %p609 = scmp.lt.s32.totalorder %s25, 1
        %s610 = scalar_select %p609, %s25, 1
        %s611 = smul.addr %s610, 64
        %s612 = smul.addr %s611, 4
        %s613 = scalar_lea.vmem %s0, %s612
        %s614 = smul.u32 8, %s26
        %s615 = smul.u32 8, %s26
        %p616 = scmp.lt.s32.totalorder %s615, 15
        %s617 = scalar_select %p616, %s615, 15
        %s618 = scalar_lea.vmem %s2, %s617
        %s619 = smul.u32 8, %s26
        %s620 = smul.u32 128, %s26
        %p621 = scmp.lt.s32.totalorder %s620, 255
        %s622 = scalar_select %p621, %s620, 255
        %s623 = smul.addr %s622, 4
        %s624 = smul.addr %s623, 4
        %s625 = scalar_lea.vmem %s3, %s624
        %s626 = smul.u32 128, %s26
        %p627 = scmp.eq.s32.totalorder %s26, 0
        // Predicated region
        $region72: #{image_only_sentiment_forward.1} parent=66 // pred_check
          %p628 = pneg %p627
        $region73: #{image_only_sentiment_forward.1} parent=66 // pred_check_branch
          %630 = sbr.rel (%p628) target = $region75
        $region74: #{image_only_sentiment_forward.1} parent=66 // pred_region
          %v631 = vlaneseq
          %vm632 = vcmp.ge.s32.totalorder %v631, 0
          %vm633 = vcmp.lt.s32.totalorder %v631, 512
          %vm634 = vmand %vm632, %vm633
          %635 = vst.msk [vmem:[#allocation2] sm:$0xf] %vm634, 0.0
        $region75: #{image_only_sentiment_forward.1} parent=66 // pred_fallthru
          _
        %v636 = vld [vmem:[%s613] sm:$0xff]
        %v637 = vld [vmem:[%s613 + $0x8] sm:$0xff]
        %v638 = vld [vmem:[%s613 + $0x10] sm:$0xff]
        %v639 = vld [vmem:[%s613 + $0x18] sm:$0xff]
        %v640 = vld [vmem:[%s613 + $0x20] sm:$0xff]
        %v641 = vld [vmem:[%s613 + $0x28] sm:$0xff]
        %v642 = vld [vmem:[%s613 + $0x30] sm:$0xff]
        %v643 = vld [vmem:[%s613 + $0x38] sm:$0xff]
        %v644 = vld [vmem:[%s613 + $0x40] sm:$0xff]
        %v645 = vld [vmem:[%s613 + $0x48] sm:$0xff]
        %v646 = vld [vmem:[%s613 + $0x50] sm:$0xff]
        %v647 = vld [vmem:[%s613 + $0x58] sm:$0xff]
        %v648 = vld [vmem:[%s613 + $0x60] sm:$0xff]
        %v649 = vld [vmem:[%s613 + $0x68] sm:$0xff]
        %v650 = vld [vmem:[%s613 + $0x70] sm:$0xff]
        %v651 = vld [vmem:[%s613 + $0x78] sm:$0xff]
        %v652 = vld [vmem:[%s613 + $0x80] sm:$0xff]
        %v653 = vld [vmem:[%s613 + $0x88] sm:$0xff]
        %v654 = vld [vmem:[%s613 + $0x90] sm:$0xff]
        %v655 = vld [vmem:[%s613 + $0x98] sm:$0xff]
        %v656 = vld [vmem:[%s613 + $0xa0] sm:$0xff]
        %v657 = vld [vmem:[%s613 + $0xa8] sm:$0xff]
        %v658 = vld [vmem:[%s613 + $0xb0] sm:$0xff]
        %v659 = vld [vmem:[%s613 + $0xb8] sm:$0xff]
        %v660 = vld [vmem:[%s613 + $0xc0] sm:$0xff]
        %v661 = vld [vmem:[%s613 + $0xc8] sm:$0xff]
        %v662 = vld [vmem:[%s613 + $0xd0] sm:$0xff]
        %v663 = vld [vmem:[%s613 + $0xd8] sm:$0xff]
        %v664 = vld [vmem:[%s613 + $0xe0] sm:$0xff]
        %v665 = vld [vmem:[%s613 + $0xe8] sm:$0xff]
        %v666 = vld [vmem:[%s613 + $0xf0] sm:$0xff]
        %v667 = vld [vmem:[%s613 + $0xf8] sm:$0xff]
        %v668 = vld [vmem:[%s566] sm:$0xff]
        %v669 = vld [vmem:[%s566 + $0x8] sm:$0xff]
        %v670 = vld [vmem:[%s566 + $0x10] sm:$0xff]
        %v671 = vld [vmem:[%s566 + $0x18] sm:$0xff]
        %v672 = vld [vmem:[%s566 + $0x20] sm:$0xff]
        %v673 = vld [vmem:[%s566 + $0x28] sm:$0xff]
        %v674 = vld [vmem:[%s566 + $0x30] sm:$0xff]
        %v675 = vld [vmem:[%s566 + $0x38] sm:$0xff]
        %v676 = vld [vmem:[%s566 + $0x40] sm:$0xff]
        %v677 = vld [vmem:[%s566 + $0x48] sm:$0xff]
        %v678 = vld [vmem:[%s566 + $0x50] sm:$0xff]
        %v679 = vld [vmem:[%s566 + $0x58] sm:$0xff]
        %v680 = vld [vmem:[%s566 + $0x60] sm:$0xff]
        %v681 = vld [vmem:[%s566 + $0x68] sm:$0xff]
        %v682 = vld [vmem:[%s566 + $0x70] sm:$0xff]
        %v683 = vld [vmem:[%s566 + $0x78] sm:$0xff]
        %v684 = vld [vmem:[%s566 + $0x80] sm:$0xff]
        %v685 = vld [vmem:[%s566 + $0x88] sm:$0xff]
        %v686 = vld [vmem:[%s566 + $0x90] sm:$0xff]
        %v687 = vld [vmem:[%s566 + $0x98] sm:$0xff]
        %v688 = vld [vmem:[%s566 + $0xa0] sm:$0xff]
        %v689 = vld [vmem:[%s566 + $0xa8] sm:$0xff]
        %v690 = vld [vmem:[%s566 + $0xb0] sm:$0xff]
        %v691 = vld [vmem:[%s566 + $0xb8] sm:$0xff]
        %v692 = vld [vmem:[%s566 + $0xc0] sm:$0xff]
        %v693 = vld [vmem:[%s566 + $0xc8] sm:$0xff]
        %v694 = vld [vmem:[%s566 + $0xd0] sm:$0xff]
        %v695 = vld [vmem:[%s566 + $0xd8] sm:$0xff]
        %v696 = vld [vmem:[%s566 + $0xe0] sm:$0xff]
        %v697 = vld [vmem:[%s566 + $0xe8] sm:$0xff]
        %v698 = vld [vmem:[%s566 + $0xf0] sm:$0xff]
        %v699 = vld [vmem:[%s566 + $0xf8] sm:$0xff]
        %v700 = vld [vmem:[%s566 + $0x100] sm:$0xff]
        %v701 = vld [vmem:[%s566 + $0x108] sm:$0xff]
        %v702 = vld [vmem:[%s566 + $0x110] sm:$0xff]
        %v703 = vld [vmem:[%s566 + $0x118] sm:$0xff]
        %v704 = vld [vmem:[%s566 + $0x120] sm:$0xff]
        %v705 = vld [vmem:[%s566 + $0x128] sm:$0xff]
        %v706 = vld [vmem:[%s566 + $0x130] sm:$0xff]
        %v707 = vld [vmem:[%s566 + $0x138] sm:$0xff]
        %v708 = vld [vmem:[%s566 + $0x140] sm:$0xff]
        %v709 = vld [vmem:[%s566 + $0x148] sm:$0xff]
        %v710 = vld [vmem:[%s566 + $0x150] sm:$0xff]
        %v711 = vld [vmem:[%s566 + $0x158] sm:$0xff]
        %v712 = vld [vmem:[%s566 + $0x160] sm:$0xff]
        %v713 = vld [vmem:[%s566 + $0x168] sm:$0xff]
        %v714 = vld [vmem:[%s566 + $0x170] sm:$0xff]
        %v715 = vld [vmem:[%s566 + $0x178] sm:$0xff]
        %v716 = vld [vmem:[%s566 + $0x180] sm:$0xff]
        %v717 = vld [vmem:[%s566 + $0x188] sm:$0xff]
        %v718 = vld [vmem:[%s566 + $0x190] sm:$0xff]
        %v719 = vld [vmem:[%s566 + $0x198] sm:$0xff]
        %v720 = vld [vmem:[%s566 + $0x1a0] sm:$0xff]
        %v721 = vld [vmem:[%s566 + $0x1a8] sm:$0xff]
        %v722 = vld [vmem:[%s566 + $0x1b0] sm:$0xff]
        %v723 = vld [vmem:[%s566 + $0x1b8] sm:$0xff]
        %v724 = vld [vmem:[%s566 + $0x1c0] sm:$0xff]
        %v725 = vld [vmem:[%s566 + $0x1c8] sm:$0xff]
        %v726 = vld [vmem:[%s566 + $0x1d0] sm:$0xff]
        %v727 = vld [vmem:[%s566 + $0x1d8] sm:$0xff]
        %v728 = vld [vmem:[%s566 + $0x1e0] sm:$0xff]
        %v729 = vld [vmem:[%s566 + $0x1e8] sm:$0xff]
        %v730 = vld [vmem:[%s566 + $0x1f0] sm:$0xff]
        %v731 = vld [vmem:[%s566 + $0x1f8] sm:$0xff]
        %v732 = vld [vmem:[%s566 + $0x200] sm:$0xff]
        %v733 = vld [vmem:[%s566 + $0x208] sm:$0xff]
        %v734 = vld [vmem:[%s566 + $0x210] sm:$0xff]
        %v735 = vld [vmem:[%s566 + $0x218] sm:$0xff]
        %v736 = vld [vmem:[%s566 + $0x220] sm:$0xff]
        %v737 = vld [vmem:[%s566 + $0x228] sm:$0xff]
        %v738 = vld [vmem:[%s566 + $0x230] sm:$0xff]
        %v739 = vld [vmem:[%s566 + $0x238] sm:$0xff]
        %v740 = vld [vmem:[%s566 + $0x240] sm:$0xff]
        %v741 = vld [vmem:[%s566 + $0x248] sm:$0xff]
        %v742 = vld [vmem:[%s566 + $0x250] sm:$0xff]
        %v743 = vld [vmem:[%s566 + $0x258] sm:$0xff]
        %v744 = vld [vmem:[%s566 + $0x260] sm:$0xff]
        %v745 = vld [vmem:[%s566 + $0x268] sm:$0xff]
        %v746 = vld [vmem:[%s566 + $0x270] sm:$0xff]
        %v747 = vld [vmem:[%s566 + $0x278] sm:$0xff]
        %v748 = vld [vmem:[%s566 + $0x280] sm:$0xff]
        %v749 = vld [vmem:[%s566 + $0x288] sm:$0xff]
        %v750 = vld [vmem:[%s566 + $0x290] sm:$0xff]
        %v751 = vld [vmem:[%s566 + $0x298] sm:$0xff]
        %v752 = vld [vmem:[%s566 + $0x2a0] sm:$0xff]
        %v753 = vld [vmem:[%s566 + $0x2a8] sm:$0xff]
        %v754 = vld [vmem:[%s566 + $0x2b0] sm:$0xff]
        %v755 = vld [vmem:[%s566 + $0x2b8] sm:$0xff]
        %v756 = vld [vmem:[%s566 + $0x2c0] sm:$0xff]
        %v757 = vld [vmem:[%s566 + $0x2c8] sm:$0xff]
        %v758 = vld [vmem:[%s566 + $0x2d0] sm:$0xff]
        %v759 = vld [vmem:[%s566 + $0x2d8] sm:$0xff]
        %v760 = vld [vmem:[%s566 + $0x2e0] sm:$0xff]
        %v761 = vld [vmem:[%s566 + $0x2e8] sm:$0xff]
        %v762 = vld [vmem:[%s566 + $0x2f0] sm:$0xff]
        %v763 = vld [vmem:[%s566 + $0x2f8] sm:$0xff]
        %v764 = vld [vmem:[%s566 + $0x300] sm:$0xff]
        %v765 = vld [vmem:[%s566 + $0x308] sm:$0xff]
        %v766 = vld [vmem:[%s566 + $0x310] sm:$0xff]
        %v767 = vld [vmem:[%s566 + $0x318] sm:$0xff]
        %v768 = vld [vmem:[%s566 + $0x320] sm:$0xff]
        %v769 = vld [vmem:[%s566 + $0x328] sm:$0xff]
        %v770 = vld [vmem:[%s566 + $0x330] sm:$0xff]
        %v771 = vld [vmem:[%s566 + $0x338] sm:$0xff]
        %v772 = vld [vmem:[%s566 + $0x340] sm:$0xff]
        %v773 = vld [vmem:[%s566 + $0x348] sm:$0xff]
        %v774 = vld [vmem:[%s566 + $0x350] sm:$0xff]
        %v775 = vld [vmem:[%s566 + $0x358] sm:$0xff]
        %v776 = vld [vmem:[%s566 + $0x360] sm:$0xff]
        %v777 = vld [vmem:[%s566 + $0x368] sm:$0xff]
        %v778 = vld [vmem:[%s566 + $0x370] sm:$0xff]
        %v779 = vld [vmem:[%s566 + $0x378] sm:$0xff]
        %v780 = vld [vmem:[%s566 + $0x380] sm:$0xff]
        %v781 = vld [vmem:[%s566 + $0x388] sm:$0xff]
        %v782 = vld [vmem:[%s566 + $0x390] sm:$0xff]
        %v783 = vld [vmem:[%s566 + $0x398] sm:$0xff]
        %v784 = vld [vmem:[%s566 + $0x3a0] sm:$0xff]
        %v785 = vld [vmem:[%s566 + $0x3a8] sm:$0xff]
        %v786 = vld [vmem:[%s566 + $0x3b0] sm:$0xff]
        %v787 = vld [vmem:[%s566 + $0x3b8] sm:$0xff]
        %v788 = vld [vmem:[%s566 + $0x3c0] sm:$0xff]
        %v789 = vld [vmem:[%s566 + $0x3c8] sm:$0xff]
        %v790 = vld [vmem:[%s566 + $0x3d0] sm:$0xff]
        %v791 = vld [vmem:[%s566 + $0x3d8] sm:$0xff]
        %v792 = vld [vmem:[%s566 + $0x3e0] sm:$0xff]
        %v793 = vld [vmem:[%s566 + $0x3e8] sm:$0xff]
        %v794 = vld [vmem:[%s566 + $0x3f0] sm:$0xff]
        %v795 = vld [vmem:[%s566 + $0x3f8] sm:$0xff]
        %v796 = vld [vmem:[%s618] sm:$0xff]
        %v798 = vperm.slane %v796, 0
        %v799 = vperm.slane %v796, 1
        %v800 = vperm.slane %v796, 2
        %v801 = vperm.slane %v796, 3
        %v802 = vperm.slane %v796, 4
        %v803 = vperm.slane %v796, 5
        %v804 = vperm.slane %v796, 6
        %v805 = vperm.slane %v796, 7
        %v846 = vunpack.c.l.b16 %v636
        %v847 = vunpack.c.h.b16 %v636
        %v848 = vunpack.c.l.b16 %v637
        %v849 = vunpack.c.h.b16 %v637
        %v850 = vunpack.c.l.b16 %v638
        %v851 = vunpack.c.h.b16 %v638
        %v852 = vunpack.c.l.b16 %v639
        %v853 = vunpack.c.h.b16 %v639
        %v854 = vunpack.c.l.b16 %v640
        %v855 = vunpack.c.h.b16 %v640
        %v856 = vunpack.c.l.b16 %v641
        %v857 = vunpack.c.h.b16 %v641
        %v858 = vunpack.c.l.b16 %v642
        %v859 = vunpack.c.h.b16 %v642
        %v860 = vunpack.c.l.b16 %v643
        %v861 = vunpack.c.h.b16 %v643
        %v862 = vunpack.c.l.b16 %v644
        %v863 = vunpack.c.h.b16 %v644
        %v864 = vunpack.c.l.b16 %v645
        %v865 = vunpack.c.h.b16 %v645
        %v866 = vunpack.c.l.b16 %v646
        %v867 = vunpack.c.h.b16 %v646
        %v868 = vunpack.c.l.b16 %v647
        %v869 = vunpack.c.h.b16 %v647
        %v870 = vunpack.c.l.b16 %v648
        %v871 = vunpack.c.h.b16 %v648
        %v872 = vunpack.c.l.b16 %v649
        %v873 = vunpack.c.h.b16 %v649
        %v874 = vunpack.c.l.b16 %v650
        %v875 = vunpack.c.h.b16 %v650
        %v876 = vunpack.c.l.b16 %v651
        %v877 = vunpack.c.h.b16 %v651
        %v878 = vunpack.c.l.b16 %v652
        %v879 = vunpack.c.h.b16 %v652
        %v880 = vunpack.c.l.b16 %v653
        %v881 = vunpack.c.h.b16 %v653
        %v882 = vunpack.c.l.b16 %v654
        %v883 = vunpack.c.h.b16 %v654
        %v884 = vunpack.c.l.b16 %v655
        %v885 = vunpack.c.h.b16 %v655
        %v886 = vunpack.c.l.b16 %v656
        %v887 = vunpack.c.h.b16 %v656
        %v888 = vunpack.c.l.b16 %v657
        %v889 = vunpack.c.h.b16 %v657
        %v890 = vunpack.c.l.b16 %v658
        %v891 = vunpack.c.h.b16 %v658
        %v892 = vunpack.c.l.b16 %v659
        %v893 = vunpack.c.h.b16 %v659
        %v894 = vunpack.c.l.b16 %v660
        %v895 = vunpack.c.h.b16 %v660
        %v896 = vunpack.c.l.b16 %v661
        %v897 = vunpack.c.h.b16 %v661
        %v898 = vunpack.c.l.b16 %v662
        %v899 = vunpack.c.h.b16 %v662
        %v900 = vunpack.c.l.b16 %v663
        %v901 = vunpack.c.h.b16 %v663
        %v902 = vunpack.c.l.b16 %v664
        %v903 = vunpack.c.h.b16 %v664
        %v904 = vunpack.c.l.b16 %v665
        %v905 = vunpack.c.h.b16 %v665
        %v906 = vunpack.c.l.b16 %v666
        %v907 = vunpack.c.h.b16 %v666
        %v908 = vunpack.c.l.b16 %v667
        %v909 = vunpack.c.h.b16 %v667
        %v910 = vpack.c.b16 %v848, %v846
        %v911 = vpack.c.b16 %v849, %v847
        %v912 = vpack.c.b16 %v852, %v850
        %v913 = vpack.c.b16 %v853, %v851
        %v914 = vpack.c.b16 %v856, %v854
        %v915 = vpack.c.b16 %v857, %v855
        %v916 = vpack.c.b16 %v860, %v858
        %v917 = vpack.c.b16 %v861, %v859
        %v918 = vpack.c.b16 %v864, %v862
        %v919 = vpack.c.b16 %v865, %v863
        %v920 = vpack.c.b16 %v868, %v866
        %v921 = vpack.c.b16 %v869, %v867
        %v922 = vpack.c.b16 %v872, %v870
        %v923 = vpack.c.b16 %v873, %v871
        %v924 = vpack.c.b16 %v876, %v874
        %v925 = vpack.c.b16 %v877, %v875
        %v926 = vpack.c.b16 %v880, %v878
        %v927 = vpack.c.b16 %v881, %v879
        %v928 = vpack.c.b16 %v884, %v882
        %v929 = vpack.c.b16 %v885, %v883
        %v930 = vpack.c.b16 %v888, %v886
        %v931 = vpack.c.b16 %v889, %v887
        %v932 = vpack.c.b16 %v892, %v890
        %v933 = vpack.c.b16 %v893, %v891
        %v934 = vpack.c.b16 %v896, %v894
        %v935 = vpack.c.b16 %v897, %v895
        %v936 = vpack.c.b16 %v900, %v898
        %v937 = vpack.c.b16 %v901, %v899
        %v938 = vpack.c.b16 %v904, %v902
        %v939 = vpack.c.b16 %v905, %v903
        %v940 = vpack.c.b16 %v908, %v906
        %v941 = vpack.c.b16 %v909, %v907
        %v1102 = vunpack.c.l.b16 %v668
        %v1103 = vunpack.c.h.b16 %v668
        %v1104 = vunpack.c.l.b16 %v669
        %v1105 = vunpack.c.h.b16 %v669
        %v1106 = vunpack.c.l.b16 %v670
        %v1107 = vunpack.c.h.b16 %v670
        %v1108 = vunpack.c.l.b16 %v671
        %v1109 = vunpack.c.h.b16 %v671
        %v1110 = vunpack.c.l.b16 %v672
        %v1111 = vunpack.c.h.b16 %v672
        %v1112 = vunpack.c.l.b16 %v673
        %v1113 = vunpack.c.h.b16 %v673
        %v1114 = vunpack.c.l.b16 %v674
        %v1115 = vunpack.c.h.b16 %v674
        %v1116 = vunpack.c.l.b16 %v675
        %v1117 = vunpack.c.h.b16 %v675
        %v1118 = vunpack.c.l.b16 %v676
        %v1119 = vunpack.c.h.b16 %v676
        %v1120 = vunpack.c.l.b16 %v677
        %v1121 = vunpack.c.h.b16 %v677
        %v1122 = vunpack.c.l.b16 %v678
        %v1123 = vunpack.c.h.b16 %v678
        %v1124 = vunpack.c.l.b16 %v679
        %v1125 = vunpack.c.h.b16 %v679
        %v1126 = vunpack.c.l.b16 %v680
        %v1127 = vunpack.c.h.b16 %v680
        %v1128 = vunpack.c.l.b16 %v681
        %v1129 = vunpack.c.h.b16 %v681
        %v1130 = vunpack.c.l.b16 %v682
        %v1131 = vunpack.c.h.b16 %v682
        %v1132 = vunpack.c.l.b16 %v683
        %v1133 = vunpack.c.h.b16 %v683
        %v1134 = vunpack.c.l.b16 %v684
        %v1135 = vunpack.c.h.b16 %v684
        %v1136 = vunpack.c.l.b16 %v685
        %v1137 = vunpack.c.h.b16 %v685
        %v1138 = vunpack.c.l.b16 %v686
        %v1139 = vunpack.c.h.b16 %v686
        %v1140 = vunpack.c.l.b16 %v687
        %v1141 = vunpack.c.h.b16 %v687
        %v1142 = vunpack.c.l.b16 %v688
        %v1143 = vunpack.c.h.b16 %v688
        %v1144 = vunpack.c.l.b16 %v689
        %v1145 = vunpack.c.h.b16 %v689
        %v1146 = vunpack.c.l.b16 %v690
        %v1147 = vunpack.c.h.b16 %v690
        %v1148 = vunpack.c.l.b16 %v691
        %v1149 = vunpack.c.h.b16 %v691
        %v1150 = vunpack.c.l.b16 %v692
        %v1151 = vunpack.c.h.b16 %v692
        %v1152 = vunpack.c.l.b16 %v693
        %v1153 = vunpack.c.h.b16 %v693
        %v1154 = vunpack.c.l.b16 %v694
        %v1155 = vunpack.c.h.b16 %v694
        %v1156 = vunpack.c.l.b16 %v695
        %v1157 = vunpack.c.h.b16 %v695
        %v1158 = vunpack.c.l.b16 %v696
        %v1159 = vunpack.c.h.b16 %v696
        %v1160 = vunpack.c.l.b16 %v697
        %v1161 = vunpack.c.h.b16 %v697
        %v1162 = vunpack.c.l.b16 %v698
        %v1163 = vunpack.c.h.b16 %v698
        %v1164 = vunpack.c.l.b16 %v699
        %v1165 = vunpack.c.h.b16 %v699
        %v1166 = vunpack.c.l.b16 %v700
        %v1167 = vunpack.c.h.b16 %v700
        %v1168 = vunpack.c.l.b16 %v701
        %v1169 = vunpack.c.h.b16 %v701
        %v1170 = vunpack.c.l.b16 %v702
        %v1171 = vunpack.c.h.b16 %v702
        %v1172 = vunpack.c.l.b16 %v703
        %v1173 = vunpack.c.h.b16 %v703
        %v1174 = vunpack.c.l.b16 %v704
        %v1175 = vunpack.c.h.b16 %v704
        %v1176 = vunpack.c.l.b16 %v705
        %v1177 = vunpack.c.h.b16 %v705
        %v1178 = vunpack.c.l.b16 %v706
        %v1179 = vunpack.c.h.b16 %v706
        %v1180 = vunpack.c.l.b16 %v707
        %v1181 = vunpack.c.h.b16 %v707
        %v1182 = vunpack.c.l.b16 %v708
        %v1183 = vunpack.c.h.b16 %v708
        %v1184 = vunpack.c.l.b16 %v709
        %v1185 = vunpack.c.h.b16 %v709
        %v1186 = vunpack.c.l.b16 %v710
        %v1187 = vunpack.c.h.b16 %v710
        %v1188 = vunpack.c.l.b16 %v711
        %v1189 = vunpack.c.h.b16 %v711
        %v1190 = vunpack.c.l.b16 %v712
        %v1191 = vunpack.c.h.b16 %v712
        %v1192 = vunpack.c.l.b16 %v713
        %v1193 = vunpack.c.h.b16 %v713
        %v1194 = vunpack.c.l.b16 %v714
        %v1195 = vunpack.c.h.b16 %v714
        %v1196 = vunpack.c.l.b16 %v715
        %v1197 = vunpack.c.h.b16 %v715
        %v1198 = vunpack.c.l.b16 %v716
        %v1199 = vunpack.c.h.b16 %v716
        %v1200 = vunpack.c.l.b16 %v717
        %v1201 = vunpack.c.h.b16 %v717
        %v1202 = vunpack.c.l.b16 %v718
        %v1203 = vunpack.c.h.b16 %v718
        %v1204 = vunpack.c.l.b16 %v719
        %v1205 = vunpack.c.h.b16 %v719
        %v1206 = vunpack.c.l.b16 %v720
        %v1207 = vunpack.c.h.b16 %v720
        %v1208 = vunpack.c.l.b16 %v721
        %v1209 = vunpack.c.h.b16 %v721
        %v1210 = vunpack.c.l.b16 %v722
        %v1211 = vunpack.c.h.b16 %v722
        %v1212 = vunpack.c.l.b16 %v723
        %v1213 = vunpack.c.h.b16 %v723
        %v1214 = vunpack.c.l.b16 %v724
        %v1215 = vunpack.c.h.b16 %v724
        %v1216 = vunpack.c.l.b16 %v725
        %v1217 = vunpack.c.h.b16 %v725
        %v1218 = vunpack.c.l.b16 %v726
        %v1219 = vunpack.c.h.b16 %v726
        %v1220 = vunpack.c.l.b16 %v727
        %v1221 = vunpack.c.h.b16 %v727
        %v1222 = vunpack.c.l.b16 %v728
        %v1223 = vunpack.c.h.b16 %v728
        %v1224 = vunpack.c.l.b16 %v729
        %v1225 = vunpack.c.h.b16 %v729
        %v1226 = vunpack.c.l.b16 %v730
        %v1227 = vunpack.c.h.b16 %v730
        %v1228 = vunpack.c.l.b16 %v731
        %v1229 = vunpack.c.h.b16 %v731
        %v1230 = vunpack.c.l.b16 %v732
        %v1231 = vunpack.c.h.b16 %v732
        %v1232 = vunpack.c.l.b16 %v733
        %v1233 = vunpack.c.h.b16 %v733
        %v1234 = vunpack.c.l.b16 %v734
        %v1235 = vunpack.c.h.b16 %v734
        %v1236 = vunpack.c.l.b16 %v735
        %v1237 = vunpack.c.h.b16 %v735
        %v1238 = vunpack.c.l.b16 %v736
        %v1239 = vunpack.c.h.b16 %v736
        %v1240 = vunpack.c.l.b16 %v737
        %v1241 = vunpack.c.h.b16 %v737
        %v1242 = vunpack.c.l.b16 %v738
        %v1243 = vunpack.c.h.b16 %v738
        %v1244 = vunpack.c.l.b16 %v739
        %v1245 = vunpack.c.h.b16 %v739
        %v1246 = vunpack.c.l.b16 %v740
        %v1247 = vunpack.c.h.b16 %v740
        %v1248 = vunpack.c.l.b16 %v741
        %v1249 = vunpack.c.h.b16 %v741
        %v1250 = vunpack.c.l.b16 %v742
        %v1251 = vunpack.c.h.b16 %v742
        %v1252 = vunpack.c.l.b16 %v743
        %v1253 = vunpack.c.h.b16 %v743
        %v1254 = vunpack.c.l.b16 %v744
        %v1255 = vunpack.c.h.b16 %v744
        %v1256 = vunpack.c.l.b16 %v745
        %v1257 = vunpack.c.h.b16 %v745
        %v1258 = vunpack.c.l.b16 %v746
        %v1259 = vunpack.c.h.b16 %v746
        %v1260 = vunpack.c.l.b16 %v747
        %v1261 = vunpack.c.h.b16 %v747
        %v1262 = vunpack.c.l.b16 %v748
        %v1263 = vunpack.c.h.b16 %v748
        %v1264 = vunpack.c.l.b16 %v749
        %v1265 = vunpack.c.h.b16 %v749
        %v1266 = vunpack.c.l.b16 %v750
        %v1267 = vunpack.c.h.b16 %v750
        %v1268 = vunpack.c.l.b16 %v751
        %v1269 = vunpack.c.h.b16 %v751
        %v1270 = vunpack.c.l.b16 %v752
        %v1271 = vunpack.c.h.b16 %v752
        %v1272 = vunpack.c.l.b16 %v753
        %v1273 = vunpack.c.h.b16 %v753
        %v1274 = vunpack.c.l.b16 %v754
        %v1275 = vunpack.c.h.b16 %v754
        %v1276 = vunpack.c.l.b16 %v755
        %v1277 = vunpack.c.h.b16 %v755
        %v1278 = vunpack.c.l.b16 %v756
        %v1279 = vunpack.c.h.b16 %v756
        %v1280 = vunpack.c.l.b16 %v757
        %v1281 = vunpack.c.h.b16 %v757
        %v1282 = vunpack.c.l.b16 %v758
        %v1283 = vunpack.c.h.b16 %v758
        %v1284 = vunpack.c.l.b16 %v759
        %v1285 = vunpack.c.h.b16 %v759
        %v1286 = vunpack.c.l.b16 %v760
        %v1287 = vunpack.c.h.b16 %v760
        %v1288 = vunpack.c.l.b16 %v761
        %v1289 = vunpack.c.h.b16 %v761
        %v1290 = vunpack.c.l.b16 %v762
        %v1291 = vunpack.c.h.b16 %v762
        %v1292 = vunpack.c.l.b16 %v763
        %v1293 = vunpack.c.h.b16 %v763
        %v1294 = vunpack.c.l.b16 %v764
        %v1295 = vunpack.c.h.b16 %v764
        %v1296 = vunpack.c.l.b16 %v765
        %v1297 = vunpack.c.h.b16 %v765
        %v1298 = vunpack.c.l.b16 %v766
        %v1299 = vunpack.c.h.b16 %v766
        %v1300 = vunpack.c.l.b16 %v767
        %v1301 = vunpack.c.h.b16 %v767
        %v1302 = vunpack.c.l.b16 %v768
        %v1303 = vunpack.c.h.b16 %v768
        %v1304 = vunpack.c.l.b16 %v769
        %v1305 = vunpack.c.h.b16 %v769
        %v1306 = vunpack.c.l.b16 %v770
        %v1307 = vunpack.c.h.b16 %v770
        %v1308 = vunpack.c.l.b16 %v771
        %v1309 = vunpack.c.h.b16 %v771
        %v1310 = vunpack.c.l.b16 %v772
        %v1311 = vunpack.c.h.b16 %v772
        %v1312 = vunpack.c.l.b16 %v773
        %v1313 = vunpack.c.h.b16 %v773
        %v1314 = vunpack.c.l.b16 %v774
        %v1315 = vunpack.c.h.b16 %v774
        %v1316 = vunpack.c.l.b16 %v775
        %v1317 = vunpack.c.h.b16 %v775
        %v1318 = vunpack.c.l.b16 %v776
        %v1319 = vunpack.c.h.b16 %v776
        %v1320 = vunpack.c.l.b16 %v777
        %v1321 = vunpack.c.h.b16 %v777
        %v1322 = vunpack.c.l.b16 %v778
        %v1323 = vunpack.c.h.b16 %v778
        %v1324 = vunpack.c.l.b16 %v779
        %v1325 = vunpack.c.h.b16 %v779
        %v1326 = vunpack.c.l.b16 %v780
        %v1327 = vunpack.c.h.b16 %v780
        %v1328 = vunpack.c.l.b16 %v781
        %v1329 = vunpack.c.h.b16 %v781
        %v1330 = vunpack.c.l.b16 %v782
        %v1331 = vunpack.c.h.b16 %v782
        %v1332 = vunpack.c.l.b16 %v783
        %v1333 = vunpack.c.h.b16 %v783
        %v1334 = vunpack.c.l.b16 %v784
        %v1335 = vunpack.c.h.b16 %v784
        %v1336 = vunpack.c.l.b16 %v785
        %v1337 = vunpack.c.h.b16 %v785
        %v1338 = vunpack.c.l.b16 %v786
        %v1339 = vunpack.c.h.b16 %v786
        %v1340 = vunpack.c.l.b16 %v787
        %v1341 = vunpack.c.h.b16 %v787
        %v1342 = vunpack.c.l.b16 %v788
        %v1343 = vunpack.c.h.b16 %v788
        %v1344 = vunpack.c.l.b16 %v789
        %v1345 = vunpack.c.h.b16 %v789
        %v1346 = vunpack.c.l.b16 %v790
        %v1347 = vunpack.c.h.b16 %v790
        %v1348 = vunpack.c.l.b16 %v791
        %v1349 = vunpack.c.h.b16 %v791
        %v1350 = vunpack.c.l.b16 %v792
        %v1351 = vunpack.c.h.b16 %v792
        %v1352 = vunpack.c.l.b16 %v793
        %v1353 = vunpack.c.h.b16 %v793
        %v1354 = vunpack.c.l.b16 %v794
        %v1355 = vunpack.c.h.b16 %v794
        %v1356 = vunpack.c.l.b16 %v795
        %v1357 = vunpack.c.h.b16 %v795
        %v1358 = vpack.c.b16 %v1110, %v1102
        %v1359 = vpack.c.b16 %v1111, %v1103
        %v1360 = vpack.c.b16 %v1112, %v1104
        %v1361 = vpack.c.b16 %v1113, %v1105
        %v1362 = vpack.c.b16 %v1114, %v1106
        %v1363 = vpack.c.b16 %v1115, %v1107
        %v1364 = vpack.c.b16 %v1116, %v1108
        %v1365 = vpack.c.b16 %v1117, %v1109
        %v1366 = vpack.c.b16 %v1126, %v1118
        %v1367 = vpack.c.b16 %v1127, %v1119
        %v1368 = vpack.c.b16 %v1128, %v1120
        %v1369 = vpack.c.b16 %v1129, %v1121
        %v1370 = vpack.c.b16 %v1130, %v1122
        %v1371 = vpack.c.b16 %v1131, %v1123
        %v1372 = vpack.c.b16 %v1132, %v1124
        %v1373 = vpack.c.b16 %v1133, %v1125
        %v1374 = vpack.c.b16 %v1142, %v1134
        %v1375 = vpack.c.b16 %v1143, %v1135
        %v1376 = vpack.c.b16 %v1144, %v1136
        %v1377 = vpack.c.b16 %v1145, %v1137
        %v1378 = vpack.c.b16 %v1146, %v1138
        %v1379 = vpack.c.b16 %v1147, %v1139
        %v1380 = vpack.c.b16 %v1148, %v1140
        %v1381 = vpack.c.b16 %v1149, %v1141
        %v1382 = vpack.c.b16 %v1158, %v1150
        %v1383 = vpack.c.b16 %v1159, %v1151
        %v1384 = vpack.c.b16 %v1160, %v1152
        %v1385 = vpack.c.b16 %v1161, %v1153
        %v1386 = vpack.c.b16 %v1162, %v1154
        %v1387 = vpack.c.b16 %v1163, %v1155
        %v1388 = vpack.c.b16 %v1164, %v1156
        %v1389 = vpack.c.b16 %v1165, %v1157
        %v1390 = vpack.c.b16 %v1174, %v1166
        %v1391 = vpack.c.b16 %v1175, %v1167
        %v1392 = vpack.c.b16 %v1176, %v1168
        %v1393 = vpack.c.b16 %v1177, %v1169
        %v1394 = vpack.c.b16 %v1178, %v1170
        %v1395 = vpack.c.b16 %v1179, %v1171
        %v1396 = vpack.c.b16 %v1180, %v1172
        %v1397 = vpack.c.b16 %v1181, %v1173
        %v1398 = vpack.c.b16 %v1190, %v1182
        %v1399 = vpack.c.b16 %v1191, %v1183
        %v1400 = vpack.c.b16 %v1192, %v1184
        %v1401 = vpack.c.b16 %v1193, %v1185
        %v1402 = vpack.c.b16 %v1194, %v1186
        %v1403 = vpack.c.b16 %v1195, %v1187
        %v1404 = vpack.c.b16 %v1196, %v1188
        %v1405 = vpack.c.b16 %v1197, %v1189
        %v1406 = vpack.c.b16 %v1206, %v1198
        %v1407 = vpack.c.b16 %v1207, %v1199
        %v1408 = vpack.c.b16 %v1208, %v1200
        %v1409 = vpack.c.b16 %v1209, %v1201
        %v1410 = vpack.c.b16 %v1210, %v1202
        %v1411 = vpack.c.b16 %v1211, %v1203
        %v1412 = vpack.c.b16 %v1212, %v1204
        %v1413 = vpack.c.b16 %v1213, %v1205
        %v1414 = vpack.c.b16 %v1222, %v1214
        %v1415 = vpack.c.b16 %v1223, %v1215
        %v1416 = vpack.c.b16 %v1224, %v1216
        %v1417 = vpack.c.b16 %v1225, %v1217
        %v1418 = vpack.c.b16 %v1226, %v1218
        %v1419 = vpack.c.b16 %v1227, %v1219
        %v1420 = vpack.c.b16 %v1228, %v1220
        %v1421 = vpack.c.b16 %v1229, %v1221
        %v1422 = vpack.c.b16 %v1238, %v1230
        %v1423 = vpack.c.b16 %v1239, %v1231
        %v1424 = vpack.c.b16 %v1240, %v1232
        %v1425 = vpack.c.b16 %v1241, %v1233
        %v1426 = vpack.c.b16 %v1242, %v1234
        %v1427 = vpack.c.b16 %v1243, %v1235
        %v1428 = vpack.c.b16 %v1244, %v1236
        %v1429 = vpack.c.b16 %v1245, %v1237
        %v1430 = vpack.c.b16 %v1254, %v1246
        %v1431 = vpack.c.b16 %v1255, %v1247
        %v1432 = vpack.c.b16 %v1256, %v1248
        %v1433 = vpack.c.b16 %v1257, %v1249
        %v1434 = vpack.c.b16 %v1258, %v1250
        %v1435 = vpack.c.b16 %v1259, %v1251
        %v1436 = vpack.c.b16 %v1260, %v1252
        %v1437 = vpack.c.b16 %v1261, %v1253
        %v1438 = vpack.c.b16 %v1270, %v1262
        %v1439 = vpack.c.b16 %v1271, %v1263
        %v1440 = vpack.c.b16 %v1272, %v1264
        %v1441 = vpack.c.b16 %v1273, %v1265
        %v1442 = vpack.c.b16 %v1274, %v1266
        %v1443 = vpack.c.b16 %v1275, %v1267
        %v1444 = vpack.c.b16 %v1276, %v1268
        %v1445 = vpack.c.b16 %v1277, %v1269
        %v1446 = vpack.c.b16 %v1286, %v1278
        %v1447 = vpack.c.b16 %v1287, %v1279
        %v1448 = vpack.c.b16 %v1288, %v1280
        %v1449 = vpack.c.b16 %v1289, %v1281
        %v1450 = vpack.c.b16 %v1290, %v1282
        %v1451 = vpack.c.b16 %v1291, %v1283
        %v1452 = vpack.c.b16 %v1292, %v1284
        %v1453 = vpack.c.b16 %v1293, %v1285
        %v1454 = vpack.c.b16 %v1302, %v1294
        %v1455 = vpack.c.b16 %v1303, %v1295
        %v1456 = vpack.c.b16 %v1304, %v1296
        %v1457 = vpack.c.b16 %v1305, %v1297
        %v1458 = vpack.c.b16 %v1306, %v1298
        %v1459 = vpack.c.b16 %v1307, %v1299
        %v1460 = vpack.c.b16 %v1308, %v1300
        %v1461 = vpack.c.b16 %v1309, %v1301
        %v1462 = vpack.c.b16 %v1318, %v1310
        %v1463 = vpack.c.b16 %v1319, %v1311
        %v1464 = vpack.c.b16 %v1320, %v1312
        %v1465 = vpack.c.b16 %v1321, %v1313
        %v1466 = vpack.c.b16 %v1322, %v1314
        %v1467 = vpack.c.b16 %v1323, %v1315
        %v1468 = vpack.c.b16 %v1324, %v1316
        %v1469 = vpack.c.b16 %v1325, %v1317
        %v1470 = vpack.c.b16 %v1334, %v1326
        %v1471 = vpack.c.b16 %v1335, %v1327
        %v1472 = vpack.c.b16 %v1336, %v1328
        %v1473 = vpack.c.b16 %v1337, %v1329
        %v1474 = vpack.c.b16 %v1338, %v1330
        %v1475 = vpack.c.b16 %v1339, %v1331
        %v1476 = vpack.c.b16 %v1340, %v1332
        %v1477 = vpack.c.b16 %v1341, %v1333
        %v1478 = vpack.c.b16 %v1350, %v1342
        %v1479 = vpack.c.b16 %v1351, %v1343
        %v1480 = vpack.c.b16 %v1352, %v1344
        %v1481 = vpack.c.b16 %v1353, %v1345
        %v1482 = vpack.c.b16 %v1354, %v1346
        %v1483 = vpack.c.b16 %v1355, %v1347
        %v1484 = vpack.c.b16 %v1356, %v1348
        %v1485 = vpack.c.b16 %v1357, %v1349
        %1614 = vmatpush.bf16.msra.mxu0 %v1414
        %1615 = vmatpush.bf16.msra.mxu0 %v1406
        %1616 = vmatpush.bf16.msra.mxu0 %v1398
        %1617 = vmatpush.bf16.msra.mxu0 %v1390
        %1618 = vmatpush.bf16.msra.mxu0 %v1382
        %1619 = vmatpush.bf16.msra.mxu0 %v1374
        %1620 = vmatpush.bf16.msra.mxu0 %v1366
        %1621 = vmatpush.bf16.msra.mxu0 %v1358
        %1622 = vmatmul.bf16.gmra.mxu0 %v910
        %v1623 = vpop.f32.mrf.mxu0
        %v1624 = vadd.f32 %v798, %v1623
        %v1625 = vpop.f32.mrf.mxu0
        %v1626 = vadd.f32 %v798, %v1625
        %1627 = vmatmul.bf16.gmra.mxu0 %v912
        %v1628 = vpop.f32.mrf.mxu0
        %v1629 = vadd.f32 %v798, %v1628
        %v1630 = vpop.f32.mrf.mxu0
        %v1631 = vadd.f32 %v798, %v1630
        %1632 = vmatmul.bf16.gmra.mxu0 %v914
        %v1633 = vpop.f32.mrf.mxu0
        %v1634 = vadd.f32 %v798, %v1633
        %v1635 = vpop.f32.mrf.mxu0
        %v1636 = vadd.f32 %v798, %v1635
        %1637 = vmatmul.bf16.gmra.mxu0 %v916
        %v1638 = vpop.f32.mrf.mxu0
        %v1639 = vadd.f32 %v798, %v1638
        %v1640 = vpop.f32.mrf.mxu0
        %v1641 = vadd.f32 %v798, %v1640
        %1642 = vmatmul.bf16.gmra.mxu0 %v918
        %v1643 = vpop.f32.mrf.mxu0
        %v1644 = vadd.f32 %v798, %v1643
        %v1645 = vpop.f32.mrf.mxu0
        %v1646 = vadd.f32 %v798, %v1645
        %1647 = vmatmul.bf16.gmra.mxu0 %v920
        %v1648 = vpop.f32.mrf.mxu0
        %v1649 = vadd.f32 %v798, %v1648
        %v1650 = vpop.f32.mrf.mxu0
        %v1651 = vadd.f32 %v798, %v1650
        %1652 = vmatmul.bf16.gmra.mxu0 %v922
        %v1653 = vpop.f32.mrf.mxu0
        %v1654 = vadd.f32 %v798, %v1653
        %v1655 = vpop.f32.mrf.mxu0
        %v1656 = vadd.f32 %v798, %v1655
        %1657 = vmatmul.bf16.gmra.mxu0 %v924
        %v1658 = vpop.f32.mrf.mxu0
        %v1659 = vadd.f32 %v798, %v1658
        %v1660 = vpop.f32.mrf.mxu0
        %v1661 = vadd.f32 %v798, %v1660
        %1662 = vmatmul.bf16.gmra.mxu0 %v926
        %v1663 = vpop.f32.mrf.mxu0
        %v1664 = vadd.f32 %v798, %v1663
        %v1665 = vpop.f32.mrf.mxu0
        %v1666 = vadd.f32 %v798, %v1665
        %1667 = vmatmul.bf16.gmra.mxu0 %v928
        %v1668 = vpop.f32.mrf.mxu0
        %v1669 = vadd.f32 %v798, %v1668
        %v1670 = vpop.f32.mrf.mxu0
        %v1671 = vadd.f32 %v798, %v1670
        %1672 = vmatmul.bf16.gmra.mxu0 %v930
        %v1673 = vpop.f32.mrf.mxu0
        %v1674 = vadd.f32 %v798, %v1673
        %v1675 = vpop.f32.mrf.mxu0
        %v1676 = vadd.f32 %v798, %v1675
        %1677 = vmatmul.bf16.gmra.mxu0 %v932
        %v1678 = vpop.f32.mrf.mxu0
        %v1679 = vadd.f32 %v798, %v1678
        %v1680 = vpop.f32.mrf.mxu0
        %v1681 = vadd.f32 %v798, %v1680
        %1682 = vmatmul.bf16.gmra.mxu0 %v934
        %v1683 = vpop.f32.mrf.mxu0
        %v1684 = vadd.f32 %v798, %v1683
        %v1685 = vpop.f32.mrf.mxu0
        %v1686 = vadd.f32 %v798, %v1685
        %1687 = vmatmul.bf16.gmra.mxu0 %v936
        %v1688 = vpop.f32.mrf.mxu0
        %v1689 = vadd.f32 %v798, %v1688
        %v1690 = vpop.f32.mrf.mxu0
        %v1691 = vadd.f32 %v798, %v1690
        %1692 = vmatmul.bf16.gmra.mxu0 %v938
        %v1693 = vpop.f32.mrf.mxu0
        %v1694 = vadd.f32 %v798, %v1693
        %v1695 = vpop.f32.mrf.mxu0
        %v1696 = vadd.f32 %v798, %v1695
        %1697 = vmatmul.bf16.gmra.mxu0 %v940
        %v1698 = vpop.f32.mrf.mxu0
        %v1699 = vadd.f32 %v798, %v1698
        %v1700 = vpop.f32.mrf.mxu0
        %v1701 = vadd.f32 %v798, %v1700
        %1702 = vdwg.mxu0
        %1703 = vmatpush.bf16.msra.mxu0 %v1478
        %1704 = vmatpush.bf16.msra.mxu0 %v1470
        %1705 = vmatpush.bf16.msra.mxu0 %v1462
        %1706 = vmatpush.bf16.msra.mxu0 %v1454
        %1707 = vmatpush.bf16.msra.mxu0 %v1446
        %1708 = vmatpush.bf16.msra.mxu0 %v1438
        %1709 = vmatpush.bf16.msra.mxu0 %v1430
        %1710 = vmatpush.bf16.msra.mxu0 %v1422
        %1711 = vmatmul.bf16.gmra.mxu0 %v911
        %v1712 = vpop.f32.mrf.mxu0
        %v1713 = vadd.f32 %v1624, %v1712
        %v1714 = vpop.f32.mrf.mxu0
        %v1715 = vadd.f32 %v1626, %v1714
        %1716 = vmatmul.bf16.gmra.mxu0 %v913
        %v1717 = vpop.f32.mrf.mxu0
        %v1718 = vadd.f32 %v1629, %v1717
        %v1719 = vpop.f32.mrf.mxu0
        %v1720 = vadd.f32 %v1631, %v1719
        %1721 = vmatmul.bf16.gmra.mxu0 %v915
        %v1722 = vpop.f32.mrf.mxu0
        %v1723 = vadd.f32 %v1634, %v1722
        %v1724 = vpop.f32.mrf.mxu0
        %v1725 = vadd.f32 %v1636, %v1724
        %1726 = vmatmul.bf16.gmra.mxu0 %v917
        %v1727 = vpop.f32.mrf.mxu0
        %v1728 = vadd.f32 %v1639, %v1727
        %v1729 = vpop.f32.mrf.mxu0
        %v1730 = vadd.f32 %v1641, %v1729
        %1731 = vmatmul.bf16.gmra.mxu0 %v919
        %v1732 = vpop.f32.mrf.mxu0
        %v1733 = vadd.f32 %v1644, %v1732
        %v1734 = vpop.f32.mrf.mxu0
        %v1735 = vadd.f32 %v1646, %v1734
        %1736 = vmatmul.bf16.gmra.mxu0 %v921
        %v1737 = vpop.f32.mrf.mxu0
        %v1738 = vadd.f32 %v1649, %v1737
        %v1739 = vpop.f32.mrf.mxu0
        %v1740 = vadd.f32 %v1651, %v1739
        %1741 = vmatmul.bf16.gmra.mxu0 %v923
        %v1742 = vpop.f32.mrf.mxu0
        %v1743 = vadd.f32 %v1654, %v1742
        %v1744 = vpop.f32.mrf.mxu0
        %v1745 = vadd.f32 %v1656, %v1744
        %1746 = vmatmul.bf16.gmra.mxu0 %v925
        %v1747 = vpop.f32.mrf.mxu0
        %v1748 = vadd.f32 %v1659, %v1747
        %v1749 = vpop.f32.mrf.mxu0
        %v1750 = vadd.f32 %v1661, %v1749
        %1751 = vmatmul.bf16.gmra.mxu0 %v927
        %v1752 = vpop.f32.mrf.mxu0
        %v1753 = vadd.f32 %v1664, %v1752
        %v1754 = vpop.f32.mrf.mxu0
        %v1755 = vadd.f32 %v1666, %v1754
        %1756 = vmatmul.bf16.gmra.mxu0 %v929
        %v1757 = vpop.f32.mrf.mxu0
        %v1758 = vadd.f32 %v1669, %v1757
        %v1759 = vpop.f32.mrf.mxu0
        %v1760 = vadd.f32 %v1671, %v1759
        %1761 = vmatmul.bf16.gmra.mxu0 %v931
        %v1762 = vpop.f32.mrf.mxu0
        %v1763 = vadd.f32 %v1674, %v1762
        %v1764 = vpop.f32.mrf.mxu0
        %v1765 = vadd.f32 %v1676, %v1764
        %1766 = vmatmul.bf16.gmra.mxu0 %v933
        %v1767 = vpop.f32.mrf.mxu0
        %v1768 = vadd.f32 %v1679, %v1767
        %v1769 = vpop.f32.mrf.mxu0
        %v1770 = vadd.f32 %v1681, %v1769
        %1771 = vmatmul.bf16.gmra.mxu0 %v935
        %v1772 = vpop.f32.mrf.mxu0
        %v1773 = vadd.f32 %v1684, %v1772
        %v1774 = vpop.f32.mrf.mxu0
        %v1775 = vadd.f32 %v1686, %v1774
        %1776 = vmatmul.bf16.gmra.mxu0 %v937
        %v1777 = vpop.f32.mrf.mxu0
        %v1778 = vadd.f32 %v1689, %v1777
        %v1779 = vpop.f32.mrf.mxu0
        %v1780 = vadd.f32 %v1691, %v1779
        %1781 = vmatmul.bf16.gmra.mxu0 %v939
        %v1782 = vpop.f32.mrf.mxu0
        %v1783 = vadd.f32 %v1694, %v1782
        %v1784 = vpop.f32.mrf.mxu0
        %v1785 = vadd.f32 %v1696, %v1784
        %1786 = vmatmul.bf16.gmra.mxu0 %v941
        %v1787 = vpop.f32.mrf.mxu0
        %v1788 = vadd.f32 %v1699, %v1787
        %v1789 = vpop.f32.mrf.mxu0
        %v1790 = vadd.f32 %v1701, %v1789
        %1791 = vdwg.mxu0
        %1792 = vmatpush.bf16.msra.mxu0 %v1415
        %1793 = vmatpush.bf16.msra.mxu0 %v1407
        %1794 = vmatpush.bf16.msra.mxu0 %v1399
        %1795 = vmatpush.bf16.msra.mxu0 %v1391
        %1796 = vmatpush.bf16.msra.mxu0 %v1383
        %1797 = vmatpush.bf16.msra.mxu0 %v1375
        %1798 = vmatpush.bf16.msra.mxu0 %v1367
        %1799 = vmatpush.bf16.msra.mxu0 %v1359
        %1800 = vmatmul.bf16.gmra.mxu0 %v910
        %v1801 = vpop.f32.mrf.mxu0
        %v1802 = vadd.f32 %v799, %v1801
        %v1803 = vpop.f32.mrf.mxu0
        %v1804 = vadd.f32 %v799, %v1803
        %1805 = vmatmul.bf16.gmra.mxu0 %v912
        %v1806 = vpop.f32.mrf.mxu0
        %v1807 = vadd.f32 %v799, %v1806
        %v1808 = vpop.f32.mrf.mxu0
        %v1809 = vadd.f32 %v799, %v1808
        %1810 = vmatmul.bf16.gmra.mxu0 %v914
        %v1811 = vpop.f32.mrf.mxu0
        %v1812 = vadd.f32 %v799, %v1811
        %v1813 = vpop.f32.mrf.mxu0
        %v1814 = vadd.f32 %v799, %v1813
        %1815 = vmatmul.bf16.gmra.mxu0 %v916
        %v1816 = vpop.f32.mrf.mxu0
        %v1817 = vadd.f32 %v799, %v1816
        %v1818 = vpop.f32.mrf.mxu0
        %v1819 = vadd.f32 %v799, %v1818
        %1820 = vmatmul.bf16.gmra.mxu0 %v918
        %v1821 = vpop.f32.mrf.mxu0
        %v1822 = vadd.f32 %v799, %v1821
        %v1823 = vpop.f32.mrf.mxu0
        %v1824 = vadd.f32 %v799, %v1823
        %1825 = vmatmul.bf16.gmra.mxu0 %v920
        %v1826 = vpop.f32.mrf.mxu0
        %v1827 = vadd.f32 %v799, %v1826
        %v1828 = vpop.f32.mrf.mxu0
        %v1829 = vadd.f32 %v799, %v1828
        %1830 = vmatmul.bf16.gmra.mxu0 %v922
        %v1831 = vpop.f32.mrf.mxu0
        %v1832 = vadd.f32 %v799, %v1831
        %v1833 = vpop.f32.mrf.mxu0
        %v1834 = vadd.f32 %v799, %v1833
        %1835 = vmatmul.bf16.gmra.mxu0 %v924
        %v1836 = vpop.f32.mrf.mxu0
        %v1837 = vadd.f32 %v799, %v1836
        %v1838 = vpop.f32.mrf.mxu0
        %v1839 = vadd.f32 %v799, %v1838
        %1840 = vmatmul.bf16.gmra.mxu0 %v926
        %v1841 = vpop.f32.mrf.mxu0
        %v1842 = vadd.f32 %v799, %v1841
        %v1843 = vpop.f32.mrf.mxu0
        %v1844 = vadd.f32 %v799, %v1843
        %1845 = vmatmul.bf16.gmra.mxu0 %v928
        %v1846 = vpop.f32.mrf.mxu0
        %v1847 = vadd.f32 %v799, %v1846
        %v1848 = vpop.f32.mrf.mxu0
        %v1849 = vadd.f32 %v799, %v1848
        %1850 = vmatmul.bf16.gmra.mxu0 %v930
        %v1851 = vpop.f32.mrf.mxu0
        %v1852 = vadd.f32 %v799, %v1851
        %v1853 = vpop.f32.mrf.mxu0
        %v1854 = vadd.f32 %v799, %v1853
        %1855 = vmatmul.bf16.gmra.mxu0 %v932
        %v1856 = vpop.f32.mrf.mxu0
        %v1857 = vadd.f32 %v799, %v1856
        %v1858 = vpop.f32.mrf.mxu0
        %v1859 = vadd.f32 %v799, %v1858
        %1860 = vmatmul.bf16.gmra.mxu0 %v934
        %v1861 = vpop.f32.mrf.mxu0
        %v1862 = vadd.f32 %v799, %v1861
        %v1863 = vpop.f32.mrf.mxu0
        %v1864 = vadd.f32 %v799, %v1863
        %1865 = vmatmul.bf16.gmra.mxu0 %v936
        %v1866 = vpop.f32.mrf.mxu0
        %v1867 = vadd.f32 %v799, %v1866
        %v1868 = vpop.f32.mrf.mxu0
        %v1869 = vadd.f32 %v799, %v1868
        %1870 = vmatmul.bf16.gmra.mxu0 %v938
        %v1871 = vpop.f32.mrf.mxu0
        %v1872 = vadd.f32 %v799, %v1871
        %v1873 = vpop.f32.mrf.mxu0
        %v1874 = vadd.f32 %v799, %v1873
        %1875 = vmatmul.bf16.gmra.mxu0 %v940
        %v1876 = vpop.f32.mrf.mxu0
        %v1877 = vadd.f32 %v799, %v1876
        %v1878 = vpop.f32.mrf.mxu0
        %v1879 = vadd.f32 %v799, %v1878
        %1880 = vdwg.mxu0
        %1881 = vmatpush.bf16.msra.mxu0 %v1479
        %1882 = vmatpush.bf16.msra.mxu0 %v1471
        %1883 = vmatpush.bf16.msra.mxu0 %v1463
        %1884 = vmatpush.bf16.msra.mxu0 %v1455
        %1885 = vmatpush.bf16.msra.mxu0 %v1447
        %1886 = vmatpush.bf16.msra.mxu0 %v1439
        %1887 = vmatpush.bf16.msra.mxu0 %v1431
        %1888 = vmatpush.bf16.msra.mxu0 %v1423
        %1889 = vmatmul.bf16.gmra.mxu0 %v911
        %v1890 = vpop.f32.mrf.mxu0
        %v1891 = vadd.f32 %v1802, %v1890
        %v1892 = vpop.f32.mrf.mxu0
        %v1893 = vadd.f32 %v1804, %v1892
        %1894 = vmatmul.bf16.gmra.mxu0 %v913
        %v1895 = vpop.f32.mrf.mxu0
        %v1896 = vadd.f32 %v1807, %v1895
        %v1897 = vpop.f32.mrf.mxu0
        %v1898 = vadd.f32 %v1809, %v1897
        %1899 = vmatmul.bf16.gmra.mxu0 %v915
        %v1900 = vpop.f32.mrf.mxu0
        %v1901 = vadd.f32 %v1812, %v1900
        %v1902 = vpop.f32.mrf.mxu0
        %v1903 = vadd.f32 %v1814, %v1902
        %1904 = vmatmul.bf16.gmra.mxu0 %v917
        %v1905 = vpop.f32.mrf.mxu0
        %v1906 = vadd.f32 %v1817, %v1905
        %v1907 = vpop.f32.mrf.mxu0
        %v1908 = vadd.f32 %v1819, %v1907
        %1909 = vmatmul.bf16.gmra.mxu0 %v919
        %v1910 = vpop.f32.mrf.mxu0
        %v1911 = vadd.f32 %v1822, %v1910
        %v1912 = vpop.f32.mrf.mxu0
        %v1913 = vadd.f32 %v1824, %v1912
        %1914 = vmatmul.bf16.gmra.mxu0 %v921
        %v1915 = vpop.f32.mrf.mxu0
        %v1916 = vadd.f32 %v1827, %v1915
        %v1917 = vpop.f32.mrf.mxu0
        %v1918 = vadd.f32 %v1829, %v1917
        %1919 = vmatmul.bf16.gmra.mxu0 %v923
        %v1920 = vpop.f32.mrf.mxu0
        %v1921 = vadd.f32 %v1832, %v1920
        %v1922 = vpop.f32.mrf.mxu0
        %v1923 = vadd.f32 %v1834, %v1922
        %1924 = vmatmul.bf16.gmra.mxu0 %v925
        %v1925 = vpop.f32.mrf.mxu0
        %v1926 = vadd.f32 %v1837, %v1925
        %v1927 = vpop.f32.mrf.mxu0
        %v1928 = vadd.f32 %v1839, %v1927
        %1929 = vmatmul.bf16.gmra.mxu0 %v927
        %v1930 = vpop.f32.mrf.mxu0
        %v1931 = vadd.f32 %v1842, %v1930
        %v1932 = vpop.f32.mrf.mxu0
        %v1933 = vadd.f32 %v1844, %v1932
        %1934 = vmatmul.bf16.gmra.mxu0 %v929
        %v1935 = vpop.f32.mrf.mxu0
        %v1936 = vadd.f32 %v1847, %v1935
        %v1937 = vpop.f32.mrf.mxu0
        %v1938 = vadd.f32 %v1849, %v1937
        %1939 = vmatmul.bf16.gmra.mxu0 %v931
        %v1940 = vpop.f32.mrf.mxu0
        %v1941 = vadd.f32 %v1852, %v1940
        %v1942 = vpop.f32.mrf.mxu0
        %v1943 = vadd.f32 %v1854, %v1942
        %1944 = vmatmul.bf16.gmra.mxu0 %v933
        %v1945 = vpop.f32.mrf.mxu0
        %v1946 = vadd.f32 %v1857, %v1945
        %v1947 = vpop.f32.mrf.mxu0
        %v1948 = vadd.f32 %v1859, %v1947
        %1949 = vmatmul.bf16.gmra.mxu0 %v935
        %v1950 = vpop.f32.mrf.mxu0
        %v1951 = vadd.f32 %v1862, %v1950
        %v1952 = vpop.f32.mrf.mxu0
        %v1953 = vadd.f32 %v1864, %v1952
        %1954 = vmatmul.bf16.gmra.mxu0 %v937
        %v1955 = vpop.f32.mrf.mxu0
        %v1956 = vadd.f32 %v1867, %v1955
        %v1957 = vpop.f32.mrf.mxu0
        %v1958 = vadd.f32 %v1869, %v1957
        %1959 = vmatmul.bf16.gmra.mxu0 %v939
        %v1960 = vpop.f32.mrf.mxu0
        %v1961 = vadd.f32 %v1872, %v1960
        %v1962 = vpop.f32.mrf.mxu0
        %v1963 = vadd.f32 %v1874, %v1962
        %1964 = vmatmul.bf16.gmra.mxu0 %v941
        %v1965 = vpop.f32.mrf.mxu0
        %v1966 = vadd.f32 %v1877, %v1965
        %v1967 = vpop.f32.mrf.mxu0
        %v1968 = vadd.f32 %v1879, %v1967
        %1969 = vdwg.mxu0
        %1970 = vmatpush.bf16.msra.mxu0 %v1416
        %1971 = vmatpush.bf16.msra.mxu0 %v1408
        %1972 = vmatpush.bf16.msra.mxu0 %v1400
        %1973 = vmatpush.bf16.msra.mxu0 %v1392
        %1974 = vmatpush.bf16.msra.mxu0 %v1384
        %1975 = vmatpush.bf16.msra.mxu0 %v1376
        %1976 = vmatpush.bf16.msra.mxu0 %v1368
        %1977 = vmatpush.bf16.msra.mxu0 %v1360
        %1978 = vmatmul.bf16.gmra.mxu0 %v910
        %v1979 = vpop.f32.mrf.mxu0
        %v1980 = vadd.f32 %v800, %v1979
        %v1981 = vpop.f32.mrf.mxu0
        %v1982 = vadd.f32 %v800, %v1981
        %1983 = vmatmul.bf16.gmra.mxu0 %v912
        %v1984 = vpop.f32.mrf.mxu0
        %v1985 = vadd.f32 %v800, %v1984
        %v1986 = vpop.f32.mrf.mxu0
        %v1987 = vadd.f32 %v800, %v1986
        %1988 = vmatmul.bf16.gmra.mxu0 %v914
        %v1989 = vpop.f32.mrf.mxu0
        %v1990 = vadd.f32 %v800, %v1989
        %v1991 = vpop.f32.mrf.mxu0
        %v1992 = vadd.f32 %v800, %v1991
        %1993 = vmatmul.bf16.gmra.mxu0 %v916
        %v1994 = vpop.f32.mrf.mxu0
        %v1995 = vadd.f32 %v800, %v1994
        %v1996 = vpop.f32.mrf.mxu0
        %v1997 = vadd.f32 %v800, %v1996
        %1998 = vmatmul.bf16.gmra.mxu0 %v918
        %v1999 = vpop.f32.mrf.mxu0
        %v2000 = vadd.f32 %v800, %v1999
        %v2001 = vpop.f32.mrf.mxu0
        %v2002 = vadd.f32 %v800, %v2001
        %2003 = vmatmul.bf16.gmra.mxu0 %v920
        %v2004 = vpop.f32.mrf.mxu0
        %v2005 = vadd.f32 %v800, %v2004
        %v2006 = vpop.f32.mrf.mxu0
        %v2007 = vadd.f32 %v800, %v2006
        %2008 = vmatmul.bf16.gmra.mxu0 %v922
        %v2009 = vpop.f32.mrf.mxu0
        %v2010 = vadd.f32 %v800, %v2009
        %v2011 = vpop.f32.mrf.mxu0
        %v2012 = vadd.f32 %v800, %v2011
        %2013 = vmatmul.bf16.gmra.mxu0 %v924
        %v2014 = vpop.f32.mrf.mxu0
        %v2015 = vadd.f32 %v800, %v2014
        %v2016 = vpop.f32.mrf.mxu0
        %v2017 = vadd.f32 %v800, %v2016
        %2018 = vmatmul.bf16.gmra.mxu0 %v926
        %v2019 = vpop.f32.mrf.mxu0
        %v2020 = vadd.f32 %v800, %v2019
        %v2021 = vpop.f32.mrf.mxu0
        %v2022 = vadd.f32 %v800, %v2021
        %2023 = vmatmul.bf16.gmra.mxu0 %v928
        %v2024 = vpop.f32.mrf.mxu0
        %v2025 = vadd.f32 %v800, %v2024
        %v2026 = vpop.f32.mrf.mxu0
        %v2027 = vadd.f32 %v800, %v2026
        %2028 = vmatmul.bf16.gmra.mxu0 %v930
        %v2029 = vpop.f32.mrf.mxu0
        %v2030 = vadd.f32 %v800, %v2029
        %v2031 = vpop.f32.mrf.mxu0
        %v2032 = vadd.f32 %v800, %v2031
        %2033 = vmatmul.bf16.gmra.mxu0 %v932
        %v2034 = vpop.f32.mrf.mxu0
        %v2035 = vadd.f32 %v800, %v2034
        %v2036 = vpop.f32.mrf.mxu0
        %v2037 = vadd.f32 %v800, %v2036
        %2038 = vmatmul.bf16.gmra.mxu0 %v934
        %v2039 = vpop.f32.mrf.mxu0
        %v2040 = vadd.f32 %v800, %v2039
        %v2041 = vpop.f32.mrf.mxu0
        %v2042 = vadd.f32 %v800, %v2041
        %2043 = vmatmul.bf16.gmra.mxu0 %v936
        %v2044 = vpop.f32.mrf.mxu0
        %v2045 = vadd.f32 %v800, %v2044
        %v2046 = vpop.f32.mrf.mxu0
        %v2047 = vadd.f32 %v800, %v2046
        %2048 = vmatmul.bf16.gmra.mxu0 %v938
        %v2049 = vpop.f32.mrf.mxu0
        %v2050 = vadd.f32 %v800, %v2049
        %v2051 = vpop.f32.mrf.mxu0
        %v2052 = vadd.f32 %v800, %v2051
        %2053 = vmatmul.bf16.gmra.mxu0 %v940
        %v2054 = vpop.f32.mrf.mxu0
        %v2055 = vadd.f32 %v800, %v2054
        %v2056 = vpop.f32.mrf.mxu0
        %v2057 = vadd.f32 %v800, %v2056
        %2058 = vdwg.mxu0
        %2059 = vmatpush.bf16.msra.mxu0 %v1480
        %2060 = vmatpush.bf16.msra.mxu0 %v1472
        %2061 = vmatpush.bf16.msra.mxu0 %v1464
        %2062 = vmatpush.bf16.msra.mxu0 %v1456
        %2063 = vmatpush.bf16.msra.mxu0 %v1448
        %2064 = vmatpush.bf16.msra.mxu0 %v1440
        %2065 = vmatpush.bf16.msra.mxu0 %v1432
        %2066 = vmatpush.bf16.msra.mxu0 %v1424
        %2067 = vmatmul.bf16.gmra.mxu0 %v911
        %v2068 = vpop.f32.mrf.mxu0
        %v2069 = vadd.f32 %v1980, %v2068
        %v2070 = vpop.f32.mrf.mxu0
        %v2071 = vadd.f32 %v1982, %v2070
        %2072 = vmatmul.bf16.gmra.mxu0 %v913
        %v2073 = vpop.f32.mrf.mxu0
        %v2074 = vadd.f32 %v1985, %v2073
        %v2075 = vpop.f32.mrf.mxu0
        %v2076 = vadd.f32 %v1987, %v2075
        %2077 = vmatmul.bf16.gmra.mxu0 %v915
        %v2078 = vpop.f32.mrf.mxu0
        %v2079 = vadd.f32 %v1990, %v2078
        %v2080 = vpop.f32.mrf.mxu0
        %v2081 = vadd.f32 %v1992, %v2080
        %2082 = vmatmul.bf16.gmra.mxu0 %v917
        %v2083 = vpop.f32.mrf.mxu0
        %v2084 = vadd.f32 %v1995, %v2083
        %v2085 = vpop.f32.mrf.mxu0
        %v2086 = vadd.f32 %v1997, %v2085
        %2087 = vmatmul.bf16.gmra.mxu0 %v919
        %v2088 = vpop.f32.mrf.mxu0
        %v2089 = vadd.f32 %v2000, %v2088
        %v2090 = vpop.f32.mrf.mxu0
        %v2091 = vadd.f32 %v2002, %v2090
        %2092 = vmatmul.bf16.gmra.mxu0 %v921
        %v2093 = vpop.f32.mrf.mxu0
        %v2094 = vadd.f32 %v2005, %v2093
        %v2095 = vpop.f32.mrf.mxu0
        %v2096 = vadd.f32 %v2007, %v2095
        %2097 = vmatmul.bf16.gmra.mxu0 %v923
        %v2098 = vpop.f32.mrf.mxu0
        %v2099 = vadd.f32 %v2010, %v2098
        %v2100 = vpop.f32.mrf.mxu0
        %v2101 = vadd.f32 %v2012, %v2100
        %2102 = vmatmul.bf16.gmra.mxu0 %v925
        %v2103 = vpop.f32.mrf.mxu0
        %v2104 = vadd.f32 %v2015, %v2103
        %v2105 = vpop.f32.mrf.mxu0
        %v2106 = vadd.f32 %v2017, %v2105
        %2107 = vmatmul.bf16.gmra.mxu0 %v927
        %v2108 = vpop.f32.mrf.mxu0
        %v2109 = vadd.f32 %v2020, %v2108
        %v2110 = vpop.f32.mrf.mxu0
        %v2111 = vadd.f32 %v2022, %v2110
        %2112 = vmatmul.bf16.gmra.mxu0 %v929
        %v2113 = vpop.f32.mrf.mxu0
        %v2114 = vadd.f32 %v2025, %v2113
        %v2115 = vpop.f32.mrf.mxu0
        %v2116 = vadd.f32 %v2027, %v2115
        %2117 = vmatmul.bf16.gmra.mxu0 %v931
        %v2118 = vpop.f32.mrf.mxu0
        %v2119 = vadd.f32 %v2030, %v2118
        %v2120 = vpop.f32.mrf.mxu0
        %v2121 = vadd.f32 %v2032, %v2120
        %2122 = vmatmul.bf16.gmra.mxu0 %v933
        %v2123 = vpop.f32.mrf.mxu0
        %v2124 = vadd.f32 %v2035, %v2123
        %v2125 = vpop.f32.mrf.mxu0
        %v2126 = vadd.f32 %v2037, %v2125
        %2127 = vmatmul.bf16.gmra.mxu0 %v935
        %v2128 = vpop.f32.mrf.mxu0
        %v2129 = vadd.f32 %v2040, %v2128
        %v2130 = vpop.f32.mrf.mxu0
        %v2131 = vadd.f32 %v2042, %v2130
        %2132 = vmatmul.bf16.gmra.mxu0 %v937
        %v2133 = vpop.f32.mrf.mxu0
        %v2134 = vadd.f32 %v2045, %v2133
        %v2135 = vpop.f32.mrf.mxu0
        %v2136 = vadd.f32 %v2047, %v2135
        %2137 = vmatmul.bf16.gmra.mxu0 %v939
        %v2138 = vpop.f32.mrf.mxu0
        %v2139 = vadd.f32 %v2050, %v2138
        %v2140 = vpop.f32.mrf.mxu0
        %v2141 = vadd.f32 %v2052, %v2140
        %2142 = vmatmul.bf16.gmra.mxu0 %v941
        %v2143 = vpop.f32.mrf.mxu0
        %v2144 = vadd.f32 %v2055, %v2143
        %v2145 = vpop.f32.mrf.mxu0
        %v2146 = vadd.f32 %v2057, %v2145
        %2147 = vdwg.mxu0
        %2148 = vmatpush.bf16.msra.mxu0 %v1417
        %2149 = vmatpush.bf16.msra.mxu0 %v1409
        %2150 = vmatpush.bf16.msra.mxu0 %v1401
        %2151 = vmatpush.bf16.msra.mxu0 %v1393
        %2152 = vmatpush.bf16.msra.mxu0 %v1385
        %2153 = vmatpush.bf16.msra.mxu0 %v1377
        %2154 = vmatpush.bf16.msra.mxu0 %v1369
        %2155 = vmatpush.bf16.msra.mxu0 %v1361
        %2156 = vmatmul.bf16.gmra.mxu0 %v910
        %v2157 = vpop.f32.mrf.mxu0
        %v2158 = vadd.f32 %v801, %v2157
        %v2159 = vpop.f32.mrf.mxu0
        %v2160 = vadd.f32 %v801, %v2159
        %2161 = vmatmul.bf16.gmra.mxu0 %v912
        %v2162 = vpop.f32.mrf.mxu0
        %v2163 = vadd.f32 %v801, %v2162
        %v2164 = vpop.f32.mrf.mxu0
        %v2165 = vadd.f32 %v801, %v2164
        %2166 = vmatmul.bf16.gmra.mxu0 %v914
        %v2167 = vpop.f32.mrf.mxu0
        %v2168 = vadd.f32 %v801, %v2167
        %v2169 = vpop.f32.mrf.mxu0
        %v2170 = vadd.f32 %v801, %v2169
        %2171 = vmatmul.bf16.gmra.mxu0 %v916
        %v2172 = vpop.f32.mrf.mxu0
        %v2173 = vadd.f32 %v801, %v2172
        %v2174 = vpop.f32.mrf.mxu0
        %v2175 = vadd.f32 %v801, %v2174
        %2176 = vmatmul.bf16.gmra.mxu0 %v918
        %v2177 = vpop.f32.mrf.mxu0
        %v2178 = vadd.f32 %v801, %v2177
        %v2179 = vpop.f32.mrf.mxu0
        %v2180 = vadd.f32 %v801, %v2179
        %2181 = vmatmul.bf16.gmra.mxu0 %v920
        %v2182 = vpop.f32.mrf.mxu0
        %v2183 = vadd.f32 %v801, %v2182
        %v2184 = vpop.f32.mrf.mxu0
        %v2185 = vadd.f32 %v801, %v2184
        %2186 = vmatmul.bf16.gmra.mxu0 %v922
        %v2187 = vpop.f32.mrf.mxu0
        %v2188 = vadd.f32 %v801, %v2187
        %v2189 = vpop.f32.mrf.mxu0
        %v2190 = vadd.f32 %v801, %v2189
        %2191 = vmatmul.bf16.gmra.mxu0 %v924
        %v2192 = vpop.f32.mrf.mxu0
        %v2193 = vadd.f32 %v801, %v2192
        %v2194 = vpop.f32.mrf.mxu0
        %v2195 = vadd.f32 %v801, %v2194
        %2196 = vmatmul.bf16.gmra.mxu0 %v926
        %v2197 = vpop.f32.mrf.mxu0
        %v2198 = vadd.f32 %v801, %v2197
        %v2199 = vpop.f32.mrf.mxu0
        %v2200 = vadd.f32 %v801, %v2199
        %2201 = vmatmul.bf16.gmra.mxu0 %v928
        %v2202 = vpop.f32.mrf.mxu0
        %v2203 = vadd.f32 %v801, %v2202
        %v2204 = vpop.f32.mrf.mxu0
        %v2205 = vadd.f32 %v801, %v2204
        %2206 = vmatmul.bf16.gmra.mxu0 %v930
        %v2207 = vpop.f32.mrf.mxu0
        %v2208 = vadd.f32 %v801, %v2207
        %v2209 = vpop.f32.mrf.mxu0
        %v2210 = vadd.f32 %v801, %v2209
        %2211 = vmatmul.bf16.gmra.mxu0 %v932
        %v2212 = vpop.f32.mrf.mxu0
        %v2213 = vadd.f32 %v801, %v2212
        %v2214 = vpop.f32.mrf.mxu0
        %v2215 = vadd.f32 %v801, %v2214
        %2216 = vmatmul.bf16.gmra.mxu0 %v934
        %v2217 = vpop.f32.mrf.mxu0
        %v2218 = vadd.f32 %v801, %v2217
        %v2219 = vpop.f32.mrf.mxu0
        %v2220 = vadd.f32 %v801, %v2219
        %2221 = vmatmul.bf16.gmra.mxu0 %v936
        %v2222 = vpop.f32.mrf.mxu0
        %v2223 = vadd.f32 %v801, %v2222
        %v2224 = vpop.f32.mrf.mxu0
        %v2225 = vadd.f32 %v801, %v2224
        %2226 = vmatmul.bf16.gmra.mxu0 %v938
        %v2227 = vpop.f32.mrf.mxu0
        %v2228 = vadd.f32 %v801, %v2227
        %v2229 = vpop.f32.mrf.mxu0
        %v2230 = vadd.f32 %v801, %v2229
        %2231 = vmatmul.bf16.gmra.mxu0 %v940
        %v2232 = vpop.f32.mrf.mxu0
        %v2233 = vadd.f32 %v801, %v2232
        %v2234 = vpop.f32.mrf.mxu0
        %v2235 = vadd.f32 %v801, %v2234
        %2236 = vdwg.mxu0
        %2237 = vmatpush.bf16.msra.mxu0 %v1481
        %2238 = vmatpush.bf16.msra.mxu0 %v1473
        %2239 = vmatpush.bf16.msra.mxu0 %v1465
        %2240 = vmatpush.bf16.msra.mxu0 %v1457
        %2241 = vmatpush.bf16.msra.mxu0 %v1449
        %2242 = vmatpush.bf16.msra.mxu0 %v1441
        %2243 = vmatpush.bf16.msra.mxu0 %v1433
        %2244 = vmatpush.bf16.msra.mxu0 %v1425
        %2245 = vmatmul.bf16.gmra.mxu0 %v911
        %v2246 = vpop.f32.mrf.mxu0
        %v2247 = vadd.f32 %v2158, %v2246
        %v2248 = vpop.f32.mrf.mxu0
        %v2249 = vadd.f32 %v2160, %v2248
        %2250 = vmatmul.bf16.gmra.mxu0 %v913
        %v2251 = vpop.f32.mrf.mxu0
        %v2252 = vadd.f32 %v2163, %v2251
        %v2253 = vpop.f32.mrf.mxu0
        %v2254 = vadd.f32 %v2165, %v2253
        %2255 = vmatmul.bf16.gmra.mxu0 %v915
        %v2256 = vpop.f32.mrf.mxu0
        %v2257 = vadd.f32 %v2168, %v2256
        %v2258 = vpop.f32.mrf.mxu0
        %v2259 = vadd.f32 %v2170, %v2258
        %2260 = vmatmul.bf16.gmra.mxu0 %v917
        %v2261 = vpop.f32.mrf.mxu0
        %v2262 = vadd.f32 %v2173, %v2261
        %v2263 = vpop.f32.mrf.mxu0
        %v2264 = vadd.f32 %v2175, %v2263
        %2265 = vmatmul.bf16.gmra.mxu0 %v919
        %v2266 = vpop.f32.mrf.mxu0
        %v2267 = vadd.f32 %v2178, %v2266
        %v2268 = vpop.f32.mrf.mxu0
        %v2269 = vadd.f32 %v2180, %v2268
        %2270 = vmatmul.bf16.gmra.mxu0 %v921
        %v2271 = vpop.f32.mrf.mxu0
        %v2272 = vadd.f32 %v2183, %v2271
        %v2273 = vpop.f32.mrf.mxu0
        %v2274 = vadd.f32 %v2185, %v2273
        %2275 = vmatmul.bf16.gmra.mxu0 %v923
        %v2276 = vpop.f32.mrf.mxu0
        %v2277 = vadd.f32 %v2188, %v2276
        %v2278 = vpop.f32.mrf.mxu0
        %v2279 = vadd.f32 %v2190, %v2278
        %2280 = vmatmul.bf16.gmra.mxu0 %v925
        %v2281 = vpop.f32.mrf.mxu0
        %v2282 = vadd.f32 %v2193, %v2281
        %v2283 = vpop.f32.mrf.mxu0
        %v2284 = vadd.f32 %v2195, %v2283
        %2285 = vmatmul.bf16.gmra.mxu0 %v927
        %v2286 = vpop.f32.mrf.mxu0
        %v2287 = vadd.f32 %v2198, %v2286
        %v2288 = vpop.f32.mrf.mxu0
        %v2289 = vadd.f32 %v2200, %v2288
        %2290 = vmatmul.bf16.gmra.mxu0 %v929
        %v2291 = vpop.f32.mrf.mxu0
        %v2292 = vadd.f32 %v2203, %v2291
        %v2293 = vpop.f32.mrf.mxu0
        %v2294 = vadd.f32 %v2205, %v2293
        %2295 = vmatmul.bf16.gmra.mxu0 %v931
        %v2296 = vpop.f32.mrf.mxu0
        %v2297 = vadd.f32 %v2208, %v2296
        %v2298 = vpop.f32.mrf.mxu0
        %v2299 = vadd.f32 %v2210, %v2298
        %2300 = vmatmul.bf16.gmra.mxu0 %v933
        %v2301 = vpop.f32.mrf.mxu0
        %v2302 = vadd.f32 %v2213, %v2301
        %v2303 = vpop.f32.mrf.mxu0
        %v2304 = vadd.f32 %v2215, %v2303
        %2305 = vmatmul.bf16.gmra.mxu0 %v935
        %v2306 = vpop.f32.mrf.mxu0
        %v2307 = vadd.f32 %v2218, %v2306
        %v2308 = vpop.f32.mrf.mxu0
        %v2309 = vadd.f32 %v2220, %v2308
        %2310 = vmatmul.bf16.gmra.mxu0 %v937
        %v2311 = vpop.f32.mrf.mxu0
        %v2312 = vadd.f32 %v2223, %v2311
        %v2313 = vpop.f32.mrf.mxu0
        %v2314 = vadd.f32 %v2225, %v2313
        %2315 = vmatmul.bf16.gmra.mxu0 %v939
        %v2316 = vpop.f32.mrf.mxu0
        %v2317 = vadd.f32 %v2228, %v2316
        %v2318 = vpop.f32.mrf.mxu0
        %v2319 = vadd.f32 %v2230, %v2318
        %2320 = vmatmul.bf16.gmra.mxu0 %v941
        %v2321 = vpop.f32.mrf.mxu0
        %v2322 = vadd.f32 %v2233, %v2321
        %v2323 = vpop.f32.mrf.mxu0
        %v2324 = vadd.f32 %v2235, %v2323
        %2325 = vdwg.mxu0
        %2326 = vmatpush.bf16.msra.mxu0 %v1418
        %2327 = vmatpush.bf16.msra.mxu0 %v1410
        %2328 = vmatpush.bf16.msra.mxu0 %v1402
        %2329 = vmatpush.bf16.msra.mxu0 %v1394
        %2330 = vmatpush.bf16.msra.mxu0 %v1386
        %2331 = vmatpush.bf16.msra.mxu0 %v1378
        %2332 = vmatpush.bf16.msra.mxu0 %v1370
        %2333 = vmatpush.bf16.msra.mxu0 %v1362
        %2334 = vmatmul.bf16.gmra.mxu0 %v910
        %v2335 = vpop.f32.mrf.mxu0
        %v2336 = vadd.f32 %v802, %v2335
        %v2337 = vpop.f32.mrf.mxu0
        %v2338 = vadd.f32 %v802, %v2337
        %2339 = vmatmul.bf16.gmra.mxu0 %v912
        %v2340 = vpop.f32.mrf.mxu0
        %v2341 = vadd.f32 %v802, %v2340
        %v2342 = vpop.f32.mrf.mxu0
        %v2343 = vadd.f32 %v802, %v2342
        %2344 = vmatmul.bf16.gmra.mxu0 %v914
        %v2345 = vpop.f32.mrf.mxu0
        %v2346 = vadd.f32 %v802, %v2345
        %v2347 = vpop.f32.mrf.mxu0
        %v2348 = vadd.f32 %v802, %v2347
        %2349 = vmatmul.bf16.gmra.mxu0 %v916
        %v2350 = vpop.f32.mrf.mxu0
        %v2351 = vadd.f32 %v802, %v2350
        %v2352 = vpop.f32.mrf.mxu0
        %v2353 = vadd.f32 %v802, %v2352
        %2354 = vmatmul.bf16.gmra.mxu0 %v918
        %v2355 = vpop.f32.mrf.mxu0
        %v2356 = vadd.f32 %v802, %v2355
        %v2357 = vpop.f32.mrf.mxu0
        %v2358 = vadd.f32 %v802, %v2357
        %2359 = vmatmul.bf16.gmra.mxu0 %v920
        %v2360 = vpop.f32.mrf.mxu0
        %v2361 = vadd.f32 %v802, %v2360
        %v2362 = vpop.f32.mrf.mxu0
        %v2363 = vadd.f32 %v802, %v2362
        %2364 = vmatmul.bf16.gmra.mxu0 %v922
        %v2365 = vpop.f32.mrf.mxu0
        %v2366 = vadd.f32 %v802, %v2365
        %v2367 = vpop.f32.mrf.mxu0
        %v2368 = vadd.f32 %v802, %v2367
        %2369 = vmatmul.bf16.gmra.mxu0 %v924
        %v2370 = vpop.f32.mrf.mxu0
        %v2371 = vadd.f32 %v802, %v2370
        %v2372 = vpop.f32.mrf.mxu0
        %v2373 = vadd.f32 %v802, %v2372
        %2374 = vmatmul.bf16.gmra.mxu0 %v926
        %v2375 = vpop.f32.mrf.mxu0
        %v2376 = vadd.f32 %v802, %v2375
        %v2377 = vpop.f32.mrf.mxu0
        %v2378 = vadd.f32 %v802, %v2377
        %2379 = vmatmul.bf16.gmra.mxu0 %v928
        %v2380 = vpop.f32.mrf.mxu0
        %v2381 = vadd.f32 %v802, %v2380
        %v2382 = vpop.f32.mrf.mxu0
        %v2383 = vadd.f32 %v802, %v2382
        %2384 = vmatmul.bf16.gmra.mxu0 %v930
        %v2385 = vpop.f32.mrf.mxu0
        %v2386 = vadd.f32 %v802, %v2385
        %v2387 = vpop.f32.mrf.mxu0
        %v2388 = vadd.f32 %v802, %v2387
        %2389 = vmatmul.bf16.gmra.mxu0 %v932
        %v2390 = vpop.f32.mrf.mxu0
        %v2391 = vadd.f32 %v802, %v2390
        %v2392 = vpop.f32.mrf.mxu0
        %v2393 = vadd.f32 %v802, %v2392
        %2394 = vmatmul.bf16.gmra.mxu0 %v934
        %v2395 = vpop.f32.mrf.mxu0
        %v2396 = vadd.f32 %v802, %v2395
        %v2397 = vpop.f32.mrf.mxu0
        %v2398 = vadd.f32 %v802, %v2397
        %2399 = vmatmul.bf16.gmra.mxu0 %v936
        %v2400 = vpop.f32.mrf.mxu0
        %v2401 = vadd.f32 %v802, %v2400
        %v2402 = vpop.f32.mrf.mxu0
        %v2403 = vadd.f32 %v802, %v2402
        %2404 = vmatmul.bf16.gmra.mxu0 %v938
        %v2405 = vpop.f32.mrf.mxu0
        %v2406 = vadd.f32 %v802, %v2405
        %v2407 = vpop.f32.mrf.mxu0
        %v2408 = vadd.f32 %v802, %v2407
        %2409 = vmatmul.bf16.gmra.mxu0 %v940
        %v2410 = vpop.f32.mrf.mxu0
        %v2411 = vadd.f32 %v802, %v2410
        %v2412 = vpop.f32.mrf.mxu0
        %v2413 = vadd.f32 %v802, %v2412
        %2414 = vdwg.mxu0
        %2415 = vmatpush.bf16.msra.mxu0 %v1482
        %2416 = vmatpush.bf16.msra.mxu0 %v1474
        %2417 = vmatpush.bf16.msra.mxu0 %v1466
        %2418 = vmatpush.bf16.msra.mxu0 %v1458
        %2419 = vmatpush.bf16.msra.mxu0 %v1450
        %2420 = vmatpush.bf16.msra.mxu0 %v1442
        %2421 = vmatpush.bf16.msra.mxu0 %v1434
        %2422 = vmatpush.bf16.msra.mxu0 %v1426
        %2423 = vmatmul.bf16.gmra.mxu0 %v911
        %v2424 = vpop.f32.mrf.mxu0
        %v2425 = vadd.f32 %v2336, %v2424
        %v2426 = vpop.f32.mrf.mxu0
        %v2427 = vadd.f32 %v2338, %v2426
        %2428 = vmatmul.bf16.gmra.mxu0 %v913
        %v2429 = vpop.f32.mrf.mxu0
        %v2430 = vadd.f32 %v2341, %v2429
        %v2431 = vpop.f32.mrf.mxu0
        %v2432 = vadd.f32 %v2343, %v2431
        %2433 = vmatmul.bf16.gmra.mxu0 %v915
        %v2434 = vpop.f32.mrf.mxu0
        %v2435 = vadd.f32 %v2346, %v2434
        %v2436 = vpop.f32.mrf.mxu0
        %v2437 = vadd.f32 %v2348, %v2436
        %2438 = vmatmul.bf16.gmra.mxu0 %v917
        %v2439 = vpop.f32.mrf.mxu0
        %v2440 = vadd.f32 %v2351, %v2439
        %v2441 = vpop.f32.mrf.mxu0
        %v2442 = vadd.f32 %v2353, %v2441
        %2443 = vmatmul.bf16.gmra.mxu0 %v919
        %v2444 = vpop.f32.mrf.mxu0
        %v2445 = vadd.f32 %v2356, %v2444
        %v2446 = vpop.f32.mrf.mxu0
        %v2447 = vadd.f32 %v2358, %v2446
        %2448 = vmatmul.bf16.gmra.mxu0 %v921
        %v2449 = vpop.f32.mrf.mxu0
        %v2450 = vadd.f32 %v2361, %v2449
        %v2451 = vpop.f32.mrf.mxu0
        %v2452 = vadd.f32 %v2363, %v2451
        %2453 = vmatmul.bf16.gmra.mxu0 %v923
        %v2454 = vpop.f32.mrf.mxu0
        %v2455 = vadd.f32 %v2366, %v2454
        %v2456 = vpop.f32.mrf.mxu0
        %v2457 = vadd.f32 %v2368, %v2456
        %2458 = vmatmul.bf16.gmra.mxu0 %v925
        %v2459 = vpop.f32.mrf.mxu0
        %v2460 = vadd.f32 %v2371, %v2459
        %v2461 = vpop.f32.mrf.mxu0
        %v2462 = vadd.f32 %v2373, %v2461
        %2463 = vmatmul.bf16.gmra.mxu0 %v927
        %v2464 = vpop.f32.mrf.mxu0
        %v2465 = vadd.f32 %v2376, %v2464
        %v2466 = vpop.f32.mrf.mxu0
        %v2467 = vadd.f32 %v2378, %v2466
        %2468 = vmatmul.bf16.gmra.mxu0 %v929
        %v2469 = vpop.f32.mrf.mxu0
        %v2470 = vadd.f32 %v2381, %v2469
        %v2471 = vpop.f32.mrf.mxu0
        %v2472 = vadd.f32 %v2383, %v2471
        %2473 = vmatmul.bf16.gmra.mxu0 %v931
        %v2474 = vpop.f32.mrf.mxu0
        %v2475 = vadd.f32 %v2386, %v2474
        %v2476 = vpop.f32.mrf.mxu0
        %v2477 = vadd.f32 %v2388, %v2476
        %2478 = vmatmul.bf16.gmra.mxu0 %v933
        %v2479 = vpop.f32.mrf.mxu0
        %v2480 = vadd.f32 %v2391, %v2479
        %v2481 = vpop.f32.mrf.mxu0
        %v2482 = vadd.f32 %v2393, %v2481
        %2483 = vmatmul.bf16.gmra.mxu0 %v935
        %v2484 = vpop.f32.mrf.mxu0
        %v2485 = vadd.f32 %v2396, %v2484
        %v2486 = vpop.f32.mrf.mxu0
        %v2487 = vadd.f32 %v2398, %v2486
        %2488 = vmatmul.bf16.gmra.mxu0 %v937
        %v2489 = vpop.f32.mrf.mxu0
        %v2490 = vadd.f32 %v2401, %v2489
        %v2491 = vpop.f32.mrf.mxu0
        %v2492 = vadd.f32 %v2403, %v2491
        %2493 = vmatmul.bf16.gmra.mxu0 %v939
        %v2494 = vpop.f32.mrf.mxu0
        %v2495 = vadd.f32 %v2406, %v2494
        %v2496 = vpop.f32.mrf.mxu0
        %v2497 = vadd.f32 %v2408, %v2496
        %2498 = vmatmul.bf16.gmra.mxu0 %v941
        %v2499 = vpop.f32.mrf.mxu0
        %v2500 = vadd.f32 %v2411, %v2499
        %v2501 = vpop.f32.mrf.mxu0
        %v2502 = vadd.f32 %v2413, %v2501
        %2503 = vdwg.mxu0
        %2504 = vmatpush.bf16.msra.mxu0 %v1419
        %2505 = vmatpush.bf16.msra.mxu0 %v1411
        %2506 = vmatpush.bf16.msra.mxu0 %v1403
        %2507 = vmatpush.bf16.msra.mxu0 %v1395
        %2508 = vmatpush.bf16.msra.mxu0 %v1387
        %2509 = vmatpush.bf16.msra.mxu0 %v1379
        %2510 = vmatpush.bf16.msra.mxu0 %v1371
        %2511 = vmatpush.bf16.msra.mxu0 %v1363
        %2512 = vmatmul.bf16.gmra.mxu0 %v910
        %v2513 = vpop.f32.mrf.mxu0
        %v2514 = vadd.f32 %v803, %v2513
        %v2515 = vpop.f32.mrf.mxu0
        %v2516 = vadd.f32 %v803, %v2515
        %2517 = vmatmul.bf16.gmra.mxu0 %v912
        %v2518 = vpop.f32.mrf.mxu0
        %v2519 = vadd.f32 %v803, %v2518
        %v2520 = vpop.f32.mrf.mxu0
        %v2521 = vadd.f32 %v803, %v2520
        %2522 = vmatmul.bf16.gmra.mxu0 %v914
        %v2523 = vpop.f32.mrf.mxu0
        %v2524 = vadd.f32 %v803, %v2523
        %v2525 = vpop.f32.mrf.mxu0
        %v2526 = vadd.f32 %v803, %v2525
        %2527 = vmatmul.bf16.gmra.mxu0 %v916
        %v2528 = vpop.f32.mrf.mxu0
        %v2529 = vadd.f32 %v803, %v2528
        %v2530 = vpop.f32.mrf.mxu0
        %v2531 = vadd.f32 %v803, %v2530
        %2532 = vmatmul.bf16.gmra.mxu0 %v918
        %v2533 = vpop.f32.mrf.mxu0
        %v2534 = vadd.f32 %v803, %v2533
        %v2535 = vpop.f32.mrf.mxu0
        %v2536 = vadd.f32 %v803, %v2535
        %2537 = vmatmul.bf16.gmra.mxu0 %v920
        %v2538 = vpop.f32.mrf.mxu0
        %v2539 = vadd.f32 %v803, %v2538
        %v2540 = vpop.f32.mrf.mxu0
        %v2541 = vadd.f32 %v803, %v2540
        %2542 = vmatmul.bf16.gmra.mxu0 %v922
        %v2543 = vpop.f32.mrf.mxu0
        %v2544 = vadd.f32 %v803, %v2543
        %v2545 = vpop.f32.mrf.mxu0
        %v2546 = vadd.f32 %v803, %v2545
        %2547 = vmatmul.bf16.gmra.mxu0 %v924
        %v2548 = vpop.f32.mrf.mxu0
        %v2549 = vadd.f32 %v803, %v2548
        %v2550 = vpop.f32.mrf.mxu0
        %v2551 = vadd.f32 %v803, %v2550
        %2552 = vmatmul.bf16.gmra.mxu0 %v926
        %v2553 = vpop.f32.mrf.mxu0
        %v2554 = vadd.f32 %v803, %v2553
        %v2555 = vpop.f32.mrf.mxu0
        %v2556 = vadd.f32 %v803, %v2555
        %2557 = vmatmul.bf16.gmra.mxu0 %v928
        %v2558 = vpop.f32.mrf.mxu0
        %v2559 = vadd.f32 %v803, %v2558
        %v2560 = vpop.f32.mrf.mxu0
        %v2561 = vadd.f32 %v803, %v2560
        %2562 = vmatmul.bf16.gmra.mxu0 %v930
        %v2563 = vpop.f32.mrf.mxu0
        %v2564 = vadd.f32 %v803, %v2563
        %v2565 = vpop.f32.mrf.mxu0
        %v2566 = vadd.f32 %v803, %v2565
        %2567 = vmatmul.bf16.gmra.mxu0 %v932
        %v2568 = vpop.f32.mrf.mxu0
        %v2569 = vadd.f32 %v803, %v2568
        %v2570 = vpop.f32.mrf.mxu0
        %v2571 = vadd.f32 %v803, %v2570
        %2572 = vmatmul.bf16.gmra.mxu0 %v934
        %v2573 = vpop.f32.mrf.mxu0
        %v2574 = vadd.f32 %v803, %v2573
        %v2575 = vpop.f32.mrf.mxu0
        %v2576 = vadd.f32 %v803, %v2575
        %2577 = vmatmul.bf16.gmra.mxu0 %v936
        %v2578 = vpop.f32.mrf.mxu0
        %v2579 = vadd.f32 %v803, %v2578
        %v2580 = vpop.f32.mrf.mxu0
        %v2581 = vadd.f32 %v803, %v2580
        %2582 = vmatmul.bf16.gmra.mxu0 %v938
        %v2583 = vpop.f32.mrf.mxu0
        %v2584 = vadd.f32 %v803, %v2583
        %v2585 = vpop.f32.mrf.mxu0
        %v2586 = vadd.f32 %v803, %v2585
        %2587 = vmatmul.bf16.gmra.mxu0 %v940
        %v2588 = vpop.f32.mrf.mxu0
        %v2589 = vadd.f32 %v803, %v2588
        %v2590 = vpop.f32.mrf.mxu0
        %v2591 = vadd.f32 %v803, %v2590
        %2592 = vdwg.mxu0
        %2593 = vmatpush.bf16.msra.mxu0 %v1483
        %2594 = vmatpush.bf16.msra.mxu0 %v1475
        %2595 = vmatpush.bf16.msra.mxu0 %v1467
        %2596 = vmatpush.bf16.msra.mxu0 %v1459
        %2597 = vmatpush.bf16.msra.mxu0 %v1451
        %2598 = vmatpush.bf16.msra.mxu0 %v1443
        %2599 = vmatpush.bf16.msra.mxu0 %v1435
        %2600 = vmatpush.bf16.msra.mxu0 %v1427
        %2601 = vmatmul.bf16.gmra.mxu0 %v911
        %v2602 = vpop.f32.mrf.mxu0
        %v2603 = vadd.f32 %v2514, %v2602
        %v2604 = vpop.f32.mrf.mxu0
        %v2605 = vadd.f32 %v2516, %v2604
        %2606 = vmatmul.bf16.gmra.mxu0 %v913
        %v2607 = vpop.f32.mrf.mxu0
        %v2608 = vadd.f32 %v2519, %v2607
        %v2609 = vpop.f32.mrf.mxu0
        %v2610 = vadd.f32 %v2521, %v2609
        %2611 = vmatmul.bf16.gmra.mxu0 %v915
        %v2612 = vpop.f32.mrf.mxu0
        %v2613 = vadd.f32 %v2524, %v2612
        %v2614 = vpop.f32.mrf.mxu0
        %v2615 = vadd.f32 %v2526, %v2614
        %2616 = vmatmul.bf16.gmra.mxu0 %v917
        %v2617 = vpop.f32.mrf.mxu0
        %v2618 = vadd.f32 %v2529, %v2617
        %v2619 = vpop.f32.mrf.mxu0
        %v2620 = vadd.f32 %v2531, %v2619
        %2621 = vmatmul.bf16.gmra.mxu0 %v919
        %v2622 = vpop.f32.mrf.mxu0
        %v2623 = vadd.f32 %v2534, %v2622
        %v2624 = vpop.f32.mrf.mxu0
        %v2625 = vadd.f32 %v2536, %v2624
        %2626 = vmatmul.bf16.gmra.mxu0 %v921
        %v2627 = vpop.f32.mrf.mxu0
        %v2628 = vadd.f32 %v2539, %v2627
        %v2629 = vpop.f32.mrf.mxu0
        %v2630 = vadd.f32 %v2541, %v2629
        %2631 = vmatmul.bf16.gmra.mxu0 %v923
        %v2632 = vpop.f32.mrf.mxu0
        %v2633 = vadd.f32 %v2544, %v2632
        %v2634 = vpop.f32.mrf.mxu0
        %v2635 = vadd.f32 %v2546, %v2634
        %2636 = vmatmul.bf16.gmra.mxu0 %v925
        %v2637 = vpop.f32.mrf.mxu0
        %v2638 = vadd.f32 %v2549, %v2637
        %v2639 = vpop.f32.mrf.mxu0
        %v2640 = vadd.f32 %v2551, %v2639
        %2641 = vmatmul.bf16.gmra.mxu0 %v927
        %v2642 = vpop.f32.mrf.mxu0
        %v2643 = vadd.f32 %v2554, %v2642
        %v2644 = vpop.f32.mrf.mxu0
        %v2645 = vadd.f32 %v2556, %v2644
        %2646 = vmatmul.bf16.gmra.mxu0 %v929
        %v2647 = vpop.f32.mrf.mxu0
        %v2648 = vadd.f32 %v2559, %v2647
        %v2649 = vpop.f32.mrf.mxu0
        %v2650 = vadd.f32 %v2561, %v2649
        %2651 = vmatmul.bf16.gmra.mxu0 %v931
        %v2652 = vpop.f32.mrf.mxu0
        %v2653 = vadd.f32 %v2564, %v2652
        %v2654 = vpop.f32.mrf.mxu0
        %v2655 = vadd.f32 %v2566, %v2654
        %2656 = vmatmul.bf16.gmra.mxu0 %v933
        %v2657 = vpop.f32.mrf.mxu0
        %v2658 = vadd.f32 %v2569, %v2657
        %v2659 = vpop.f32.mrf.mxu0
        %v2660 = vadd.f32 %v2571, %v2659
        %2661 = vmatmul.bf16.gmra.mxu0 %v935
        %v2662 = vpop.f32.mrf.mxu0
        %v2663 = vadd.f32 %v2574, %v2662
        %v2664 = vpop.f32.mrf.mxu0
        %v2665 = vadd.f32 %v2576, %v2664
        %2666 = vmatmul.bf16.gmra.mxu0 %v937
        %v2667 = vpop.f32.mrf.mxu0
        %v2668 = vadd.f32 %v2579, %v2667
        %v2669 = vpop.f32.mrf.mxu0
        %v2670 = vadd.f32 %v2581, %v2669
        %2671 = vmatmul.bf16.gmra.mxu0 %v939
        %v2672 = vpop.f32.mrf.mxu0
        %v2673 = vadd.f32 %v2584, %v2672
        %v2674 = vpop.f32.mrf.mxu0
        %v2675 = vadd.f32 %v2586, %v2674
        %2676 = vmatmul.bf16.gmra.mxu0 %v941
        %v2677 = vpop.f32.mrf.mxu0
        %v2678 = vadd.f32 %v2589, %v2677
        %v2679 = vpop.f32.mrf.mxu0
        %v2680 = vadd.f32 %v2591, %v2679
        %2681 = vdwg.mxu0
        %2682 = vmatpush.bf16.msra.mxu0 %v1420
        %2683 = vmatpush.bf16.msra.mxu0 %v1412
        %2684 = vmatpush.bf16.msra.mxu0 %v1404
        %2685 = vmatpush.bf16.msra.mxu0 %v1396
        %2686 = vmatpush.bf16.msra.mxu0 %v1388
        %2687 = vmatpush.bf16.msra.mxu0 %v1380
        %2688 = vmatpush.bf16.msra.mxu0 %v1372
        %2689 = vmatpush.bf16.msra.mxu0 %v1364
        %2690 = vmatmul.bf16.gmra.mxu0 %v910
        %v2691 = vpop.f32.mrf.mxu0
        %v2692 = vadd.f32 %v804, %v2691
        %v2693 = vpop.f32.mrf.mxu0
        %v2694 = vadd.f32 %v804, %v2693
        %2695 = vmatmul.bf16.gmra.mxu0 %v912
        %v2696 = vpop.f32.mrf.mxu0
        %v2697 = vadd.f32 %v804, %v2696
        %v2698 = vpop.f32.mrf.mxu0
        %v2699 = vadd.f32 %v804, %v2698
        %2700 = vmatmul.bf16.gmra.mxu0 %v914
        %v2701 = vpop.f32.mrf.mxu0
        %v2702 = vadd.f32 %v804, %v2701
        %v2703 = vpop.f32.mrf.mxu0
        %v2704 = vadd.f32 %v804, %v2703
        %2705 = vmatmul.bf16.gmra.mxu0 %v916
        %v2706 = vpop.f32.mrf.mxu0
        %v2707 = vadd.f32 %v804, %v2706
        %v2708 = vpop.f32.mrf.mxu0
        %v2709 = vadd.f32 %v804, %v2708
        %2710 = vmatmul.bf16.gmra.mxu0 %v918
        %v2711 = vpop.f32.mrf.mxu0
        %v2712 = vadd.f32 %v804, %v2711
        %v2713 = vpop.f32.mrf.mxu0
        %v2714 = vadd.f32 %v804, %v2713
        %2715 = vmatmul.bf16.gmra.mxu0 %v920
        %v2716 = vpop.f32.mrf.mxu0
        %v2717 = vadd.f32 %v804, %v2716
        %v2718 = vpop.f32.mrf.mxu0
        %v2719 = vadd.f32 %v804, %v2718
        %2720 = vmatmul.bf16.gmra.mxu0 %v922
        %v2721 = vpop.f32.mrf.mxu0
        %v2722 = vadd.f32 %v804, %v2721
        %v2723 = vpop.f32.mrf.mxu0
        %v2724 = vadd.f32 %v804, %v2723
        %2725 = vmatmul.bf16.gmra.mxu0 %v924
        %v2726 = vpop.f32.mrf.mxu0
        %v2727 = vadd.f32 %v804, %v2726
        %v2728 = vpop.f32.mrf.mxu0
        %v2729 = vadd.f32 %v804, %v2728
        %2730 = vmatmul.bf16.gmra.mxu0 %v926
        %v2731 = vpop.f32.mrf.mxu0
        %v2732 = vadd.f32 %v804, %v2731
        %v2733 = vpop.f32.mrf.mxu0
        %v2734 = vadd.f32 %v804, %v2733
        %2735 = vmatmul.bf16.gmra.mxu0 %v928
        %v2736 = vpop.f32.mrf.mxu0
        %v2737 = vadd.f32 %v804, %v2736
        %v2738 = vpop.f32.mrf.mxu0
        %v2739 = vadd.f32 %v804, %v2738
        %2740 = vmatmul.bf16.gmra.mxu0 %v930
        %v2741 = vpop.f32.mrf.mxu0
        %v2742 = vadd.f32 %v804, %v2741
        %v2743 = vpop.f32.mrf.mxu0
        %v2744 = vadd.f32 %v804, %v2743
        %2745 = vmatmul.bf16.gmra.mxu0 %v932
        %v2746 = vpop.f32.mrf.mxu0
        %v2747 = vadd.f32 %v804, %v2746
        %v2748 = vpop.f32.mrf.mxu0
        %v2749 = vadd.f32 %v804, %v2748
        %2750 = vmatmul.bf16.gmra.mxu0 %v934
        %v2751 = vpop.f32.mrf.mxu0
        %v2752 = vadd.f32 %v804, %v2751
        %v2753 = vpop.f32.mrf.mxu0
        %v2754 = vadd.f32 %v804, %v2753
        %2755 = vmatmul.bf16.gmra.mxu0 %v936
        %v2756 = vpop.f32.mrf.mxu0
        %v2757 = vadd.f32 %v804, %v2756
        %v2758 = vpop.f32.mrf.mxu0
        %v2759 = vadd.f32 %v804, %v2758
        %2760 = vmatmul.bf16.gmra.mxu0 %v938
        %v2761 = vpop.f32.mrf.mxu0
        %v2762 = vadd.f32 %v804, %v2761
        %v2763 = vpop.f32.mrf.mxu0
        %v2764 = vadd.f32 %v804, %v2763
        %2765 = vmatmul.bf16.gmra.mxu0 %v940
        %v2766 = vpop.f32.mrf.mxu0
        %v2767 = vadd.f32 %v804, %v2766
        %v2768 = vpop.f32.mrf.mxu0
        %v2769 = vadd.f32 %v804, %v2768
        %2770 = vdwg.mxu0
        %2771 = vmatpush.bf16.msra.mxu0 %v1484
        %2772 = vmatpush.bf16.msra.mxu0 %v1476
        %2773 = vmatpush.bf16.msra.mxu0 %v1468
        %2774 = vmatpush.bf16.msra.mxu0 %v1460
        %2775 = vmatpush.bf16.msra.mxu0 %v1452
        %2776 = vmatpush.bf16.msra.mxu0 %v1444
        %2777 = vmatpush.bf16.msra.mxu0 %v1436
        %2778 = vmatpush.bf16.msra.mxu0 %v1428
        %2779 = vmatmul.bf16.gmra.mxu0 %v911
        %v2780 = vpop.f32.mrf.mxu0
        %v2781 = vadd.f32 %v2692, %v2780
        %v2782 = vpop.f32.mrf.mxu0
        %v2783 = vadd.f32 %v2694, %v2782
        %2784 = vmatmul.bf16.gmra.mxu0 %v913
        %v2785 = vpop.f32.mrf.mxu0
        %v2786 = vadd.f32 %v2697, %v2785
        %v2787 = vpop.f32.mrf.mxu0
        %v2788 = vadd.f32 %v2699, %v2787
        %2789 = vmatmul.bf16.gmra.mxu0 %v915
        %v2790 = vpop.f32.mrf.mxu0
        %v2791 = vadd.f32 %v2702, %v2790
        %v2792 = vpop.f32.mrf.mxu0
        %v2793 = vadd.f32 %v2704, %v2792
        %2794 = vmatmul.bf16.gmra.mxu0 %v917
        %v2795 = vpop.f32.mrf.mxu0
        %v2796 = vadd.f32 %v2707, %v2795
        %v2797 = vpop.f32.mrf.mxu0
        %v2798 = vadd.f32 %v2709, %v2797
        %2799 = vmatmul.bf16.gmra.mxu0 %v919
        %v2800 = vpop.f32.mrf.mxu0
        %v2801 = vadd.f32 %v2712, %v2800
        %v2802 = vpop.f32.mrf.mxu0
        %v2803 = vadd.f32 %v2714, %v2802
        %2804 = vmatmul.bf16.gmra.mxu0 %v921
        %v2805 = vpop.f32.mrf.mxu0
        %v2806 = vadd.f32 %v2717, %v2805
        %v2807 = vpop.f32.mrf.mxu0
        %v2808 = vadd.f32 %v2719, %v2807
        %2809 = vmatmul.bf16.gmra.mxu0 %v923
        %v2810 = vpop.f32.mrf.mxu0
        %v2811 = vadd.f32 %v2722, %v2810
        %v2812 = vpop.f32.mrf.mxu0
        %v2813 = vadd.f32 %v2724, %v2812
        %2814 = vmatmul.bf16.gmra.mxu0 %v925
        %v2815 = vpop.f32.mrf.mxu0
        %v2816 = vadd.f32 %v2727, %v2815
        %v2817 = vpop.f32.mrf.mxu0
        %v2818 = vadd.f32 %v2729, %v2817
        %2819 = vmatmul.bf16.gmra.mxu0 %v927
        %v2820 = vpop.f32.mrf.mxu0
        %v2821 = vadd.f32 %v2732, %v2820
        %v2822 = vpop.f32.mrf.mxu0
        %v2823 = vadd.f32 %v2734, %v2822
        %2824 = vmatmul.bf16.gmra.mxu0 %v929
        %v2825 = vpop.f32.mrf.mxu0
        %v2826 = vadd.f32 %v2737, %v2825
        %v2827 = vpop.f32.mrf.mxu0
        %v2828 = vadd.f32 %v2739, %v2827
        %2829 = vmatmul.bf16.gmra.mxu0 %v931
        %v2830 = vpop.f32.mrf.mxu0
        %v2831 = vadd.f32 %v2742, %v2830
        %v2832 = vpop.f32.mrf.mxu0
        %v2833 = vadd.f32 %v2744, %v2832
        %2834 = vmatmul.bf16.gmra.mxu0 %v933
        %v2835 = vpop.f32.mrf.mxu0
        %v2836 = vadd.f32 %v2747, %v2835
        %v2837 = vpop.f32.mrf.mxu0
        %v2838 = vadd.f32 %v2749, %v2837
        %2839 = vmatmul.bf16.gmra.mxu0 %v935
        %v2840 = vpop.f32.mrf.mxu0
        %v2841 = vadd.f32 %v2752, %v2840
        %v2842 = vpop.f32.mrf.mxu0
        %v2843 = vadd.f32 %v2754, %v2842
        %2844 = vmatmul.bf16.gmra.mxu0 %v937
        %v2845 = vpop.f32.mrf.mxu0
        %v2846 = vadd.f32 %v2757, %v2845
        %v2847 = vpop.f32.mrf.mxu0
        %v2848 = vadd.f32 %v2759, %v2847
        %2849 = vmatmul.bf16.gmra.mxu0 %v939
        %v2850 = vpop.f32.mrf.mxu0
        %v2851 = vadd.f32 %v2762, %v2850
        %v2852 = vpop.f32.mrf.mxu0
        %v2853 = vadd.f32 %v2764, %v2852
        %2854 = vmatmul.bf16.gmra.mxu0 %v941
        %v2855 = vpop.f32.mrf.mxu0
        %v2856 = vadd.f32 %v2767, %v2855
        %v2857 = vpop.f32.mrf.mxu0
        %v2858 = vadd.f32 %v2769, %v2857
        %2859 = vdwg.mxu0
        %2860 = vmatpush.bf16.msra.mxu0 %v1421
        %2861 = vmatpush.bf16.msra.mxu0 %v1413
        %2862 = vmatpush.bf16.msra.mxu0 %v1405
        %2863 = vmatpush.bf16.msra.mxu0 %v1397
        %2864 = vmatpush.bf16.msra.mxu0 %v1389
        %2865 = vmatpush.bf16.msra.mxu0 %v1381
        %2866 = vmatpush.bf16.msra.mxu0 %v1373
        %2867 = vmatpush.bf16.msra.mxu0 %v1365
        %2868 = vmatmul.bf16.gmra.mxu0 %v910
        %v2869 = vpop.f32.mrf.mxu0
        %v2870 = vadd.f32 %v805, %v2869
        %v2871 = vpop.f32.mrf.mxu0
        %v2872 = vadd.f32 %v805, %v2871
        %2873 = vmatmul.bf16.gmra.mxu0 %v912
        %v2874 = vpop.f32.mrf.mxu0
        %v2875 = vadd.f32 %v805, %v2874
        %v2876 = vpop.f32.mrf.mxu0
        %v2877 = vadd.f32 %v805, %v2876
        %2878 = vmatmul.bf16.gmra.mxu0 %v914
        %v2879 = vpop.f32.mrf.mxu0
        %v2880 = vadd.f32 %v805, %v2879
        %v2881 = vpop.f32.mrf.mxu0
        %v2882 = vadd.f32 %v805, %v2881
        %2883 = vmatmul.bf16.gmra.mxu0 %v916
        %v2884 = vpop.f32.mrf.mxu0
        %v2885 = vadd.f32 %v805, %v2884
        %v2886 = vpop.f32.mrf.mxu0
        %v2887 = vadd.f32 %v805, %v2886
        %2888 = vmatmul.bf16.gmra.mxu0 %v918
        %v2889 = vpop.f32.mrf.mxu0
        %v2890 = vadd.f32 %v805, %v2889
        %v2891 = vpop.f32.mrf.mxu0
        %v2892 = vadd.f32 %v805, %v2891
        %2893 = vmatmul.bf16.gmra.mxu0 %v920
        %v2894 = vpop.f32.mrf.mxu0
        %v2895 = vadd.f32 %v805, %v2894
        %v2896 = vpop.f32.mrf.mxu0
        %v2897 = vadd.f32 %v805, %v2896
        %2898 = vmatmul.bf16.gmra.mxu0 %v922
        %v2899 = vpop.f32.mrf.mxu0
        %v2900 = vadd.f32 %v805, %v2899
        %v2901 = vpop.f32.mrf.mxu0
        %v2902 = vadd.f32 %v805, %v2901
        %2903 = vmatmul.bf16.gmra.mxu0 %v924
        %v2904 = vpop.f32.mrf.mxu0
        %v2905 = vadd.f32 %v805, %v2904
        %v2906 = vpop.f32.mrf.mxu0
        %v2907 = vadd.f32 %v805, %v2906
        %2908 = vmatmul.bf16.gmra.mxu0 %v926
        %v2909 = vpop.f32.mrf.mxu0
        %v2910 = vadd.f32 %v805, %v2909
        %v2911 = vpop.f32.mrf.mxu0
        %v2912 = vadd.f32 %v805, %v2911
        %2913 = vmatmul.bf16.gmra.mxu0 %v928
        %v2914 = vpop.f32.mrf.mxu0
        %v2915 = vadd.f32 %v805, %v2914
        %v2916 = vpop.f32.mrf.mxu0
        %v2917 = vadd.f32 %v805, %v2916
        %2918 = vmatmul.bf16.gmra.mxu0 %v930
        %v2919 = vpop.f32.mrf.mxu0
        %v2920 = vadd.f32 %v805, %v2919
        %v2921 = vpop.f32.mrf.mxu0
        %v2922 = vadd.f32 %v805, %v2921
        %2923 = vmatmul.bf16.gmra.mxu0 %v932
        %v2924 = vpop.f32.mrf.mxu0
        %v2925 = vadd.f32 %v805, %v2924
        %v2926 = vpop.f32.mrf.mxu0
        %v2927 = vadd.f32 %v805, %v2926
        %2928 = vmatmul.bf16.gmra.mxu0 %v934
        %v2929 = vpop.f32.mrf.mxu0
        %v2930 = vadd.f32 %v805, %v2929
        %v2931 = vpop.f32.mrf.mxu0
        %v2932 = vadd.f32 %v805, %v2931
        %2933 = vmatmul.bf16.gmra.mxu0 %v936
        %v2934 = vpop.f32.mrf.mxu0
        %v2935 = vadd.f32 %v805, %v2934
        %v2936 = vpop.f32.mrf.mxu0
        %v2937 = vadd.f32 %v805, %v2936
        %2938 = vmatmul.bf16.gmra.mxu0 %v938
        %v2939 = vpop.f32.mrf.mxu0
        %v2940 = vadd.f32 %v805, %v2939
        %v2941 = vpop.f32.mrf.mxu0
        %v2942 = vadd.f32 %v805, %v2941
        %2943 = vmatmul.bf16.gmra.mxu0 %v940
        %v2944 = vpop.f32.mrf.mxu0
        %v2945 = vadd.f32 %v805, %v2944
        %v2946 = vpop.f32.mrf.mxu0
        %v2947 = vadd.f32 %v805, %v2946
        %2948 = vdwg.mxu0
        %2949 = vmatpush.bf16.msra.mxu0 %v1485
        %2950 = vmatpush.bf16.msra.mxu0 %v1477
        %2951 = vmatpush.bf16.msra.mxu0 %v1469
        %2952 = vmatpush.bf16.msra.mxu0 %v1461
        %2953 = vmatpush.bf16.msra.mxu0 %v1453
        %2954 = vmatpush.bf16.msra.mxu0 %v1445
        %2955 = vmatpush.bf16.msra.mxu0 %v1437
        %2956 = vmatpush.bf16.msra.mxu0 %v1429
        %2957 = vmatmul.bf16.gmra.mxu0 %v911
        %v2958 = vpop.f32.mrf.mxu0
        %v2959 = vadd.f32 %v2870, %v2958
        %v2960 = vpop.f32.mrf.mxu0
        %v2961 = vadd.f32 %v2872, %v2960
        %2962 = vmatmul.bf16.gmra.mxu0 %v913
        %v2963 = vpop.f32.mrf.mxu0
        %v2964 = vadd.f32 %v2875, %v2963
        %v2965 = vpop.f32.mrf.mxu0
        %v2966 = vadd.f32 %v2877, %v2965
        %2967 = vmatmul.bf16.gmra.mxu0 %v915
        %v2968 = vpop.f32.mrf.mxu0
        %v2969 = vadd.f32 %v2880, %v2968
        %v2970 = vpop.f32.mrf.mxu0
        %v2971 = vadd.f32 %v2882, %v2970
        %2972 = vmatmul.bf16.gmra.mxu0 %v917
        %v2973 = vpop.f32.mrf.mxu0
        %v2974 = vadd.f32 %v2885, %v2973
        %v2975 = vpop.f32.mrf.mxu0
        %v2976 = vadd.f32 %v2887, %v2975
        %2977 = vmatmul.bf16.gmra.mxu0 %v919
        %v2978 = vpop.f32.mrf.mxu0
        %v2979 = vadd.f32 %v2890, %v2978
        %v2980 = vpop.f32.mrf.mxu0
        %v2981 = vadd.f32 %v2892, %v2980
        %2982 = vmatmul.bf16.gmra.mxu0 %v921
        %v2983 = vpop.f32.mrf.mxu0
        %v2984 = vadd.f32 %v2895, %v2983
        %v2985 = vpop.f32.mrf.mxu0
        %v2986 = vadd.f32 %v2897, %v2985
        %2987 = vmatmul.bf16.gmra.mxu0 %v923
        %v2988 = vpop.f32.mrf.mxu0
        %v2989 = vadd.f32 %v2900, %v2988
        %v2990 = vpop.f32.mrf.mxu0
        %v2991 = vadd.f32 %v2902, %v2990
        %2992 = vmatmul.bf16.gmra.mxu0 %v925
        %v2993 = vpop.f32.mrf.mxu0
        %v2994 = vadd.f32 %v2905, %v2993
        %v2995 = vpop.f32.mrf.mxu0
        %v2996 = vadd.f32 %v2907, %v2995
        %2997 = vmatmul.bf16.gmra.mxu0 %v927
        %v2998 = vpop.f32.mrf.mxu0
        %v2999 = vadd.f32 %v2910, %v2998
        %v3000 = vpop.f32.mrf.mxu0
        %v3001 = vadd.f32 %v2912, %v3000
        %3002 = vmatmul.bf16.gmra.mxu0 %v929
        %v3003 = vpop.f32.mrf.mxu0
        %v3004 = vadd.f32 %v2915, %v3003
        %v3005 = vpop.f32.mrf.mxu0
        %v3006 = vadd.f32 %v2917, %v3005
        %3007 = vmatmul.bf16.gmra.mxu0 %v931
        %v3008 = vpop.f32.mrf.mxu0
        %v3009 = vadd.f32 %v2920, %v3008
        %v3010 = vpop.f32.mrf.mxu0
        %v3011 = vadd.f32 %v2922, %v3010
        %3012 = vmatmul.bf16.gmra.mxu0 %v933
        %v3013 = vpop.f32.mrf.mxu0
        %v3014 = vadd.f32 %v2925, %v3013
        %v3015 = vpop.f32.mrf.mxu0
        %v3016 = vadd.f32 %v2927, %v3015
        %3017 = vmatmul.bf16.gmra.mxu0 %v935
        %v3018 = vpop.f32.mrf.mxu0
        %v3019 = vadd.f32 %v2930, %v3018
        %v3020 = vpop.f32.mrf.mxu0
        %v3021 = vadd.f32 %v2932, %v3020
        %3022 = vmatmul.bf16.gmra.mxu0 %v937
        %v3023 = vpop.f32.mrf.mxu0
        %v3024 = vadd.f32 %v2935, %v3023
        %v3025 = vpop.f32.mrf.mxu0
        %v3026 = vadd.f32 %v2937, %v3025
        %3027 = vmatmul.bf16.gmra.mxu0 %v939
        %v3028 = vpop.f32.mrf.mxu0
        %v3029 = vadd.f32 %v2940, %v3028
        %v3030 = vpop.f32.mrf.mxu0
        %v3031 = vadd.f32 %v2942, %v3030
        %3032 = vmatmul.bf16.gmra.mxu0 %v941
        %v3033 = vpop.f32.mrf.mxu0
        %v3034 = vadd.f32 %v2945, %v3033
        %v3035 = vpop.f32.mrf.mxu0
        %v3036 = vadd.f32 %v2947, %v3035
        %3037 = vdwg.mxu0
        %v3038 = vmax.f32 %v1713, 0.0
        %v3039 = vmax.f32 %v1891, 0.0
        %v3040 = vmax.f32 %v2069, 0.0
        %v3041 = vmax.f32 %v2247, 0.0
        %v3042 = vmax.f32 %v2425, 0.0
        %v3043 = vmax.f32 %v2603, 0.0
        %v3044 = vmax.f32 %v2781, 0.0
        %v3045 = vmax.f32 %v2959, 0.0
        %v3046 = vmax.f32 %v1715, 0.0
        %v3047 = vmax.f32 %v1893, 0.0
        %v3048 = vmax.f32 %v2071, 0.0
        %v3049 = vmax.f32 %v2249, 0.0
        %v3050 = vmax.f32 %v2427, 0.0
        %v3051 = vmax.f32 %v2605, 0.0
        %v3052 = vmax.f32 %v2783, 0.0
        %v3053 = vmax.f32 %v2961, 0.0
        %v3054 = vmax.f32 %v1718, 0.0
        %v3055 = vmax.f32 %v1896, 0.0
        %v3056 = vmax.f32 %v2074, 0.0
        %v3057 = vmax.f32 %v2252, 0.0
        %v3058 = vmax.f32 %v2430, 0.0
        %v3059 = vmax.f32 %v2608, 0.0
        %v3060 = vmax.f32 %v2786, 0.0
        %v3061 = vmax.f32 %v2964, 0.0
        %v3062 = vmax.f32 %v1720, 0.0
        %v3063 = vmax.f32 %v1898, 0.0
        %v3064 = vmax.f32 %v2076, 0.0
        %v3065 = vmax.f32 %v2254, 0.0
        %v3066 = vmax.f32 %v2432, 0.0
        %v3067 = vmax.f32 %v2610, 0.0
        %v3068 = vmax.f32 %v2788, 0.0
        %v3069 = vmax.f32 %v2966, 0.0
        %v3070 = vmax.f32 %v1723, 0.0
        %v3071 = vmax.f32 %v1901, 0.0
        %v3072 = vmax.f32 %v2079, 0.0
        %v3073 = vmax.f32 %v2257, 0.0
        %v3074 = vmax.f32 %v2435, 0.0
        %v3075 = vmax.f32 %v2613, 0.0
        %v3076 = vmax.f32 %v2791, 0.0
        %v3077 = vmax.f32 %v2969, 0.0
        %v3078 = vmax.f32 %v1725, 0.0
        %v3079 = vmax.f32 %v1903, 0.0
        %v3080 = vmax.f32 %v2081, 0.0
        %v3081 = vmax.f32 %v2259, 0.0
        %v3082 = vmax.f32 %v2437, 0.0
        %v3083 = vmax.f32 %v2615, 0.0
        %v3084 = vmax.f32 %v2793, 0.0
        %v3085 = vmax.f32 %v2971, 0.0
        %v3086 = vmax.f32 %v1728, 0.0
        %v3087 = vmax.f32 %v1906, 0.0
        %v3088 = vmax.f32 %v2084, 0.0
        %v3089 = vmax.f32 %v2262, 0.0
        %v3090 = vmax.f32 %v2440, 0.0
        %v3091 = vmax.f32 %v2618, 0.0
        %v3092 = vmax.f32 %v2796, 0.0
        %v3093 = vmax.f32 %v2974, 0.0
        %v3094 = vmax.f32 %v1730, 0.0
        %v3095 = vmax.f32 %v1908, 0.0
        %v3096 = vmax.f32 %v2086, 0.0
        %v3097 = vmax.f32 %v2264, 0.0
        %v3098 = vmax.f32 %v2442, 0.0
        %v3099 = vmax.f32 %v2620, 0.0
        %v3100 = vmax.f32 %v2798, 0.0
        %v3101 = vmax.f32 %v2976, 0.0
        %v3102 = vmax.f32 %v1733, 0.0
        %v3103 = vmax.f32 %v1911, 0.0
        %v3104 = vmax.f32 %v2089, 0.0
        %v3105 = vmax.f32 %v2267, 0.0
        %v3106 = vmax.f32 %v2445, 0.0
        %v3107 = vmax.f32 %v2623, 0.0
        %v3108 = vmax.f32 %v2801, 0.0
        %v3109 = vmax.f32 %v2979, 0.0
        %v3110 = vmax.f32 %v1735, 0.0
        %v3111 = vmax.f32 %v1913, 0.0
        %v3112 = vmax.f32 %v2091, 0.0
        %v3113 = vmax.f32 %v2269, 0.0
        %v3114 = vmax.f32 %v2447, 0.0
        %v3115 = vmax.f32 %v2625, 0.0
        %v3116 = vmax.f32 %v2803, 0.0
        %v3117 = vmax.f32 %v2981, 0.0
        %v3118 = vmax.f32 %v1738, 0.0
        %v3119 = vmax.f32 %v1916, 0.0
        %v3120 = vmax.f32 %v2094, 0.0
        %v3121 = vmax.f32 %v2272, 0.0
        %v3122 = vmax.f32 %v2450, 0.0
        %v3123 = vmax.f32 %v2628, 0.0
        %v3124 = vmax.f32 %v2806, 0.0
        %v3125 = vmax.f32 %v2984, 0.0
        %v3126 = vmax.f32 %v1740, 0.0
        %v3127 = vmax.f32 %v1918, 0.0
        %v3128 = vmax.f32 %v2096, 0.0
        %v3129 = vmax.f32 %v2274, 0.0
        %v3130 = vmax.f32 %v2452, 0.0
        %v3131 = vmax.f32 %v2630, 0.0
        %v3132 = vmax.f32 %v2808, 0.0
        %v3133 = vmax.f32 %v2986, 0.0
        %v3134 = vmax.f32 %v1743, 0.0
        %v3135 = vmax.f32 %v1921, 0.0
        %v3136 = vmax.f32 %v2099, 0.0
        %v3137 = vmax.f32 %v2277, 0.0
        %v3138 = vmax.f32 %v2455, 0.0
        %v3139 = vmax.f32 %v2633, 0.0
        %v3140 = vmax.f32 %v2811, 0.0
        %v3141 = vmax.f32 %v2989, 0.0
        %v3142 = vmax.f32 %v1745, 0.0
        %v3143 = vmax.f32 %v1923, 0.0
        %v3144 = vmax.f32 %v2101, 0.0
        %v3145 = vmax.f32 %v2279, 0.0
        %v3146 = vmax.f32 %v2457, 0.0
        %v3147 = vmax.f32 %v2635, 0.0
        %v3148 = vmax.f32 %v2813, 0.0
        %v3149 = vmax.f32 %v2991, 0.0
        %v3150 = vmax.f32 %v1748, 0.0
        %v3151 = vmax.f32 %v1926, 0.0
        %v3152 = vmax.f32 %v2104, 0.0
        %v3153 = vmax.f32 %v2282, 0.0
        %v3154 = vmax.f32 %v2460, 0.0
        %v3155 = vmax.f32 %v2638, 0.0
        %v3156 = vmax.f32 %v2816, 0.0
        %v3157 = vmax.f32 %v2994, 0.0
        %v3158 = vmax.f32 %v1750, 0.0
        %v3159 = vmax.f32 %v1928, 0.0
        %v3160 = vmax.f32 %v2106, 0.0
        %v3161 = vmax.f32 %v2284, 0.0
        %v3162 = vmax.f32 %v2462, 0.0
        %v3163 = vmax.f32 %v2640, 0.0
        %v3164 = vmax.f32 %v2818, 0.0
        %v3165 = vmax.f32 %v2996, 0.0
        %v3166 = vmax.f32 %v1753, 0.0
        %v3167 = vmax.f32 %v1931, 0.0
        %v3168 = vmax.f32 %v2109, 0.0
        %v3169 = vmax.f32 %v2287, 0.0
        %v3170 = vmax.f32 %v2465, 0.0
        %v3171 = vmax.f32 %v2643, 0.0
        %v3172 = vmax.f32 %v2821, 0.0
        %v3173 = vmax.f32 %v2999, 0.0
        %v3174 = vmax.f32 %v1755, 0.0
        %v3175 = vmax.f32 %v1933, 0.0
        %v3176 = vmax.f32 %v2111, 0.0
        %v3177 = vmax.f32 %v2289, 0.0
        %v3178 = vmax.f32 %v2467, 0.0
        %v3179 = vmax.f32 %v2645, 0.0
        %v3180 = vmax.f32 %v2823, 0.0
        %v3181 = vmax.f32 %v3001, 0.0
        %v3182 = vmax.f32 %v1758, 0.0
        %v3183 = vmax.f32 %v1936, 0.0
        %v3184 = vmax.f32 %v2114, 0.0
        %v3185 = vmax.f32 %v2292, 0.0
        %v3186 = vmax.f32 %v2470, 0.0
        %v3187 = vmax.f32 %v2648, 0.0
        %v3188 = vmax.f32 %v2826, 0.0
        %v3189 = vmax.f32 %v3004, 0.0
        %v3190 = vmax.f32 %v1760, 0.0
        %v3191 = vmax.f32 %v1938, 0.0
        %v3192 = vmax.f32 %v2116, 0.0
        %v3193 = vmax.f32 %v2294, 0.0
        %v3194 = vmax.f32 %v2472, 0.0
        %v3195 = vmax.f32 %v2650, 0.0
        %v3196 = vmax.f32 %v2828, 0.0
        %v3197 = vmax.f32 %v3006, 0.0
        %v3198 = vmax.f32 %v1763, 0.0
        %v3199 = vmax.f32 %v1941, 0.0
        %v3200 = vmax.f32 %v2119, 0.0
        %v3201 = vmax.f32 %v2297, 0.0
        %v3202 = vmax.f32 %v2475, 0.0
        %v3203 = vmax.f32 %v2653, 0.0
        %v3204 = vmax.f32 %v2831, 0.0
        %v3205 = vmax.f32 %v3009, 0.0
        %v3206 = vmax.f32 %v1765, 0.0
        %v3207 = vmax.f32 %v1943, 0.0
        %v3208 = vmax.f32 %v2121, 0.0
        %v3209 = vmax.f32 %v2299, 0.0
        %v3210 = vmax.f32 %v2477, 0.0
        %v3211 = vmax.f32 %v2655, 0.0
        %v3212 = vmax.f32 %v2833, 0.0
        %v3213 = vmax.f32 %v3011, 0.0
        %v3214 = vmax.f32 %v1768, 0.0
        %v3215 = vmax.f32 %v1946, 0.0
        %v3216 = vmax.f32 %v2124, 0.0
        %v3217 = vmax.f32 %v2302, 0.0
        %v3218 = vmax.f32 %v2480, 0.0
        %v3219 = vmax.f32 %v2658, 0.0
        %v3220 = vmax.f32 %v2836, 0.0
        %v3221 = vmax.f32 %v3014, 0.0
        %v3222 = vmax.f32 %v1770, 0.0
        %v3223 = vmax.f32 %v1948, 0.0
        %v3224 = vmax.f32 %v2126, 0.0
        %v3225 = vmax.f32 %v2304, 0.0
        %v3226 = vmax.f32 %v2482, 0.0
        %v3227 = vmax.f32 %v2660, 0.0
        %v3228 = vmax.f32 %v2838, 0.0
        %v3229 = vmax.f32 %v3016, 0.0
        %v3230 = vmax.f32 %v1773, 0.0
        %v3231 = vmax.f32 %v1951, 0.0
        %v3232 = vmax.f32 %v2129, 0.0
        %v3233 = vmax.f32 %v2307, 0.0
        %v3234 = vmax.f32 %v2485, 0.0
        %v3235 = vmax.f32 %v2663, 0.0
        %v3236 = vmax.f32 %v2841, 0.0
        %v3237 = vmax.f32 %v3019, 0.0
        %v3238 = vmax.f32 %v1775, 0.0
        %v3239 = vmax.f32 %v1953, 0.0
        %v3240 = vmax.f32 %v2131, 0.0
        %v3241 = vmax.f32 %v2309, 0.0
        %v3242 = vmax.f32 %v2487, 0.0
        %v3243 = vmax.f32 %v2665, 0.0
        %v3244 = vmax.f32 %v2843, 0.0
        %v3245 = vmax.f32 %v3021, 0.0
        %v3246 = vmax.f32 %v1778, 0.0
        %v3247 = vmax.f32 %v1956, 0.0
        %v3248 = vmax.f32 %v2134, 0.0
        %v3249 = vmax.f32 %v2312, 0.0
        %v3250 = vmax.f32 %v2490, 0.0
        %v3251 = vmax.f32 %v2668, 0.0
        %v3252 = vmax.f32 %v2846, 0.0
        %v3253 = vmax.f32 %v3024, 0.0
        %v3254 = vmax.f32 %v1780, 0.0
        %v3255 = vmax.f32 %v1958, 0.0
        %v3256 = vmax.f32 %v2136, 0.0
        %v3257 = vmax.f32 %v2314, 0.0
        %v3258 = vmax.f32 %v2492, 0.0
        %v3259 = vmax.f32 %v2670, 0.0
        %v3260 = vmax.f32 %v2848, 0.0
        %v3261 = vmax.f32 %v3026, 0.0
        %v3262 = vmax.f32 %v1783, 0.0
        %v3263 = vmax.f32 %v1961, 0.0
        %v3264 = vmax.f32 %v2139, 0.0
        %v3265 = vmax.f32 %v2317, 0.0
        %v3266 = vmax.f32 %v2495, 0.0
        %v3267 = vmax.f32 %v2673, 0.0
        %v3268 = vmax.f32 %v2851, 0.0
        %v3269 = vmax.f32 %v3029, 0.0
        %v3270 = vmax.f32 %v1785, 0.0
        %v3271 = vmax.f32 %v1963, 0.0
        %v3272 = vmax.f32 %v2141, 0.0
        %v3273 = vmax.f32 %v2319, 0.0
        %v3274 = vmax.f32 %v2497, 0.0
        %v3275 = vmax.f32 %v2675, 0.0
        %v3276 = vmax.f32 %v2853, 0.0
        %v3277 = vmax.f32 %v3031, 0.0
        %v3278 = vmax.f32 %v1788, 0.0
        %v3279 = vmax.f32 %v1966, 0.0
        %v3280 = vmax.f32 %v2144, 0.0
        %v3281 = vmax.f32 %v2322, 0.0
        %v3282 = vmax.f32 %v2500, 0.0
        %v3283 = vmax.f32 %v2678, 0.0
        %v3284 = vmax.f32 %v2856, 0.0
        %v3285 = vmax.f32 %v3034, 0.0
        %v3286 = vmax.f32 %v1790, 0.0
        %v3287 = vmax.f32 %v1968, 0.0
        %v3288 = vmax.f32 %v2146, 0.0
        %v3289 = vmax.f32 %v2324, 0.0
        %v3290 = vmax.f32 %v2502, 0.0
        %v3291 = vmax.f32 %v2680, 0.0
        %v3292 = vmax.f32 %v2858, 0.0
        %v3293 = vmax.f32 %v3036, 0.0
        %v3294 = vadd.f32 %v3038, %v3046
        %v3295 = vadd.f32 %v3294, %v3054
        %v3296 = vadd.f32 %v3295, %v3062
        %v3297 = vadd.f32 %v3296, %v3070
        %v3298 = vadd.f32 %v3297, %v3078
        %v3299 = vadd.f32 %v3298, %v3086
        %v3300 = vadd.f32 %v3299, %v3094
        %v3301 = vadd.f32 %v3300, %v3102
        %v3302 = vadd.f32 %v3301, %v3110
        %v3303 = vadd.f32 %v3302, %v3118
        %v3304 = vadd.f32 %v3303, %v3126
        %v3305 = vadd.f32 %v3304, %v3134
        %v3306 = vadd.f32 %v3305, %v3142
        %v3307 = vadd.f32 %v3306, %v3150
        %v3308 = vadd.f32 %v3307, %v3158
        %v3309 = vadd.f32 %v3308, %v3166
        %v3310 = vadd.f32 %v3309, %v3174
        %v3311 = vadd.f32 %v3310, %v3182
        %v3312 = vadd.f32 %v3311, %v3190
        %v3313 = vadd.f32 %v3312, %v3198
        %v3314 = vadd.f32 %v3313, %v3206
        %v3315 = vadd.f32 %v3314, %v3214
        %v3316 = vadd.f32 %v3315, %v3222
        %v3317 = vadd.f32 %v3316, %v3230
        %v3318 = vadd.f32 %v3317, %v3238
        %v3319 = vadd.f32 %v3318, %v3246
        %v3320 = vadd.f32 %v3319, %v3254
        %v3321 = vadd.f32 %v3320, %v3262
        %v3322 = vadd.f32 %v3321, %v3270
        %v3323 = vadd.f32 %v3322, %v3278
        %v3324 = vadd.f32 %v3323, %v3286
        %v3325 = vrot.slane %v3324, 4
        %v3326 = vadd.f32 %v3324, %v3325
        %v3327 = vrot.slane %v3326, 2
        %v3328 = vadd.f32 %v3326, %v3327
        %v3329 = vrot.slane %v3328, 1
        %v3330 = vadd.f32 %v3328, %v3329
        %v3331 = vadd.f32 %v3039, %v3047
        %v3332 = vadd.f32 %v3331, %v3055
        %v3333 = vadd.f32 %v3332, %v3063
        %v3334 = vadd.f32 %v3333, %v3071
        %v3335 = vadd.f32 %v3334, %v3079
        %v3336 = vadd.f32 %v3335, %v3087
        %v3337 = vadd.f32 %v3336, %v3095
        %v3338 = vadd.f32 %v3337, %v3103
        %v3339 = vadd.f32 %v3338, %v3111
        %v3340 = vadd.f32 %v3339, %v3119
        %v3341 = vadd.f32 %v3340, %v3127
        %v3342 = vadd.f32 %v3341, %v3135
        %v3343 = vadd.f32 %v3342, %v3143
        %v3344 = vadd.f32 %v3343, %v3151
        %v3345 = vadd.f32 %v3344, %v3159
        %v3346 = vadd.f32 %v3345, %v3167
        %v3347 = vadd.f32 %v3346, %v3175
        %v3348 = vadd.f32 %v3347, %v3183
        %v3349 = vadd.f32 %v3348, %v3191
        %v3350 = vadd.f32 %v3349, %v3199
        %v3351 = vadd.f32 %v3350, %v3207
        %v3352 = vadd.f32 %v3351, %v3215
        %v3353 = vadd.f32 %v3352, %v3223
        %v3354 = vadd.f32 %v3353, %v3231
        %v3355 = vadd.f32 %v3354, %v3239
        %v3356 = vadd.f32 %v3355, %v3247
        %v3357 = vadd.f32 %v3356, %v3255
        %v3358 = vadd.f32 %v3357, %v3263
        %v3359 = vadd.f32 %v3358, %v3271
        %v3360 = vadd.f32 %v3359, %v3279
        %v3361 = vadd.f32 %v3360, %v3287
        %v3362 = vrot.slane %v3361, 4
        %v3363 = vadd.f32 %v3361, %v3362
        %v3364 = vrot.slane %v3363, 2
        %v3365 = vadd.f32 %v3363, %v3364
        %v3366 = vrot.slane %v3365, 1
        %v3367 = vadd.f32 %v3365, %v3366
        %v3368 = vadd.f32 %v3040, %v3048
        %v3369 = vadd.f32 %v3368, %v3056
        %v3370 = vadd.f32 %v3369, %v3064
        %v3371 = vadd.f32 %v3370, %v3072
        %v3372 = vadd.f32 %v3371, %v3080
        %v3373 = vadd.f32 %v3372, %v3088
        %v3374 = vadd.f32 %v3373, %v3096
        %v3375 = vadd.f32 %v3374, %v3104
        %v3376 = vadd.f32 %v3375, %v3112
        %v3377 = vadd.f32 %v3376, %v3120
        %v3378 = vadd.f32 %v3377, %v3128
        %v3379 = vadd.f32 %v3378, %v3136
        %v3380 = vadd.f32 %v3379, %v3144
        %v3381 = vadd.f32 %v3380, %v3152
        %v3382 = vadd.f32 %v3381, %v3160
        %v3383 = vadd.f32 %v3382, %v3168
        %v3384 = vadd.f32 %v3383, %v3176
        %v3385 = vadd.f32 %v3384, %v3184
        %v3386 = vadd.f32 %v3385, %v3192
        %v3387 = vadd.f32 %v3386, %v3200
        %v3388 = vadd.f32 %v3387, %v3208
        %v3389 = vadd.f32 %v3388, %v3216
        %v3390 = vadd.f32 %v3389, %v3224
        %v3391 = vadd.f32 %v3390, %v3232
        %v3392 = vadd.f32 %v3391, %v3240
        %v3393 = vadd.f32 %v3392, %v3248
        %v3394 = vadd.f32 %v3393, %v3256
        %v3395 = vadd.f32 %v3394, %v3264
        %v3396 = vadd.f32 %v3395, %v3272
        %v3397 = vadd.f32 %v3396, %v3280
        %v3398 = vadd.f32 %v3397, %v3288
        %v3399 = vrot.slane %v3398, 4
        %v3400 = vadd.f32 %v3398, %v3399
        %v3401 = vrot.slane %v3400, 2
        %v3402 = vadd.f32 %v3400, %v3401
        %v3403 = vrot.slane %v3402, 1
        %v3404 = vadd.f32 %v3402, %v3403
        %v3405 = vadd.f32 %v3041, %v3049
        %v3406 = vadd.f32 %v3405, %v3057
        %v3407 = vadd.f32 %v3406, %v3065
        %v3408 = vadd.f32 %v3407, %v3073
        %v3409 = vadd.f32 %v3408, %v3081
        %v3410 = vadd.f32 %v3409, %v3089
        %v3411 = vadd.f32 %v3410, %v3097
        %v3412 = vadd.f32 %v3411, %v3105
        %v3413 = vadd.f32 %v3412, %v3113
        %v3414 = vadd.f32 %v3413, %v3121
        %v3415 = vadd.f32 %v3414, %v3129
        %v3416 = vadd.f32 %v3415, %v3137
        %v3417 = vadd.f32 %v3416, %v3145
        %v3418 = vadd.f32 %v3417, %v3153
        %v3419 = vadd.f32 %v3418, %v3161
        %v3420 = vadd.f32 %v3419, %v3169
        %v3421 = vadd.f32 %v3420, %v3177
        %v3422 = vadd.f32 %v3421, %v3185
        %v3423 = vadd.f32 %v3422, %v3193
        %v3424 = vadd.f32 %v3423, %v3201
        %v3425 = vadd.f32 %v3424, %v3209
        %v3426 = vadd.f32 %v3425, %v3217
        %v3427 = vadd.f32 %v3426, %v3225
        %v3428 = vadd.f32 %v3427, %v3233
        %v3429 = vadd.f32 %v3428, %v3241
        %v3430 = vadd.f32 %v3429, %v3249
        %v3431 = vadd.f32 %v3430, %v3257
        %v3432 = vadd.f32 %v3431, %v3265
        %v3433 = vadd.f32 %v3432, %v3273
        %v3434 = vadd.f32 %v3433, %v3281
        %v3435 = vadd.f32 %v3434, %v3289
        %v3436 = vrot.slane %v3435, 4
        %v3437 = vadd.f32 %v3435, %v3436
        %v3438 = vrot.slane %v3437, 2
        %v3439 = vadd.f32 %v3437, %v3438
        %v3440 = vrot.slane %v3439, 1
        %v3441 = vadd.f32 %v3439, %v3440
        %v3442 = vadd.f32 %v3042, %v3050
        %v3443 = vadd.f32 %v3442, %v3058
        %v3444 = vadd.f32 %v3443, %v3066
        %v3445 = vadd.f32 %v3444, %v3074
        %v3446 = vadd.f32 %v3445, %v3082
        %v3447 = vadd.f32 %v3446, %v3090
        %v3448 = vadd.f32 %v3447, %v3098
        %v3449 = vadd.f32 %v3448, %v3106
        %v3450 = vadd.f32 %v3449, %v3114
        %v3451 = vadd.f32 %v3450, %v3122
        %v3452 = vadd.f32 %v3451, %v3130
        %v3453 = vadd.f32 %v3452, %v3138
        %v3454 = vadd.f32 %v3453, %v3146
        %v3455 = vadd.f32 %v3454, %v3154
        %v3456 = vadd.f32 %v3455, %v3162
        %v3457 = vadd.f32 %v3456, %v3170
        %v3458 = vadd.f32 %v3457, %v3178
        %v3459 = vadd.f32 %v3458, %v3186
        %v3460 = vadd.f32 %v3459, %v3194
        %v3461 = vadd.f32 %v3460, %v3202
        %v3462 = vadd.f32 %v3461, %v3210
        %v3463 = vadd.f32 %v3462, %v3218
        %v3464 = vadd.f32 %v3463, %v3226
        %v3465 = vadd.f32 %v3464, %v3234
        %v3466 = vadd.f32 %v3465, %v3242
        %v3467 = vadd.f32 %v3466, %v3250
        %v3468 = vadd.f32 %v3467, %v3258
        %v3469 = vadd.f32 %v3468, %v3266
        %v3470 = vadd.f32 %v3469, %v3274
        %v3471 = vadd.f32 %v3470, %v3282
        %v3472 = vadd.f32 %v3471, %v3290
        %v3473 = vrot.slane %v3472, 4
        %v3474 = vadd.f32 %v3472, %v3473
        %v3475 = vrot.slane %v3474, 2
        %v3476 = vadd.f32 %v3474, %v3475
        %v3477 = vrot.slane %v3476, 1
        %v3478 = vadd.f32 %v3476, %v3477
        %v3479 = vadd.f32 %v3043, %v3051
        %v3480 = vadd.f32 %v3479, %v3059
        %v3481 = vadd.f32 %v3480, %v3067
        %v3482 = vadd.f32 %v3481, %v3075
        %v3483 = vadd.f32 %v3482, %v3083
        %v3484 = vadd.f32 %v3483, %v3091
        %v3485 = vadd.f32 %v3484, %v3099
        %v3486 = vadd.f32 %v3485, %v3107
        %v3487 = vadd.f32 %v3486, %v3115
        %v3488 = vadd.f32 %v3487, %v3123
        %v3489 = vadd.f32 %v3488, %v3131
        %v3490 = vadd.f32 %v3489, %v3139
        %v3491 = vadd.f32 %v3490, %v3147
        %v3492 = vadd.f32 %v3491, %v3155
        %v3493 = vadd.f32 %v3492, %v3163
        %v3494 = vadd.f32 %v3493, %v3171
        %v3495 = vadd.f32 %v3494, %v3179
        %v3496 = vadd.f32 %v3495, %v3187
        %v3497 = vadd.f32 %v3496, %v3195
        %v3498 = vadd.f32 %v3497, %v3203
        %v3499 = vadd.f32 %v3498, %v3211
        %v3500 = vadd.f32 %v3499, %v3219
        %v3501 = vadd.f32 %v3500, %v3227
        %v3502 = vadd.f32 %v3501, %v3235
        %v3503 = vadd.f32 %v3502, %v3243
        %v3504 = vadd.f32 %v3503, %v3251
        %v3505 = vadd.f32 %v3504, %v3259
        %v3506 = vadd.f32 %v3505, %v3267
        %v3507 = vadd.f32 %v3506, %v3275
        %v3508 = vadd.f32 %v3507, %v3283
        %v3509 = vadd.f32 %v3508, %v3291
        %v3510 = vrot.slane %v3509, 4
        %v3511 = vadd.f32 %v3509, %v3510
        %v3512 = vrot.slane %v3511, 2
        %v3513 = vadd.f32 %v3511, %v3512
        %v3514 = vrot.slane %v3513, 1
        %v3515 = vadd.f32 %v3513, %v3514
        %v3516 = vadd.f32 %v3044, %v3052
        %v3517 = vadd.f32 %v3516, %v3060
        %v3518 = vadd.f32 %v3517, %v3068
        %v3519 = vadd.f32 %v3518, %v3076
        %v3520 = vadd.f32 %v3519, %v3084
        %v3521 = vadd.f32 %v3520, %v3092
        %v3522 = vadd.f32 %v3521, %v3100
        %v3523 = vadd.f32 %v3522, %v3108
        %v3524 = vadd.f32 %v3523, %v3116
        %v3525 = vadd.f32 %v3524, %v3124
        %v3526 = vadd.f32 %v3525, %v3132
        %v3527 = vadd.f32 %v3526, %v3140
        %v3528 = vadd.f32 %v3527, %v3148
        %v3529 = vadd.f32 %v3528, %v3156
        %v3530 = vadd.f32 %v3529, %v3164
        %v3531 = vadd.f32 %v3530, %v3172
        %v3532 = vadd.f32 %v3531, %v3180
        %v3533 = vadd.f32 %v3532, %v3188
        %v3534 = vadd.f32 %v3533, %v3196
        %v3535 = vadd.f32 %v3534, %v3204
        %v3536 = vadd.f32 %v3535, %v3212
        %v3537 = vadd.f32 %v3536, %v3220
        %v3538 = vadd.f32 %v3537, %v3228
        %v3539 = vadd.f32 %v3538, %v3236
        %v3540 = vadd.f32 %v3539, %v3244
        %v3541 = vadd.f32 %v3540, %v3252
        %v3542 = vadd.f32 %v3541, %v3260
        %v3543 = vadd.f32 %v3542, %v3268
        %v3544 = vadd.f32 %v3543, %v3276
        %v3545 = vadd.f32 %v3544, %v3284
        %v3546 = vadd.f32 %v3545, %v3292
        %v3547 = vrot.slane %v3546, 4
        %v3548 = vadd.f32 %v3546, %v3547
        %v3549 = vrot.slane %v3548, 2
        %v3550 = vadd.f32 %v3548, %v3549
        %v3551 = vrot.slane %v3550, 1
        %v3552 = vadd.f32 %v3550, %v3551
        %v3553 = vadd.f32 %v3045, %v3053
        %v3554 = vadd.f32 %v3553, %v3061
        %v3555 = vadd.f32 %v3554, %v3069
        %v3556 = vadd.f32 %v3555, %v3077
        %v3557 = vadd.f32 %v3556, %v3085
        %v3558 = vadd.f32 %v3557, %v3093
        %v3559 = vadd.f32 %v3558, %v3101
        %v3560 = vadd.f32 %v3559, %v3109
        %v3561 = vadd.f32 %v3560, %v3117
        %v3562 = vadd.f32 %v3561, %v3125
        %v3563 = vadd.f32 %v3562, %v3133
        %v3564 = vadd.f32 %v3563, %v3141
        %v3565 = vadd.f32 %v3564, %v3149
        %v3566 = vadd.f32 %v3565, %v3157
        %v3567 = vadd.f32 %v3566, %v3165
        %v3568 = vadd.f32 %v3567, %v3173
        %v3569 = vadd.f32 %v3568, %v3181
        %v3570 = vadd.f32 %v3569, %v3189
        %v3571 = vadd.f32 %v3570, %v3197
        %v3572 = vadd.f32 %v3571, %v3205
        %v3573 = vadd.f32 %v3572, %v3213
        %v3574 = vadd.f32 %v3573, %v3221
        %v3575 = vadd.f32 %v3574, %v3229
        %v3576 = vadd.f32 %v3575, %v3237
        %v3577 = vadd.f32 %v3576, %v3245
        %v3578 = vadd.f32 %v3577, %v3253
        %v3579 = vadd.f32 %v3578, %v3261
        %v3580 = vadd.f32 %v3579, %v3269
        %v3581 = vadd.f32 %v3580, %v3277
        %v3582 = vadd.f32 %v3581, %v3285
        %v3583 = vadd.f32 %v3582, %v3293
        %v3584 = vrot.slane %v3583, 4
        %v3585 = vadd.f32 %v3583, %v3584
        %v3586 = vrot.slane %v3585, 2
        %v3587 = vadd.f32 %v3585, %v3586
        %v3588 = vrot.slane %v3587, 1
        %v3589 = vadd.f32 %v3587, %v3588
        %v3590 = vrcp.pop 256.0
        %v3591 = vmul.f32 256.0, %v3590
        %v3592 = vsub.f32 1.0, %v3591
        %v3593 = vmul.f32 %v3590, %v3592
        %v3594 = vadd.f32 %v3590, %v3593
        %vm3595 = vweird.f32 %v3590
        %v3596 = vsel %vm3595, %v3590, %v3594
        %v3597 = vmul.f32 %v3330, %v3596
        %v3598 = vmul.f32 %v3367, %v3596
        %v3599 = vmul.f32 %v3404, %v3596
        %v3600 = vmul.f32 %v3441, %v3596
        %v3601 = vmul.f32 %v3478, %v3596
        %v3602 = vmul.f32 %v3515, %v3596
        %v3603 = vmul.f32 %v3552, %v3596
        %v3604 = vmul.f32 %v3589, %v3596
        %v3605 = vld [vmem:[#allocation2] sm:$0xf]
        %v3606 = vpack.c.bf16 %v3597, %v3597
        %v3607 = vpack.c.bf16 %v3598, %v3598
        %v3608 = vpack.c.bf16 %v3599, %v3599
        %v3609 = vpack.c.bf16 %v3600, %v3600
        %v3610 = vpack.c.bf16 %v3601, %v3601
        %v3611 = vpack.c.bf16 %v3602, %v3602
        %v3612 = vpack.c.bf16 %v3603, %v3603
        %v3613 = vpack.c.bf16 %v3604, %v3604
        %v3614 = vld [vmem:[%s625] sm:$0xff]
        %v3615 = vld [vmem:[%s625 + $0x8] sm:$0xff]
        %v3616 = vld [vmem:[%s625 + $0x10] sm:$0xff]
        %v3617 = vld [vmem:[%s625 + $0x18] sm:$0xff]
        %v3618 = vld [vmem:[%s625 + $0x20] sm:$0xff]
        %v3619 = vld [vmem:[%s625 + $0x28] sm:$0xff]
        %v3620 = vld [vmem:[%s625 + $0x30] sm:$0xff]
        %v3621 = vld [vmem:[%s625 + $0x38] sm:$0xff]
        %v3622 = vld [vmem:[%s625 + $0x40] sm:$0xff]
        %v3623 = vld [vmem:[%s625 + $0x48] sm:$0xff]
        %v3624 = vld [vmem:[%s625 + $0x50] sm:$0xff]
        %v3625 = vld [vmem:[%s625 + $0x58] sm:$0xff]
        %v3626 = vld [vmem:[%s625 + $0x60] sm:$0xff]
        %v3627 = vld [vmem:[%s625 + $0x68] sm:$0xff]
        %v3628 = vld [vmem:[%s625 + $0x70] sm:$0xff]
        %v3629 = vld [vmem:[%s625 + $0x78] sm:$0xff]
        %v3630 = vld [vmem:[%s625 + $0x80] sm:$0xff]
        %v3631 = vld [vmem:[%s625 + $0x88] sm:$0xff]
        %v3632 = vld [vmem:[%s625 + $0x90] sm:$0xff]
        %v3633 = vld [vmem:[%s625 + $0x98] sm:$0xff]
        %v3634 = vld [vmem:[%s625 + $0xa0] sm:$0xff]
        %v3635 = vld [vmem:[%s625 + $0xa8] sm:$0xff]
        %v3636 = vld [vmem:[%s625 + $0xb0] sm:$0xff]
        %v3637 = vld [vmem:[%s625 + $0xb8] sm:$0xff]
        %v3638 = vld [vmem:[%s625 + $0xc0] sm:$0xff]
        %v3639 = vld [vmem:[%s625 + $0xc8] sm:$0xff]
        %v3640 = vld [vmem:[%s625 + $0xd0] sm:$0xff]
        %v3641 = vld [vmem:[%s625 + $0xd8] sm:$0xff]
        %v3642 = vld [vmem:[%s625 + $0xe0] sm:$0xff]
        %v3643 = vld [vmem:[%s625 + $0xe8] sm:$0xff]
        %v3644 = vld [vmem:[%s625 + $0xf0] sm:$0xff]
        %v3645 = vld [vmem:[%s625 + $0xf8] sm:$0xff]
        %v3646 = vld [vmem:[%s625 + $0x100] sm:$0xff]
        %v3647 = vld [vmem:[%s625 + $0x108] sm:$0xff]
        %v3648 = vld [vmem:[%s625 + $0x110] sm:$0xff]
        %v3649 = vld [vmem:[%s625 + $0x118] sm:$0xff]
        %v3650 = vld [vmem:[%s625 + $0x120] sm:$0xff]
        %v3651 = vld [vmem:[%s625 + $0x128] sm:$0xff]
        %v3652 = vld [vmem:[%s625 + $0x130] sm:$0xff]
        %v3653 = vld [vmem:[%s625 + $0x138] sm:$0xff]
        %v3654 = vld [vmem:[%s625 + $0x140] sm:$0xff]
        %v3655 = vld [vmem:[%s625 + $0x148] sm:$0xff]
        %v3656 = vld [vmem:[%s625 + $0x150] sm:$0xff]
        %v3657 = vld [vmem:[%s625 + $0x158] sm:$0xff]
        %v3658 = vld [vmem:[%s625 + $0x160] sm:$0xff]
        %v3659 = vld [vmem:[%s625 + $0x168] sm:$0xff]
        %v3660 = vld [vmem:[%s625 + $0x170] sm:$0xff]
        %v3661 = vld [vmem:[%s625 + $0x178] sm:$0xff]
        %v3662 = vld [vmem:[%s625 + $0x180] sm:$0xff]
        %v3663 = vld [vmem:[%s625 + $0x188] sm:$0xff]
        %v3664 = vld [vmem:[%s625 + $0x190] sm:$0xff]
        %v3665 = vld [vmem:[%s625 + $0x198] sm:$0xff]
        %v3666 = vld [vmem:[%s625 + $0x1a0] sm:$0xff]
        %v3667 = vld [vmem:[%s625 + $0x1a8] sm:$0xff]
        %v3668 = vld [vmem:[%s625 + $0x1b0] sm:$0xff]
        %v3669 = vld [vmem:[%s625 + $0x1b8] sm:$0xff]
        %v3670 = vld [vmem:[%s625 + $0x1c0] sm:$0xff]
        %v3671 = vld [vmem:[%s625 + $0x1c8] sm:$0xff]
        %v3672 = vld [vmem:[%s625 + $0x1d0] sm:$0xff]
        %v3673 = vld [vmem:[%s625 + $0x1d8] sm:$0xff]
        %v3674 = vld [vmem:[%s625 + $0x1e0] sm:$0xff]
        %v3675 = vld [vmem:[%s625 + $0x1e8] sm:$0xff]
        %v3676 = vld [vmem:[%s625 + $0x1f0] sm:$0xff]
        %v3677 = vld [vmem:[%s625 + $0x1f8] sm:$0xff]
        %v3678 = vld [vmem:[%s625 + $0x200] sm:$0xff]
        %v3679 = vld [vmem:[%s625 + $0x208] sm:$0xff]
        %v3680 = vld [vmem:[%s625 + $0x210] sm:$0xff]
        %v3681 = vld [vmem:[%s625 + $0x218] sm:$0xff]
        %v3682 = vld [vmem:[%s625 + $0x220] sm:$0xff]
        %v3683 = vld [vmem:[%s625 + $0x228] sm:$0xff]
        %v3684 = vld [vmem:[%s625 + $0x230] sm:$0xff]
        %v3685 = vld [vmem:[%s625 + $0x238] sm:$0xff]
        %v3686 = vld [vmem:[%s625 + $0x240] sm:$0xff]
        %v3687 = vld [vmem:[%s625 + $0x248] sm:$0xff]
        %v3688 = vld [vmem:[%s625 + $0x250] sm:$0xff]
        %v3689 = vld [vmem:[%s625 + $0x258] sm:$0xff]
        %v3690 = vld [vmem:[%s625 + $0x260] sm:$0xff]
        %v3691 = vld [vmem:[%s625 + $0x268] sm:$0xff]
        %v3692 = vld [vmem:[%s625 + $0x270] sm:$0xff]
        %v3693 = vld [vmem:[%s625 + $0x278] sm:$0xff]
        %v3694 = vld [vmem:[%s625 + $0x280] sm:$0xff]
        %v3695 = vld [vmem:[%s625 + $0x288] sm:$0xff]
        %v3696 = vld [vmem:[%s625 + $0x290] sm:$0xff]
        %v3697 = vld [vmem:[%s625 + $0x298] sm:$0xff]
        %v3698 = vld [vmem:[%s625 + $0x2a0] sm:$0xff]
        %v3699 = vld [vmem:[%s625 + $0x2a8] sm:$0xff]
        %v3700 = vld [vmem:[%s625 + $0x2b0] sm:$0xff]
        %v3701 = vld [vmem:[%s625 + $0x2b8] sm:$0xff]
        %v3702 = vld [vmem:[%s625 + $0x2c0] sm:$0xff]
        %v3703 = vld [vmem:[%s625 + $0x2c8] sm:$0xff]
        %v3704 = vld [vmem:[%s625 + $0x2d0] sm:$0xff]
        %v3705 = vld [vmem:[%s625 + $0x2d8] sm:$0xff]
        %v3706 = vld [vmem:[%s625 + $0x2e0] sm:$0xff]
        %v3707 = vld [vmem:[%s625 + $0x2e8] sm:$0xff]
        %v3708 = vld [vmem:[%s625 + $0x2f0] sm:$0xff]
        %v3709 = vld [vmem:[%s625 + $0x2f8] sm:$0xff]
        %v3710 = vld [vmem:[%s625 + $0x300] sm:$0xff]
        %v3711 = vld [vmem:[%s625 + $0x308] sm:$0xff]
        %v3712 = vld [vmem:[%s625 + $0x310] sm:$0xff]
        %v3713 = vld [vmem:[%s625 + $0x318] sm:$0xff]
        %v3714 = vld [vmem:[%s625 + $0x320] sm:$0xff]
        %v3715 = vld [vmem:[%s625 + $0x328] sm:$0xff]
        %v3716 = vld [vmem:[%s625 + $0x330] sm:$0xff]
        %v3717 = vld [vmem:[%s625 + $0x338] sm:$0xff]
        %v3718 = vld [vmem:[%s625 + $0x340] sm:$0xff]
        %v3719 = vld [vmem:[%s625 + $0x348] sm:$0xff]
        %v3720 = vld [vmem:[%s625 + $0x350] sm:$0xff]
        %v3721 = vld [vmem:[%s625 + $0x358] sm:$0xff]
        %v3722 = vld [vmem:[%s625 + $0x360] sm:$0xff]
        %v3723 = vld [vmem:[%s625 + $0x368] sm:$0xff]
        %v3724 = vld [vmem:[%s625 + $0x370] sm:$0xff]
        %v3725 = vld [vmem:[%s625 + $0x378] sm:$0xff]
        %v3726 = vld [vmem:[%s625 + $0x380] sm:$0xff]
        %v3727 = vld [vmem:[%s625 + $0x388] sm:$0xff]
        %v3728 = vld [vmem:[%s625 + $0x390] sm:$0xff]
        %v3729 = vld [vmem:[%s625 + $0x398] sm:$0xff]
        %v3730 = vld [vmem:[%s625 + $0x3a0] sm:$0xff]
        %v3731 = vld [vmem:[%s625 + $0x3a8] sm:$0xff]
        %v3732 = vld [vmem:[%s625 + $0x3b0] sm:$0xff]
        %v3733 = vld [vmem:[%s625 + $0x3b8] sm:$0xff]
        %v3734 = vld [vmem:[%s625 + $0x3c0] sm:$0xff]
        %v3735 = vld [vmem:[%s625 + $0x3c8] sm:$0xff]
        %v3736 = vld [vmem:[%s625 + $0x3d0] sm:$0xff]
        %v3737 = vld [vmem:[%s625 + $0x3d8] sm:$0xff]
        %v3738 = vld [vmem:[%s625 + $0x3e0] sm:$0xff]
        %v3739 = vld [vmem:[%s625 + $0x3e8] sm:$0xff]
        %v3740 = vld [vmem:[%s625 + $0x3f0] sm:$0xff]
        %v3741 = vld [vmem:[%s625 + $0x3f8] sm:$0xff]
        %v3742 = vld [vmem:[%s625 + $0x400] sm:$0xff]
        %v3743 = vld [vmem:[%s625 + $0x408] sm:$0xff]
        %v3744 = vld [vmem:[%s625 + $0x410] sm:$0xff]
        %v3745 = vld [vmem:[%s625 + $0x418] sm:$0xff]
        %v3746 = vld [vmem:[%s625 + $0x420] sm:$0xff]
        %v3747 = vld [vmem:[%s625 + $0x428] sm:$0xff]
        %v3748 = vld [vmem:[%s625 + $0x430] sm:$0xff]
        %v3749 = vld [vmem:[%s625 + $0x438] sm:$0xff]
        %v3750 = vld [vmem:[%s625 + $0x440] sm:$0xff]
        %v3751 = vld [vmem:[%s625 + $0x448] sm:$0xff]
        %v3752 = vld [vmem:[%s625 + $0x450] sm:$0xff]
        %v3753 = vld [vmem:[%s625 + $0x458] sm:$0xff]
        %v3754 = vld [vmem:[%s625 + $0x460] sm:$0xff]
        %v3755 = vld [vmem:[%s625 + $0x468] sm:$0xff]
        %v3756 = vld [vmem:[%s625 + $0x470] sm:$0xff]
        %v3757 = vld [vmem:[%s625 + $0x478] sm:$0xff]
        %v3758 = vld [vmem:[%s625 + $0x480] sm:$0xff]
        %v3759 = vld [vmem:[%s625 + $0x488] sm:$0xff]
        %v3760 = vld [vmem:[%s625 + $0x490] sm:$0xff]
        %v3761 = vld [vmem:[%s625 + $0x498] sm:$0xff]
        %v3762 = vld [vmem:[%s625 + $0x4a0] sm:$0xff]
        %v3763 = vld [vmem:[%s625 + $0x4a8] sm:$0xff]
        %v3764 = vld [vmem:[%s625 + $0x4b0] sm:$0xff]
        %v3765 = vld [vmem:[%s625 + $0x4b8] sm:$0xff]
        %v3766 = vld [vmem:[%s625 + $0x4c0] sm:$0xff]
        %v3767 = vld [vmem:[%s625 + $0x4c8] sm:$0xff]
        %v3768 = vld [vmem:[%s625 + $0x4d0] sm:$0xff]
        %v3769 = vld [vmem:[%s625 + $0x4d8] sm:$0xff]
        %v3770 = vld [vmem:[%s625 + $0x4e0] sm:$0xff]
        %v3771 = vld [vmem:[%s625 + $0x4e8] sm:$0xff]
        %v3772 = vld [vmem:[%s625 + $0x4f0] sm:$0xff]
        %v3773 = vld [vmem:[%s625 + $0x4f8] sm:$0xff]
        %v3774 = vld [vmem:[%s625 + $0x500] sm:$0xff]
        %v3775 = vld [vmem:[%s625 + $0x508] sm:$0xff]
        %v3776 = vld [vmem:[%s625 + $0x510] sm:$0xff]
        %v3777 = vld [vmem:[%s625 + $0x518] sm:$0xff]
        %v3778 = vld [vmem:[%s625 + $0x520] sm:$0xff]
        %v3779 = vld [vmem:[%s625 + $0x528] sm:$0xff]
        %v3780 = vld [vmem:[%s625 + $0x530] sm:$0xff]
        %v3781 = vld [vmem:[%s625 + $0x538] sm:$0xff]
        %v3782 = vld [vmem:[%s625 + $0x540] sm:$0xff]
        %v3783 = vld [vmem:[%s625 + $0x548] sm:$0xff]
        %v3784 = vld [vmem:[%s625 + $0x550] sm:$0xff]
        %v3785 = vld [vmem:[%s625 + $0x558] sm:$0xff]
        %v3786 = vld [vmem:[%s625 + $0x560] sm:$0xff]
        %v3787 = vld [vmem:[%s625 + $0x568] sm:$0xff]
        %v3788 = vld [vmem:[%s625 + $0x570] sm:$0xff]
        %v3789 = vld [vmem:[%s625 + $0x578] sm:$0xff]
        %v3790 = vld [vmem:[%s625 + $0x580] sm:$0xff]
        %v3791 = vld [vmem:[%s625 + $0x588] sm:$0xff]
        %v3792 = vld [vmem:[%s625 + $0x590] sm:$0xff]
        %v3793 = vld [vmem:[%s625 + $0x598] sm:$0xff]
        %v3794 = vld [vmem:[%s625 + $0x5a0] sm:$0xff]
        %v3795 = vld [vmem:[%s625 + $0x5a8] sm:$0xff]
        %v3796 = vld [vmem:[%s625 + $0x5b0] sm:$0xff]
        %v3797 = vld [vmem:[%s625 + $0x5b8] sm:$0xff]
        %v3798 = vld [vmem:[%s625 + $0x5c0] sm:$0xff]
        %v3799 = vld [vmem:[%s625 + $0x5c8] sm:$0xff]
        %v3800 = vld [vmem:[%s625 + $0x5d0] sm:$0xff]
        %v3801 = vld [vmem:[%s625 + $0x5d8] sm:$0xff]
        %v3802 = vld [vmem:[%s625 + $0x5e0] sm:$0xff]
        %v3803 = vld [vmem:[%s625 + $0x5e8] sm:$0xff]
        %v3804 = vld [vmem:[%s625 + $0x5f0] sm:$0xff]
        %v3805 = vld [vmem:[%s625 + $0x5f8] sm:$0xff]
        %v3806 = vld [vmem:[%s625 + $0x600] sm:$0xff]
        %v3807 = vld [vmem:[%s625 + $0x608] sm:$0xff]
        %v3808 = vld [vmem:[%s625 + $0x610] sm:$0xff]
        %v3809 = vld [vmem:[%s625 + $0x618] sm:$0xff]
        %v3810 = vld [vmem:[%s625 + $0x620] sm:$0xff]
        %v3811 = vld [vmem:[%s625 + $0x628] sm:$0xff]
        %v3812 = vld [vmem:[%s625 + $0x630] sm:$0xff]
        %v3813 = vld [vmem:[%s625 + $0x638] sm:$0xff]
        %v3814 = vld [vmem:[%s625 + $0x640] sm:$0xff]
        %v3815 = vld [vmem:[%s625 + $0x648] sm:$0xff]
        %v3816 = vld [vmem:[%s625 + $0x650] sm:$0xff]
        %v3817 = vld [vmem:[%s625 + $0x658] sm:$0xff]
        %v3818 = vld [vmem:[%s625 + $0x660] sm:$0xff]
        %v3819 = vld [vmem:[%s625 + $0x668] sm:$0xff]
        %v3820 = vld [vmem:[%s625 + $0x670] sm:$0xff]
        %v3821 = vld [vmem:[%s625 + $0x678] sm:$0xff]
        %v3822 = vld [vmem:[%s625 + $0x680] sm:$0xff]
        %v3823 = vld [vmem:[%s625 + $0x688] sm:$0xff]
        %v3824 = vld [vmem:[%s625 + $0x690] sm:$0xff]
        %v3825 = vld [vmem:[%s625 + $0x698] sm:$0xff]
        %v3826 = vld [vmem:[%s625 + $0x6a0] sm:$0xff]
        %v3827 = vld [vmem:[%s625 + $0x6a8] sm:$0xff]
        %v3828 = vld [vmem:[%s625 + $0x6b0] sm:$0xff]
        %v3829 = vld [vmem:[%s625 + $0x6b8] sm:$0xff]
        %v3830 = vld [vmem:[%s625 + $0x6c0] sm:$0xff]
        %v3831 = vld [vmem:[%s625 + $0x6c8] sm:$0xff]
        %v3832 = vld [vmem:[%s625 + $0x6d0] sm:$0xff]
        %v3833 = vld [vmem:[%s625 + $0x6d8] sm:$0xff]
        %v3834 = vld [vmem:[%s625 + $0x6e0] sm:$0xff]
        %v3835 = vld [vmem:[%s625 + $0x6e8] sm:$0xff]
        %v3836 = vld [vmem:[%s625 + $0x6f0] sm:$0xff]
        %v3837 = vld [vmem:[%s625 + $0x6f8] sm:$0xff]
        %v3838 = vld [vmem:[%s625 + $0x700] sm:$0xff]
        %v3839 = vld [vmem:[%s625 + $0x708] sm:$0xff]
        %v3840 = vld [vmem:[%s625 + $0x710] sm:$0xff]
        %v3841 = vld [vmem:[%s625 + $0x718] sm:$0xff]
        %v3842 = vld [vmem:[%s625 + $0x720] sm:$0xff]
        %v3843 = vld [vmem:[%s625 + $0x728] sm:$0xff]
        %v3844 = vld [vmem:[%s625 + $0x730] sm:$0xff]
        %v3845 = vld [vmem:[%s625 + $0x738] sm:$0xff]
        %v3846 = vld [vmem:[%s625 + $0x740] sm:$0xff]
        %v3847 = vld [vmem:[%s625 + $0x748] sm:$0xff]
        %v3848 = vld [vmem:[%s625 + $0x750] sm:$0xff]
        %v3849 = vld [vmem:[%s625 + $0x758] sm:$0xff]
        %v3850 = vld [vmem:[%s625 + $0x760] sm:$0xff]
        %v3851 = vld [vmem:[%s625 + $0x768] sm:$0xff]
        %v3852 = vld [vmem:[%s625 + $0x770] sm:$0xff]
        %v3853 = vld [vmem:[%s625 + $0x778] sm:$0xff]
        %v3854 = vld [vmem:[%s625 + $0x780] sm:$0xff]
        %v3855 = vld [vmem:[%s625 + $0x788] sm:$0xff]
        %v3856 = vld [vmem:[%s625 + $0x790] sm:$0xff]
        %v3857 = vld [vmem:[%s625 + $0x798] sm:$0xff]
        %v3858 = vld [vmem:[%s625 + $0x7a0] sm:$0xff]
        %v3859 = vld [vmem:[%s625 + $0x7a8] sm:$0xff]
        %v3860 = vld [vmem:[%s625 + $0x7b0] sm:$0xff]
        %v3861 = vld [vmem:[%s625 + $0x7b8] sm:$0xff]
        %v3862 = vld [vmem:[%s625 + $0x7c0] sm:$0xff]
        %v3863 = vld [vmem:[%s625 + $0x7c8] sm:$0xff]
        %v3864 = vld [vmem:[%s625 + $0x7d0] sm:$0xff]
        %v3865 = vld [vmem:[%s625 + $0x7d8] sm:$0xff]
        %v3866 = vld [vmem:[%s625 + $0x7e0] sm:$0xff]
        %v3867 = vld [vmem:[%s625 + $0x7e8] sm:$0xff]
        %v3868 = vld [vmem:[%s625 + $0x7f0] sm:$0xff]
        %v3869 = vld [vmem:[%s625 + $0x7f8] sm:$0xff]
        %v4126 = vunpack.c.l.b16 %v3614
        %v4127 = vunpack.c.h.b16 %v3614
        %v4128 = vunpack.c.l.b16 %v3615
        %v4129 = vunpack.c.h.b16 %v3615
        %v4130 = vunpack.c.l.b16 %v3616
        %v4131 = vunpack.c.h.b16 %v3616
        %v4132 = vunpack.c.l.b16 %v3617
        %v4133 = vunpack.c.h.b16 %v3617
        %v4134 = vunpack.c.l.b16 %v3618
        %v4135 = vunpack.c.h.b16 %v3618
        %v4136 = vunpack.c.l.b16 %v3619
        %v4137 = vunpack.c.h.b16 %v3619
        %v4138 = vunpack.c.l.b16 %v3620
        %v4139 = vunpack.c.h.b16 %v3620
        %v4140 = vunpack.c.l.b16 %v3621
        %v4141 = vunpack.c.h.b16 %v3621
        %v4142 = vunpack.c.l.b16 %v3622
        %v4143 = vunpack.c.h.b16 %v3622
        %v4144 = vunpack.c.l.b16 %v3623
        %v4145 = vunpack.c.h.b16 %v3623
        %v4146 = vunpack.c.l.b16 %v3624
        %v4147 = vunpack.c.h.b16 %v3624
        %v4148 = vunpack.c.l.b16 %v3625
        %v4149 = vunpack.c.h.b16 %v3625
        %v4150 = vunpack.c.l.b16 %v3626
        %v4151 = vunpack.c.h.b16 %v3626
        %v4152 = vunpack.c.l.b16 %v3627
        %v4153 = vunpack.c.h.b16 %v3627
        %v4154 = vunpack.c.l.b16 %v3628
        %v4155 = vunpack.c.h.b16 %v3628
        %v4156 = vunpack.c.l.b16 %v3629
        %v4157 = vunpack.c.h.b16 %v3629
        %v4158 = vunpack.c.l.b16 %v3630
        %v4159 = vunpack.c.h.b16 %v3630
        %v4160 = vunpack.c.l.b16 %v3631
        %v4161 = vunpack.c.h.b16 %v3631
        %v4162 = vunpack.c.l.b16 %v3632
        %v4163 = vunpack.c.h.b16 %v3632
        %v4164 = vunpack.c.l.b16 %v3633
        %v4165 = vunpack.c.h.b16 %v3633
        %v4166 = vunpack.c.l.b16 %v3634
        %v4167 = vunpack.c.h.b16 %v3634
        %v4168 = vunpack.c.l.b16 %v3635
        %v4169 = vunpack.c.h.b16 %v3635
        %v4170 = vunpack.c.l.b16 %v3636
        %v4171 = vunpack.c.h.b16 %v3636
        %v4172 = vunpack.c.l.b16 %v3637
        %v4173 = vunpack.c.h.b16 %v3637
        %v4174 = vunpack.c.l.b16 %v3638
        %v4175 = vunpack.c.h.b16 %v3638
        %v4176 = vunpack.c.l.b16 %v3639
        %v4177 = vunpack.c.h.b16 %v3639
        %v4178 = vunpack.c.l.b16 %v3640
        %v4179 = vunpack.c.h.b16 %v3640
        %v4180 = vunpack.c.l.b16 %v3641
        %v4181 = vunpack.c.h.b16 %v3641
        %v4182 = vunpack.c.l.b16 %v3642
        %v4183 = vunpack.c.h.b16 %v3642
        %v4184 = vunpack.c.l.b16 %v3643
        %v4185 = vunpack.c.h.b16 %v3643
        %v4186 = vunpack.c.l.b16 %v3644
        %v4187 = vunpack.c.h.b16 %v3644
        %v4188 = vunpack.c.l.b16 %v3645
        %v4189 = vunpack.c.h.b16 %v3645
        %v4190 = vunpack.c.l.b16 %v3646
        %v4191 = vunpack.c.h.b16 %v3646
        %v4192 = vunpack.c.l.b16 %v3647
        %v4193 = vunpack.c.h.b16 %v3647
        %v4194 = vunpack.c.l.b16 %v3648
        %v4195 = vunpack.c.h.b16 %v3648
        %v4196 = vunpack.c.l.b16 %v3649
        %v4197 = vunpack.c.h.b16 %v3649
        %v4198 = vunpack.c.l.b16 %v3650
        %v4199 = vunpack.c.h.b16 %v3650
        %v4200 = vunpack.c.l.b16 %v3651
        %v4201 = vunpack.c.h.b16 %v3651
        %v4202 = vunpack.c.l.b16 %v3652
        %v4203 = vunpack.c.h.b16 %v3652
        %v4204 = vunpack.c.l.b16 %v3653
        %v4205 = vunpack.c.h.b16 %v3653
        %v4206 = vunpack.c.l.b16 %v3654
        %v4207 = vunpack.c.h.b16 %v3654
        %v4208 = vunpack.c.l.b16 %v3655
        %v4209 = vunpack.c.h.b16 %v3655
        %v4210 = vunpack.c.l.b16 %v3656
        %v4211 = vunpack.c.h.b16 %v3656
        %v4212 = vunpack.c.l.b16 %v3657
        %v4213 = vunpack.c.h.b16 %v3657
        %v4214 = vunpack.c.l.b16 %v3658
        %v4215 = vunpack.c.h.b16 %v3658
        %v4216 = vunpack.c.l.b16 %v3659
        %v4217 = vunpack.c.h.b16 %v3659
        %v4218 = vunpack.c.l.b16 %v3660
        %v4219 = vunpack.c.h.b16 %v3660
        %v4220 = vunpack.c.l.b16 %v3661
        %v4221 = vunpack.c.h.b16 %v3661
        %v4222 = vunpack.c.l.b16 %v3662
        %v4223 = vunpack.c.h.b16 %v3662
        %v4224 = vunpack.c.l.b16 %v3663
        %v4225 = vunpack.c.h.b16 %v3663
        %v4226 = vunpack.c.l.b16 %v3664
        %v4227 = vunpack.c.h.b16 %v3664
        %v4228 = vunpack.c.l.b16 %v3665
        %v4229 = vunpack.c.h.b16 %v3665
        %v4230 = vunpack.c.l.b16 %v3666
        %v4231 = vunpack.c.h.b16 %v3666
        %v4232 = vunpack.c.l.b16 %v3667
        %v4233 = vunpack.c.h.b16 %v3667
        %v4234 = vunpack.c.l.b16 %v3668
        %v4235 = vunpack.c.h.b16 %v3668
        %v4236 = vunpack.c.l.b16 %v3669
        %v4237 = vunpack.c.h.b16 %v3669
        %v4238 = vunpack.c.l.b16 %v3670
        %v4239 = vunpack.c.h.b16 %v3670
        %v4240 = vunpack.c.l.b16 %v3671
        %v4241 = vunpack.c.h.b16 %v3671
        %v4242 = vunpack.c.l.b16 %v3672
        %v4243 = vunpack.c.h.b16 %v3672
        %v4244 = vunpack.c.l.b16 %v3673
        %v4245 = vunpack.c.h.b16 %v3673
        %v4246 = vunpack.c.l.b16 %v3674
        %v4247 = vunpack.c.h.b16 %v3674
        %v4248 = vunpack.c.l.b16 %v3675
        %v4249 = vunpack.c.h.b16 %v3675
        %v4250 = vunpack.c.l.b16 %v3676
        %v4251 = vunpack.c.h.b16 %v3676
        %v4252 = vunpack.c.l.b16 %v3677
        %v4253 = vunpack.c.h.b16 %v3677
        %v4254 = vunpack.c.l.b16 %v3678
        %v4255 = vunpack.c.h.b16 %v3678
        %v4256 = vunpack.c.l.b16 %v3679
        %v4257 = vunpack.c.h.b16 %v3679
        %v4258 = vunpack.c.l.b16 %v3680
        %v4259 = vunpack.c.h.b16 %v3680
        %v4260 = vunpack.c.l.b16 %v3681
        %v4261 = vunpack.c.h.b16 %v3681
        %v4262 = vunpack.c.l.b16 %v3682
        %v4263 = vunpack.c.h.b16 %v3682
        %v4264 = vunpack.c.l.b16 %v3683
        %v4265 = vunpack.c.h.b16 %v3683
        %v4266 = vunpack.c.l.b16 %v3684
        %v4267 = vunpack.c.h.b16 %v3684
        %v4268 = vunpack.c.l.b16 %v3685
        %v4269 = vunpack.c.h.b16 %v3685
        %v4270 = vunpack.c.l.b16 %v3686
        %v4271 = vunpack.c.h.b16 %v3686
        %v4272 = vunpack.c.l.b16 %v3687
        %v4273 = vunpack.c.h.b16 %v3687
        %v4274 = vunpack.c.l.b16 %v3688
        %v4275 = vunpack.c.h.b16 %v3688
        %v4276 = vunpack.c.l.b16 %v3689
        %v4277 = vunpack.c.h.b16 %v3689
        %v4278 = vunpack.c.l.b16 %v3690
        %v4279 = vunpack.c.h.b16 %v3690
        %v4280 = vunpack.c.l.b16 %v3691
        %v4281 = vunpack.c.h.b16 %v3691
        %v4282 = vunpack.c.l.b16 %v3692
        %v4283 = vunpack.c.h.b16 %v3692
        %v4284 = vunpack.c.l.b16 %v3693
        %v4285 = vunpack.c.h.b16 %v3693
        %v4286 = vunpack.c.l.b16 %v3694
        %v4287 = vunpack.c.h.b16 %v3694
        %v4288 = vunpack.c.l.b16 %v3695
        %v4289 = vunpack.c.h.b16 %v3695
        %v4290 = vunpack.c.l.b16 %v3696
        %v4291 = vunpack.c.h.b16 %v3696
        %v4292 = vunpack.c.l.b16 %v3697
        %v4293 = vunpack.c.h.b16 %v3697
        %v4294 = vunpack.c.l.b16 %v3698
        %v4295 = vunpack.c.h.b16 %v3698
        %v4296 = vunpack.c.l.b16 %v3699
        %v4297 = vunpack.c.h.b16 %v3699
        %v4298 = vunpack.c.l.b16 %v3700
        %v4299 = vunpack.c.h.b16 %v3700
        %v4300 = vunpack.c.l.b16 %v3701
        %v4301 = vunpack.c.h.b16 %v3701
        %v4302 = vunpack.c.l.b16 %v3702
        %v4303 = vunpack.c.h.b16 %v3702
        %v4304 = vunpack.c.l.b16 %v3703
        %v4305 = vunpack.c.h.b16 %v3703
        %v4306 = vunpack.c.l.b16 %v3704
        %v4307 = vunpack.c.h.b16 %v3704
        %v4308 = vunpack.c.l.b16 %v3705
        %v4309 = vunpack.c.h.b16 %v3705
        %v4310 = vunpack.c.l.b16 %v3706
        %v4311 = vunpack.c.h.b16 %v3706
        %v4312 = vunpack.c.l.b16 %v3707
        %v4313 = vunpack.c.h.b16 %v3707
        %v4314 = vunpack.c.l.b16 %v3708
        %v4315 = vunpack.c.h.b16 %v3708
        %v4316 = vunpack.c.l.b16 %v3709
        %v4317 = vunpack.c.h.b16 %v3709
        %v4318 = vunpack.c.l.b16 %v3710
        %v4319 = vunpack.c.h.b16 %v3710
        %v4320 = vunpack.c.l.b16 %v3711
        %v4321 = vunpack.c.h.b16 %v3711
        %v4322 = vunpack.c.l.b16 %v3712
        %v4323 = vunpack.c.h.b16 %v3712
        %v4324 = vunpack.c.l.b16 %v3713
        %v4325 = vunpack.c.h.b16 %v3713
        %v4326 = vunpack.c.l.b16 %v3714
        %v4327 = vunpack.c.h.b16 %v3714
        %v4328 = vunpack.c.l.b16 %v3715
        %v4329 = vunpack.c.h.b16 %v3715
        %v4330 = vunpack.c.l.b16 %v3716
        %v4331 = vunpack.c.h.b16 %v3716
        %v4332 = vunpack.c.l.b16 %v3717
        %v4333 = vunpack.c.h.b16 %v3717
        %v4334 = vunpack.c.l.b16 %v3718
        %v4335 = vunpack.c.h.b16 %v3718
        %v4336 = vunpack.c.l.b16 %v3719
        %v4337 = vunpack.c.h.b16 %v3719
        %v4338 = vunpack.c.l.b16 %v3720
        %v4339 = vunpack.c.h.b16 %v3720
        %v4340 = vunpack.c.l.b16 %v3721
        %v4341 = vunpack.c.h.b16 %v3721
        %v4342 = vunpack.c.l.b16 %v3722
        %v4343 = vunpack.c.h.b16 %v3722
        %v4344 = vunpack.c.l.b16 %v3723
        %v4345 = vunpack.c.h.b16 %v3723
        %v4346 = vunpack.c.l.b16 %v3724
        %v4347 = vunpack.c.h.b16 %v3724
        %v4348 = vunpack.c.l.b16 %v3725
        %v4349 = vunpack.c.h.b16 %v3725
        %v4350 = vunpack.c.l.b16 %v3726
        %v4351 = vunpack.c.h.b16 %v3726
        %v4352 = vunpack.c.l.b16 %v3727
        %v4353 = vunpack.c.h.b16 %v3727
        %v4354 = vunpack.c.l.b16 %v3728
        %v4355 = vunpack.c.h.b16 %v3728
        %v4356 = vunpack.c.l.b16 %v3729
        %v4357 = vunpack.c.h.b16 %v3729
        %v4358 = vunpack.c.l.b16 %v3730
        %v4359 = vunpack.c.h.b16 %v3730
        %v4360 = vunpack.c.l.b16 %v3731
        %v4361 = vunpack.c.h.b16 %v3731
        %v4362 = vunpack.c.l.b16 %v3732
        %v4363 = vunpack.c.h.b16 %v3732
        %v4364 = vunpack.c.l.b16 %v3733
        %v4365 = vunpack.c.h.b16 %v3733
        %v4366 = vunpack.c.l.b16 %v3734
        %v4367 = vunpack.c.h.b16 %v3734
        %v4368 = vunpack.c.l.b16 %v3735
        %v4369 = vunpack.c.h.b16 %v3735
        %v4370 = vunpack.c.l.b16 %v3736
        %v4371 = vunpack.c.h.b16 %v3736
        %v4372 = vunpack.c.l.b16 %v3737
        %v4373 = vunpack.c.h.b16 %v3737
        %v4374 = vunpack.c.l.b16 %v3738
        %v4375 = vunpack.c.h.b16 %v3738
        %v4376 = vunpack.c.l.b16 %v3739
        %v4377 = vunpack.c.h.b16 %v3739
        %v4378 = vunpack.c.l.b16 %v3740
        %v4379 = vunpack.c.h.b16 %v3740
        %v4380 = vunpack.c.l.b16 %v3741
        %v4381 = vunpack.c.h.b16 %v3741
        %v4382 = vunpack.c.l.b16 %v3742
        %v4383 = vunpack.c.h.b16 %v3742
        %v4384 = vunpack.c.l.b16 %v3743
        %v4385 = vunpack.c.h.b16 %v3743
        %v4386 = vunpack.c.l.b16 %v3744
        %v4387 = vunpack.c.h.b16 %v3744
        %v4388 = vunpack.c.l.b16 %v3745
        %v4389 = vunpack.c.h.b16 %v3745
        %v4390 = vunpack.c.l.b16 %v3746
        %v4391 = vunpack.c.h.b16 %v3746
        %v4392 = vunpack.c.l.b16 %v3747
        %v4393 = vunpack.c.h.b16 %v3747
        %v4394 = vunpack.c.l.b16 %v3748
        %v4395 = vunpack.c.h.b16 %v3748
        %v4396 = vunpack.c.l.b16 %v3749
        %v4397 = vunpack.c.h.b16 %v3749
        %v4398 = vunpack.c.l.b16 %v3750
        %v4399 = vunpack.c.h.b16 %v3750
        %v4400 = vunpack.c.l.b16 %v3751
        %v4401 = vunpack.c.h.b16 %v3751
        %v4402 = vunpack.c.l.b16 %v3752
        %v4403 = vunpack.c.h.b16 %v3752
        %v4404 = vunpack.c.l.b16 %v3753
        %v4405 = vunpack.c.h.b16 %v3753
        %v4406 = vunpack.c.l.b16 %v3754
        %v4407 = vunpack.c.h.b16 %v3754
        %v4408 = vunpack.c.l.b16 %v3755
        %v4409 = vunpack.c.h.b16 %v3755
        %v4410 = vunpack.c.l.b16 %v3756
        %v4411 = vunpack.c.h.b16 %v3756
        %v4412 = vunpack.c.l.b16 %v3757
        %v4413 = vunpack.c.h.b16 %v3757
        %v4414 = vunpack.c.l.b16 %v3758
        %v4415 = vunpack.c.h.b16 %v3758
        %v4416 = vunpack.c.l.b16 %v3759
        %v4417 = vunpack.c.h.b16 %v3759
        %v4418 = vunpack.c.l.b16 %v3760
        %v4419 = vunpack.c.h.b16 %v3760
        %v4420 = vunpack.c.l.b16 %v3761
        %v4421 = vunpack.c.h.b16 %v3761
        %v4422 = vunpack.c.l.b16 %v3762
        %v4423 = vunpack.c.h.b16 %v3762
        %v4424 = vunpack.c.l.b16 %v3763
        %v4425 = vunpack.c.h.b16 %v3763
        %v4426 = vunpack.c.l.b16 %v3764
        %v4427 = vunpack.c.h.b16 %v3764
        %v4428 = vunpack.c.l.b16 %v3765
        %v4429 = vunpack.c.h.b16 %v3765
        %v4430 = vunpack.c.l.b16 %v3766
        %v4431 = vunpack.c.h.b16 %v3766
        %v4432 = vunpack.c.l.b16 %v3767
        %v4433 = vunpack.c.h.b16 %v3767
        %v4434 = vunpack.c.l.b16 %v3768
        %v4435 = vunpack.c.h.b16 %v3768
        %v4436 = vunpack.c.l.b16 %v3769
        %v4437 = vunpack.c.h.b16 %v3769
        %v4438 = vunpack.c.l.b16 %v3770
        %v4439 = vunpack.c.h.b16 %v3770
        %v4440 = vunpack.c.l.b16 %v3771
        %v4441 = vunpack.c.h.b16 %v3771
        %v4442 = vunpack.c.l.b16 %v3772
        %v4443 = vunpack.c.h.b16 %v3772
        %v4444 = vunpack.c.l.b16 %v3773
        %v4445 = vunpack.c.h.b16 %v3773
        %v4446 = vunpack.c.l.b16 %v3774
        %v4447 = vunpack.c.h.b16 %v3774
        %v4448 = vunpack.c.l.b16 %v3775
        %v4449 = vunpack.c.h.b16 %v3775
        %v4450 = vunpack.c.l.b16 %v3776
        %v4451 = vunpack.c.h.b16 %v3776
        %v4452 = vunpack.c.l.b16 %v3777
        %v4453 = vunpack.c.h.b16 %v3777
        %v4454 = vunpack.c.l.b16 %v3778
        %v4455 = vunpack.c.h.b16 %v3778
        %v4456 = vunpack.c.l.b16 %v3779
        %v4457 = vunpack.c.h.b16 %v3779
        %v4458 = vunpack.c.l.b16 %v3780
        %v4459 = vunpack.c.h.b16 %v3780
        %v4460 = vunpack.c.l.b16 %v3781
        %v4461 = vunpack.c.h.b16 %v3781
        %v4462 = vunpack.c.l.b16 %v3782
        %v4463 = vunpack.c.h.b16 %v3782
        %v4464 = vunpack.c.l.b16 %v3783
        %v4465 = vunpack.c.h.b16 %v3783
        %v4466 = vunpack.c.l.b16 %v3784
        %v4467 = vunpack.c.h.b16 %v3784
        %v4468 = vunpack.c.l.b16 %v3785
        %v4469 = vunpack.c.h.b16 %v3785
        %v4470 = vunpack.c.l.b16 %v3786
        %v4471 = vunpack.c.h.b16 %v3786
        %v4472 = vunpack.c.l.b16 %v3787
        %v4473 = vunpack.c.h.b16 %v3787
        %v4474 = vunpack.c.l.b16 %v3788
        %v4475 = vunpack.c.h.b16 %v3788
        %v4476 = vunpack.c.l.b16 %v3789
        %v4477 = vunpack.c.h.b16 %v3789
        %v4478 = vunpack.c.l.b16 %v3790
        %v4479 = vunpack.c.h.b16 %v3790
        %v4480 = vunpack.c.l.b16 %v3791
        %v4481 = vunpack.c.h.b16 %v3791
        %v4482 = vunpack.c.l.b16 %v3792
        %v4483 = vunpack.c.h.b16 %v3792
        %v4484 = vunpack.c.l.b16 %v3793
        %v4485 = vunpack.c.h.b16 %v3793
        %v4486 = vunpack.c.l.b16 %v3794
        %v4487 = vunpack.c.h.b16 %v3794
        %v4488 = vunpack.c.l.b16 %v3795
        %v4489 = vunpack.c.h.b16 %v3795
        %v4490 = vunpack.c.l.b16 %v3796
        %v4491 = vunpack.c.h.b16 %v3796
        %v4492 = vunpack.c.l.b16 %v3797
        %v4493 = vunpack.c.h.b16 %v3797
        %v4494 = vunpack.c.l.b16 %v3798
        %v4495 = vunpack.c.h.b16 %v3798
        %v4496 = vunpack.c.l.b16 %v3799
        %v4497 = vunpack.c.h.b16 %v3799
        %v4498 = vunpack.c.l.b16 %v3800
        %v4499 = vunpack.c.h.b16 %v3800
        %v4500 = vunpack.c.l.b16 %v3801
        %v4501 = vunpack.c.h.b16 %v3801
        %v4502 = vunpack.c.l.b16 %v3802
        %v4503 = vunpack.c.h.b16 %v3802
        %v4504 = vunpack.c.l.b16 %v3803
        %v4505 = vunpack.c.h.b16 %v3803
        %v4506 = vunpack.c.l.b16 %v3804
        %v4507 = vunpack.c.h.b16 %v3804
        %v4508 = vunpack.c.l.b16 %v3805
        %v4509 = vunpack.c.h.b16 %v3805
        %v4510 = vunpack.c.l.b16 %v3806
        %v4511 = vunpack.c.h.b16 %v3806
        %v4512 = vunpack.c.l.b16 %v3807
        %v4513 = vunpack.c.h.b16 %v3807
        %v4514 = vunpack.c.l.b16 %v3808
        %v4515 = vunpack.c.h.b16 %v3808
        %v4516 = vunpack.c.l.b16 %v3809
        %v4517 = vunpack.c.h.b16 %v3809
        %v4518 = vunpack.c.l.b16 %v3810
        %v4519 = vunpack.c.h.b16 %v3810
        %v4520 = vunpack.c.l.b16 %v3811
        %v4521 = vunpack.c.h.b16 %v3811
        %v4522 = vunpack.c.l.b16 %v3812
        %v4523 = vunpack.c.h.b16 %v3812
        %v4524 = vunpack.c.l.b16 %v3813
        %v4525 = vunpack.c.h.b16 %v3813
        %v4526 = vunpack.c.l.b16 %v3814
        %v4527 = vunpack.c.h.b16 %v3814
        %v4528 = vunpack.c.l.b16 %v3815
        %v4529 = vunpack.c.h.b16 %v3815
        %v4530 = vunpack.c.l.b16 %v3816
        %v4531 = vunpack.c.h.b16 %v3816
        %v4532 = vunpack.c.l.b16 %v3817
        %v4533 = vunpack.c.h.b16 %v3817
        %v4534 = vunpack.c.l.b16 %v3818
        %v4535 = vunpack.c.h.b16 %v3818
        %v4536 = vunpack.c.l.b16 %v3819
        %v4537 = vunpack.c.h.b16 %v3819
        %v4538 = vunpack.c.l.b16 %v3820
        %v4539 = vunpack.c.h.b16 %v3820
        %v4540 = vunpack.c.l.b16 %v3821
        %v4541 = vunpack.c.h.b16 %v3821
        %v4542 = vunpack.c.l.b16 %v3822
        %v4543 = vunpack.c.h.b16 %v3822
        %v4544 = vunpack.c.l.b16 %v3823
        %v4545 = vunpack.c.h.b16 %v3823
        %v4546 = vunpack.c.l.b16 %v3824
        %v4547 = vunpack.c.h.b16 %v3824
        %v4548 = vunpack.c.l.b16 %v3825
        %v4549 = vunpack.c.h.b16 %v3825
        %v4550 = vunpack.c.l.b16 %v3826
        %v4551 = vunpack.c.h.b16 %v3826
        %v4552 = vunpack.c.l.b16 %v3827
        %v4553 = vunpack.c.h.b16 %v3827
        %v4554 = vunpack.c.l.b16 %v3828
        %v4555 = vunpack.c.h.b16 %v3828
        %v4556 = vunpack.c.l.b16 %v3829
        %v4557 = vunpack.c.h.b16 %v3829
        %v4558 = vunpack.c.l.b16 %v3830
        %v4559 = vunpack.c.h.b16 %v3830
        %v4560 = vunpack.c.l.b16 %v3831
        %v4561 = vunpack.c.h.b16 %v3831
        %v4562 = vunpack.c.l.b16 %v3832
        %v4563 = vunpack.c.h.b16 %v3832
        %v4564 = vunpack.c.l.b16 %v3833
        %v4565 = vunpack.c.h.b16 %v3833
        %v4566 = vunpack.c.l.b16 %v3834
        %v4567 = vunpack.c.h.b16 %v3834
        %v4568 = vunpack.c.l.b16 %v3835
        %v4569 = vunpack.c.h.b16 %v3835
        %v4570 = vunpack.c.l.b16 %v3836
        %v4571 = vunpack.c.h.b16 %v3836
        %v4572 = vunpack.c.l.b16 %v3837
        %v4573 = vunpack.c.h.b16 %v3837
        %v4574 = vunpack.c.l.b16 %v3838
        %v4575 = vunpack.c.h.b16 %v3838
        %v4576 = vunpack.c.l.b16 %v3839
        %v4577 = vunpack.c.h.b16 %v3839
        %v4578 = vunpack.c.l.b16 %v3840
        %v4579 = vunpack.c.h.b16 %v3840
        %v4580 = vunpack.c.l.b16 %v3841
        %v4581 = vunpack.c.h.b16 %v3841
        %v4582 = vunpack.c.l.b16 %v3842
        %v4583 = vunpack.c.h.b16 %v3842
        %v4584 = vunpack.c.l.b16 %v3843
        %v4585 = vunpack.c.h.b16 %v3843
        %v4586 = vunpack.c.l.b16 %v3844
        %v4587 = vunpack.c.h.b16 %v3844
        %v4588 = vunpack.c.l.b16 %v3845
        %v4589 = vunpack.c.h.b16 %v3845
        %v4590 = vunpack.c.l.b16 %v3846
        %v4591 = vunpack.c.h.b16 %v3846
        %v4592 = vunpack.c.l.b16 %v3847
        %v4593 = vunpack.c.h.b16 %v3847
        %v4594 = vunpack.c.l.b16 %v3848
        %v4595 = vunpack.c.h.b16 %v3848
        %v4596 = vunpack.c.l.b16 %v3849
        %v4597 = vunpack.c.h.b16 %v3849
        %v4598 = vunpack.c.l.b16 %v3850
        %v4599 = vunpack.c.h.b16 %v3850
        %v4600 = vunpack.c.l.b16 %v3851
        %v4601 = vunpack.c.h.b16 %v3851
        %v4602 = vunpack.c.l.b16 %v3852
        %v4603 = vunpack.c.h.b16 %v3852
        %v4604 = vunpack.c.l.b16 %v3853
        %v4605 = vunpack.c.h.b16 %v3853
        %v4606 = vunpack.c.l.b16 %v3854
        %v4607 = vunpack.c.h.b16 %v3854
        %v4608 = vunpack.c.l.b16 %v3855
        %v4609 = vunpack.c.h.b16 %v3855
        %v4610 = vunpack.c.l.b16 %v3856
        %v4611 = vunpack.c.h.b16 %v3856
        %v4612 = vunpack.c.l.b16 %v3857
        %v4613 = vunpack.c.h.b16 %v3857
        %v4614 = vunpack.c.l.b16 %v3858
        %v4615 = vunpack.c.h.b16 %v3858
        %v4616 = vunpack.c.l.b16 %v3859
        %v4617 = vunpack.c.h.b16 %v3859
        %v4618 = vunpack.c.l.b16 %v3860
        %v4619 = vunpack.c.h.b16 %v3860
        %v4620 = vunpack.c.l.b16 %v3861
        %v4621 = vunpack.c.h.b16 %v3861
        %v4622 = vunpack.c.l.b16 %v3862
        %v4623 = vunpack.c.h.b16 %v3862
        %v4624 = vunpack.c.l.b16 %v3863
        %v4625 = vunpack.c.h.b16 %v3863
        %v4626 = vunpack.c.l.b16 %v3864
        %v4627 = vunpack.c.h.b16 %v3864
        %v4628 = vunpack.c.l.b16 %v3865
        %v4629 = vunpack.c.h.b16 %v3865
        %v4630 = vunpack.c.l.b16 %v3866
        %v4631 = vunpack.c.h.b16 %v3866
        %v4632 = vunpack.c.l.b16 %v3867
        %v4633 = vunpack.c.h.b16 %v3867
        %v4634 = vunpack.c.l.b16 %v3868
        %v4635 = vunpack.c.h.b16 %v3868
        %v4636 = vunpack.c.l.b16 %v3869
        %v4637 = vunpack.c.h.b16 %v3869
        %v4638 = vpack.c.b16 %v4130, %v4126
        %v4639 = vpack.c.b16 %v4131, %v4127
        %v4640 = vpack.c.b16 %v4132, %v4128
        %v4641 = vpack.c.b16 %v4133, %v4129
        %v4642 = vpack.c.b16 %v4138, %v4134
        %v4643 = vpack.c.b16 %v4139, %v4135
        %v4644 = vpack.c.b16 %v4140, %v4136
        %v4645 = vpack.c.b16 %v4141, %v4137
        %v4646 = vpack.c.b16 %v4146, %v4142
        %v4647 = vpack.c.b16 %v4147, %v4143
        %v4648 = vpack.c.b16 %v4148, %v4144
        %v4649 = vpack.c.b16 %v4149, %v4145
        %v4650 = vpack.c.b16 %v4154, %v4150
        %v4651 = vpack.c.b16 %v4155, %v4151
        %v4652 = vpack.c.b16 %v4156, %v4152
        %v4653 = vpack.c.b16 %v4157, %v4153
        %v4654 = vpack.c.b16 %v4162, %v4158
        %v4655 = vpack.c.b16 %v4163, %v4159
        %v4656 = vpack.c.b16 %v4164, %v4160
        %v4657 = vpack.c.b16 %v4165, %v4161
        %v4658 = vpack.c.b16 %v4170, %v4166
        %v4659 = vpack.c.b16 %v4171, %v4167
        %v4660 = vpack.c.b16 %v4172, %v4168
        %v4661 = vpack.c.b16 %v4173, %v4169
        %v4662 = vpack.c.b16 %v4178, %v4174
        %v4663 = vpack.c.b16 %v4179, %v4175
        %v4664 = vpack.c.b16 %v4180, %v4176
        %v4665 = vpack.c.b16 %v4181, %v4177
        %v4666 = vpack.c.b16 %v4186, %v4182
        %v4667 = vpack.c.b16 %v4187, %v4183
        %v4668 = vpack.c.b16 %v4188, %v4184
        %v4669 = vpack.c.b16 %v4189, %v4185
        %v4670 = vpack.c.b16 %v4194, %v4190
        %v4671 = vpack.c.b16 %v4195, %v4191
        %v4672 = vpack.c.b16 %v4196, %v4192
        %v4673 = vpack.c.b16 %v4197, %v4193
        %v4674 = vpack.c.b16 %v4202, %v4198
        %v4675 = vpack.c.b16 %v4203, %v4199
        %v4676 = vpack.c.b16 %v4204, %v4200
        %v4677 = vpack.c.b16 %v4205, %v4201
        %v4678 = vpack.c.b16 %v4210, %v4206
        %v4679 = vpack.c.b16 %v4211, %v4207
        %v4680 = vpack.c.b16 %v4212, %v4208
        %v4681 = vpack.c.b16 %v4213, %v4209
        %v4682 = vpack.c.b16 %v4218, %v4214
        %v4683 = vpack.c.b16 %v4219, %v4215
        %v4684 = vpack.c.b16 %v4220, %v4216
        %v4685 = vpack.c.b16 %v4221, %v4217
        %v4686 = vpack.c.b16 %v4226, %v4222
        %v4687 = vpack.c.b16 %v4227, %v4223
        %v4688 = vpack.c.b16 %v4228, %v4224
        %v4689 = vpack.c.b16 %v4229, %v4225
        %v4690 = vpack.c.b16 %v4234, %v4230
        %v4691 = vpack.c.b16 %v4235, %v4231
        %v4692 = vpack.c.b16 %v4236, %v4232
        %v4693 = vpack.c.b16 %v4237, %v4233
        %v4694 = vpack.c.b16 %v4242, %v4238
        %v4695 = vpack.c.b16 %v4243, %v4239
        %v4696 = vpack.c.b16 %v4244, %v4240
        %v4697 = vpack.c.b16 %v4245, %v4241
        %v4698 = vpack.c.b16 %v4250, %v4246
        %v4699 = vpack.c.b16 %v4251, %v4247
        %v4700 = vpack.c.b16 %v4252, %v4248
        %v4701 = vpack.c.b16 %v4253, %v4249
        %v4702 = vpack.c.b16 %v4258, %v4254
        %v4703 = vpack.c.b16 %v4259, %v4255
        %v4704 = vpack.c.b16 %v4260, %v4256
        %v4705 = vpack.c.b16 %v4261, %v4257
        %v4706 = vpack.c.b16 %v4266, %v4262
        %v4707 = vpack.c.b16 %v4267, %v4263
        %v4708 = vpack.c.b16 %v4268, %v4264
        %v4709 = vpack.c.b16 %v4269, %v4265
        %v4710 = vpack.c.b16 %v4274, %v4270
        %v4711 = vpack.c.b16 %v4275, %v4271
        %v4712 = vpack.c.b16 %v4276, %v4272
        %v4713 = vpack.c.b16 %v4277, %v4273
        %v4714 = vpack.c.b16 %v4282, %v4278
        %v4715 = vpack.c.b16 %v4283, %v4279
        %v4716 = vpack.c.b16 %v4284, %v4280
        %v4717 = vpack.c.b16 %v4285, %v4281
        %v4718 = vpack.c.b16 %v4290, %v4286
        %v4719 = vpack.c.b16 %v4291, %v4287
        %v4720 = vpack.c.b16 %v4292, %v4288
        %v4721 = vpack.c.b16 %v4293, %v4289
        %v4722 = vpack.c.b16 %v4298, %v4294
        %v4723 = vpack.c.b16 %v4299, %v4295
        %v4724 = vpack.c.b16 %v4300, %v4296
        %v4725 = vpack.c.b16 %v4301, %v4297
        %v4726 = vpack.c.b16 %v4306, %v4302
        %v4727 = vpack.c.b16 %v4307, %v4303
        %v4728 = vpack.c.b16 %v4308, %v4304
        %v4729 = vpack.c.b16 %v4309, %v4305
        %v4730 = vpack.c.b16 %v4314, %v4310
        %v4731 = vpack.c.b16 %v4315, %v4311
        %v4732 = vpack.c.b16 %v4316, %v4312
        %v4733 = vpack.c.b16 %v4317, %v4313
        %v4734 = vpack.c.b16 %v4322, %v4318
        %v4735 = vpack.c.b16 %v4323, %v4319
        %v4736 = vpack.c.b16 %v4324, %v4320
        %v4737 = vpack.c.b16 %v4325, %v4321
        %v4738 = vpack.c.b16 %v4330, %v4326
        %v4739 = vpack.c.b16 %v4331, %v4327
        %v4740 = vpack.c.b16 %v4332, %v4328
        %v4741 = vpack.c.b16 %v4333, %v4329
        %v4742 = vpack.c.b16 %v4338, %v4334
        %v4743 = vpack.c.b16 %v4339, %v4335
        %v4744 = vpack.c.b16 %v4340, %v4336
        %v4745 = vpack.c.b16 %v4341, %v4337
        %v4746 = vpack.c.b16 %v4346, %v4342
        %v4747 = vpack.c.b16 %v4347, %v4343
        %v4748 = vpack.c.b16 %v4348, %v4344
        %v4749 = vpack.c.b16 %v4349, %v4345
        %v4750 = vpack.c.b16 %v4354, %v4350
        %v4751 = vpack.c.b16 %v4355, %v4351
        %v4752 = vpack.c.b16 %v4356, %v4352
        %v4753 = vpack.c.b16 %v4357, %v4353
        %v4754 = vpack.c.b16 %v4362, %v4358
        %v4755 = vpack.c.b16 %v4363, %v4359
        %v4756 = vpack.c.b16 %v4364, %v4360
        %v4757 = vpack.c.b16 %v4365, %v4361
        %v4758 = vpack.c.b16 %v4370, %v4366
        %v4759 = vpack.c.b16 %v4371, %v4367
        %v4760 = vpack.c.b16 %v4372, %v4368
        %v4761 = vpack.c.b16 %v4373, %v4369
        %v4762 = vpack.c.b16 %v4378, %v4374
        %v4763 = vpack.c.b16 %v4379, %v4375
        %v4764 = vpack.c.b16 %v4380, %v4376
        %v4765 = vpack.c.b16 %v4381, %v4377
        %v4766 = vpack.c.b16 %v4386, %v4382
        %v4767 = vpack.c.b16 %v4387, %v4383
        %v4768 = vpack.c.b16 %v4388, %v4384
        %v4769 = vpack.c.b16 %v4389, %v4385
        %v4770 = vpack.c.b16 %v4394, %v4390
        %v4771 = vpack.c.b16 %v4395, %v4391
        %v4772 = vpack.c.b16 %v4396, %v4392
        %v4773 = vpack.c.b16 %v4397, %v4393
        %v4774 = vpack.c.b16 %v4402, %v4398
        %v4775 = vpack.c.b16 %v4403, %v4399
        %v4776 = vpack.c.b16 %v4404, %v4400
        %v4777 = vpack.c.b16 %v4405, %v4401
        %v4778 = vpack.c.b16 %v4410, %v4406
        %v4779 = vpack.c.b16 %v4411, %v4407
        %v4780 = vpack.c.b16 %v4412, %v4408
        %v4781 = vpack.c.b16 %v4413, %v4409
        %v4782 = vpack.c.b16 %v4418, %v4414
        %v4783 = vpack.c.b16 %v4419, %v4415
        %v4784 = vpack.c.b16 %v4420, %v4416
        %v4785 = vpack.c.b16 %v4421, %v4417
        %v4786 = vpack.c.b16 %v4426, %v4422
        %v4787 = vpack.c.b16 %v4427, %v4423
        %v4788 = vpack.c.b16 %v4428, %v4424
        %v4789 = vpack.c.b16 %v4429, %v4425
        %v4790 = vpack.c.b16 %v4434, %v4430
        %v4791 = vpack.c.b16 %v4435, %v4431
        %v4792 = vpack.c.b16 %v4436, %v4432
        %v4793 = vpack.c.b16 %v4437, %v4433
        %v4794 = vpack.c.b16 %v4442, %v4438
        %v4795 = vpack.c.b16 %v4443, %v4439
        %v4796 = vpack.c.b16 %v4444, %v4440
        %v4797 = vpack.c.b16 %v4445, %v4441
        %v4798 = vpack.c.b16 %v4450, %v4446
        %v4799 = vpack.c.b16 %v4451, %v4447
        %v4800 = vpack.c.b16 %v4452, %v4448
        %v4801 = vpack.c.b16 %v4453, %v4449
        %v4802 = vpack.c.b16 %v4458, %v4454
        %v4803 = vpack.c.b16 %v4459, %v4455
        %v4804 = vpack.c.b16 %v4460, %v4456
        %v4805 = vpack.c.b16 %v4461, %v4457
        %v4806 = vpack.c.b16 %v4466, %v4462
        %v4807 = vpack.c.b16 %v4467, %v4463
        %v4808 = vpack.c.b16 %v4468, %v4464
        %v4809 = vpack.c.b16 %v4469, %v4465
        %v4810 = vpack.c.b16 %v4474, %v4470
        %v4811 = vpack.c.b16 %v4475, %v4471
        %v4812 = vpack.c.b16 %v4476, %v4472
        %v4813 = vpack.c.b16 %v4477, %v4473
        %v4814 = vpack.c.b16 %v4482, %v4478
        %v4815 = vpack.c.b16 %v4483, %v4479
        %v4816 = vpack.c.b16 %v4484, %v4480
        %v4817 = vpack.c.b16 %v4485, %v4481
        %v4818 = vpack.c.b16 %v4490, %v4486
        %v4819 = vpack.c.b16 %v4491, %v4487
        %v4820 = vpack.c.b16 %v4492, %v4488
        %v4821 = vpack.c.b16 %v4493, %v4489
        %v4822 = vpack.c.b16 %v4498, %v4494
        %v4823 = vpack.c.b16 %v4499, %v4495
        %v4824 = vpack.c.b16 %v4500, %v4496
        %v4825 = vpack.c.b16 %v4501, %v4497
        %v4826 = vpack.c.b16 %v4506, %v4502
        %v4827 = vpack.c.b16 %v4507, %v4503
        %v4828 = vpack.c.b16 %v4508, %v4504
        %v4829 = vpack.c.b16 %v4509, %v4505
        %v4830 = vpack.c.b16 %v4514, %v4510
        %v4831 = vpack.c.b16 %v4515, %v4511
        %v4832 = vpack.c.b16 %v4516, %v4512
        %v4833 = vpack.c.b16 %v4517, %v4513
        %v4834 = vpack.c.b16 %v4522, %v4518
        %v4835 = vpack.c.b16 %v4523, %v4519
        %v4836 = vpack.c.b16 %v4524, %v4520
        %v4837 = vpack.c.b16 %v4525, %v4521
        %v4838 = vpack.c.b16 %v4530, %v4526
        %v4839 = vpack.c.b16 %v4531, %v4527
        %v4840 = vpack.c.b16 %v4532, %v4528
        %v4841 = vpack.c.b16 %v4533, %v4529
        %v4842 = vpack.c.b16 %v4538, %v4534
        %v4843 = vpack.c.b16 %v4539, %v4535
        %v4844 = vpack.c.b16 %v4540, %v4536
        %v4845 = vpack.c.b16 %v4541, %v4537
        %v4846 = vpack.c.b16 %v4546, %v4542
        %v4847 = vpack.c.b16 %v4547, %v4543
        %v4848 = vpack.c.b16 %v4548, %v4544
        %v4849 = vpack.c.b16 %v4549, %v4545
        %v4850 = vpack.c.b16 %v4554, %v4550
        %v4851 = vpack.c.b16 %v4555, %v4551
        %v4852 = vpack.c.b16 %v4556, %v4552
        %v4853 = vpack.c.b16 %v4557, %v4553
        %v4854 = vpack.c.b16 %v4562, %v4558
        %v4855 = vpack.c.b16 %v4563, %v4559
        %v4856 = vpack.c.b16 %v4564, %v4560
        %v4857 = vpack.c.b16 %v4565, %v4561
        %v4858 = vpack.c.b16 %v4570, %v4566
        %v4859 = vpack.c.b16 %v4571, %v4567
        %v4860 = vpack.c.b16 %v4572, %v4568
        %v4861 = vpack.c.b16 %v4573, %v4569
        %v4862 = vpack.c.b16 %v4578, %v4574
        %v4863 = vpack.c.b16 %v4579, %v4575
        %v4864 = vpack.c.b16 %v4580, %v4576
        %v4865 = vpack.c.b16 %v4581, %v4577
        %v4866 = vpack.c.b16 %v4586, %v4582
        %v4867 = vpack.c.b16 %v4587, %v4583
        %v4868 = vpack.c.b16 %v4588, %v4584
        %v4869 = vpack.c.b16 %v4589, %v4585
        %v4870 = vpack.c.b16 %v4594, %v4590
        %v4871 = vpack.c.b16 %v4595, %v4591
        %v4872 = vpack.c.b16 %v4596, %v4592
        %v4873 = vpack.c.b16 %v4597, %v4593
        %v4874 = vpack.c.b16 %v4602, %v4598
        %v4875 = vpack.c.b16 %v4603, %v4599
        %v4876 = vpack.c.b16 %v4604, %v4600
        %v4877 = vpack.c.b16 %v4605, %v4601
        %v4878 = vpack.c.b16 %v4610, %v4606
        %v4879 = vpack.c.b16 %v4611, %v4607
        %v4880 = vpack.c.b16 %v4612, %v4608
        %v4881 = vpack.c.b16 %v4613, %v4609
        %v4882 = vpack.c.b16 %v4618, %v4614
        %v4883 = vpack.c.b16 %v4619, %v4615
        %v4884 = vpack.c.b16 %v4620, %v4616
        %v4885 = vpack.c.b16 %v4621, %v4617
        %v4886 = vpack.c.b16 %v4626, %v4622
        %v4887 = vpack.c.b16 %v4627, %v4623
        %v4888 = vpack.c.b16 %v4628, %v4624
        %v4889 = vpack.c.b16 %v4629, %v4625
        %v4890 = vpack.c.b16 %v4634, %v4630
        %v4891 = vpack.c.b16 %v4635, %v4631
        %v4892 = vpack.c.b16 %v4636, %v4632
        %v4893 = vpack.c.b16 %v4637, %v4633
        %5150 = vmatpush.bf16.msra.mxu0 %v4666
        %5151 = vmatpush.bf16.msra.mxu0 %v4662
        %5152 = vmatpush.bf16.msra.mxu0 %v4658
        %5153 = vmatpush.bf16.msra.mxu0 %v4654
        %5154 = vmatpush.bf16.msra.mxu0 %v4650
        %5155 = vmatpush.bf16.msra.mxu0 %v4646
        %5156 = vmatpush.bf16.msra.mxu0 %v4642
        %5157 = vmatpush.bf16.msra.mxu0 %v4638
        %5158 = vmatmul.bf16.gmra.mxu0 %v3606
        %v5159 = vpop.f32.mrf.mxu0
        %v5160 = vadd.f32 0.0, %v5159
        %v5161 = vpop.f32.mrf.mxu0
        %5162 = vdwg.mxu0
        %5163 = vmatpush.bf16.msra.mxu0 %v4698
        %5164 = vmatpush.bf16.msra.mxu0 %v4694
        %5165 = vmatpush.bf16.msra.mxu0 %v4690
        %5166 = vmatpush.bf16.msra.mxu0 %v4686
        %5167 = vmatpush.bf16.msra.mxu0 %v4682
        %5168 = vmatpush.bf16.msra.mxu0 %v4678
        %5169 = vmatpush.bf16.msra.mxu0 %v4674
        %5170 = vmatpush.bf16.msra.mxu0 %v4670
        %5171 = vmatmul.bf16.gmra.mxu0 %v3607
        %v5172 = vpop.f32.mrf.mxu0
        %v5173 = vadd.f32 %v5160, %v5172
        %v5174 = vpop.f32.mrf.mxu0
        %5175 = vdwg.mxu0
        %5176 = vmatpush.bf16.msra.mxu0 %v4730
        %5177 = vmatpush.bf16.msra.mxu0 %v4726
        %5178 = vmatpush.bf16.msra.mxu0 %v4722
        %5179 = vmatpush.bf16.msra.mxu0 %v4718
        %5180 = vmatpush.bf16.msra.mxu0 %v4714
        %5181 = vmatpush.bf16.msra.mxu0 %v4710
        %5182 = vmatpush.bf16.msra.mxu0 %v4706
        %5183 = vmatpush.bf16.msra.mxu0 %v4702
        %5184 = vmatmul.bf16.gmra.mxu0 %v3608
        %v5185 = vpop.f32.mrf.mxu0
        %v5186 = vadd.f32 %v5173, %v5185
        %v5187 = vpop.f32.mrf.mxu0
        %5188 = vdwg.mxu0
        %5189 = vmatpush.bf16.msra.mxu0 %v4762
        %5190 = vmatpush.bf16.msra.mxu0 %v4758
        %5191 = vmatpush.bf16.msra.mxu0 %v4754
        %5192 = vmatpush.bf16.msra.mxu0 %v4750
        %5193 = vmatpush.bf16.msra.mxu0 %v4746
        %5194 = vmatpush.bf16.msra.mxu0 %v4742
        %5195 = vmatpush.bf16.msra.mxu0 %v4738
        %5196 = vmatpush.bf16.msra.mxu0 %v4734
        %5197 = vmatmul.bf16.gmra.mxu0 %v3609
        %v5198 = vpop.f32.mrf.mxu0
        %v5199 = vadd.f32 %v5186, %v5198
        %v5200 = vpop.f32.mrf.mxu0
        %5201 = vdwg.mxu0
        %5202 = vmatpush.bf16.msra.mxu0 %v4794
        %5203 = vmatpush.bf16.msra.mxu0 %v4790
        %5204 = vmatpush.bf16.msra.mxu0 %v4786
        %5205 = vmatpush.bf16.msra.mxu0 %v4782
        %5206 = vmatpush.bf16.msra.mxu0 %v4778
        %5207 = vmatpush.bf16.msra.mxu0 %v4774
        %5208 = vmatpush.bf16.msra.mxu0 %v4770
        %5209 = vmatpush.bf16.msra.mxu0 %v4766
        %5210 = vmatmul.bf16.gmra.mxu0 %v3610
        %v5211 = vpop.f32.mrf.mxu0
        %v5212 = vadd.f32 %v5199, %v5211
        %v5213 = vpop.f32.mrf.mxu0
        %5214 = vdwg.mxu0
        %5215 = vmatpush.bf16.msra.mxu0 %v4826
        %5216 = vmatpush.bf16.msra.mxu0 %v4822
        %5217 = vmatpush.bf16.msra.mxu0 %v4818
        %5218 = vmatpush.bf16.msra.mxu0 %v4814
        %5219 = vmatpush.bf16.msra.mxu0 %v4810
        %5220 = vmatpush.bf16.msra.mxu0 %v4806
        %5221 = vmatpush.bf16.msra.mxu0 %v4802
        %5222 = vmatpush.bf16.msra.mxu0 %v4798
        %5223 = vmatmul.bf16.gmra.mxu0 %v3611
        %v5224 = vpop.f32.mrf.mxu0
        %v5225 = vadd.f32 %v5212, %v5224
        %v5226 = vpop.f32.mrf.mxu0
        %5227 = vdwg.mxu0
        %5228 = vmatpush.bf16.msra.mxu0 %v4858
        %5229 = vmatpush.bf16.msra.mxu0 %v4854
        %5230 = vmatpush.bf16.msra.mxu0 %v4850
        %5231 = vmatpush.bf16.msra.mxu0 %v4846
        %5232 = vmatpush.bf16.msra.mxu0 %v4842
        %5233 = vmatpush.bf16.msra.mxu0 %v4838
        %5234 = vmatpush.bf16.msra.mxu0 %v4834
        %5235 = vmatpush.bf16.msra.mxu0 %v4830
        %5236 = vmatmul.bf16.gmra.mxu0 %v3612
        %v5237 = vpop.f32.mrf.mxu0
        %v5238 = vadd.f32 %v5225, %v5237
        %v5239 = vpop.f32.mrf.mxu0
        %5240 = vdwg.mxu0
        %5241 = vmatpush.bf16.msra.mxu0 %v4890
        %5242 = vmatpush.bf16.msra.mxu0 %v4886
        %5243 = vmatpush.bf16.msra.mxu0 %v4882
        %5244 = vmatpush.bf16.msra.mxu0 %v4878
        %5245 = vmatpush.bf16.msra.mxu0 %v4874
        %5246 = vmatpush.bf16.msra.mxu0 %v4870
        %5247 = vmatpush.bf16.msra.mxu0 %v4866
        %5248 = vmatpush.bf16.msra.mxu0 %v4862
        %5249 = vmatmul.bf16.gmra.mxu0 %v3613
        %v5250 = vpop.f32.mrf.mxu0
        %v5251 = vadd.f32 %v5238, %v5250
        %v5252 = vpop.f32.mrf.mxu0
        %5253 = vdwg.mxu0
        %5254 = vmatpush.bf16.msra.mxu0 %v4667
        %5255 = vmatpush.bf16.msra.mxu0 %v4663
        %5256 = vmatpush.bf16.msra.mxu0 %v4659
        %5257 = vmatpush.bf16.msra.mxu0 %v4655
        %5258 = vmatpush.bf16.msra.mxu0 %v4651
        %5259 = vmatpush.bf16.msra.mxu0 %v4647
        %5260 = vmatpush.bf16.msra.mxu0 %v4643
        %5261 = vmatpush.bf16.msra.mxu0 %v4639
        %5262 = vmatmul.bf16.gmra.mxu0 %v3606
        %v5263 = vpop.f32.mrf.mxu0
        %v5264 = vadd.f32 0.0, %v5263
        %v5265 = vpop.f32.mrf.mxu0
        %5266 = vdwg.mxu0
        %5267 = vmatpush.bf16.msra.mxu0 %v4699
        %5268 = vmatpush.bf16.msra.mxu0 %v4695
        %5269 = vmatpush.bf16.msra.mxu0 %v4691
        %5270 = vmatpush.bf16.msra.mxu0 %v4687
        %5271 = vmatpush.bf16.msra.mxu0 %v4683
        %5272 = vmatpush.bf16.msra.mxu0 %v4679
        %5273 = vmatpush.bf16.msra.mxu0 %v4675
        %5274 = vmatpush.bf16.msra.mxu0 %v4671
        %5275 = vmatmul.bf16.gmra.mxu0 %v3607
        %v5276 = vpop.f32.mrf.mxu0
        %v5277 = vadd.f32 %v5264, %v5276
        %v5278 = vpop.f32.mrf.mxu0
        %5279 = vdwg.mxu0
        %5280 = vmatpush.bf16.msra.mxu0 %v4731
        %5281 = vmatpush.bf16.msra.mxu0 %v4727
        %5282 = vmatpush.bf16.msra.mxu0 %v4723
        %5283 = vmatpush.bf16.msra.mxu0 %v4719
        %5284 = vmatpush.bf16.msra.mxu0 %v4715
        %5285 = vmatpush.bf16.msra.mxu0 %v4711
        %5286 = vmatpush.bf16.msra.mxu0 %v4707
        %5287 = vmatpush.bf16.msra.mxu0 %v4703
        %5288 = vmatmul.bf16.gmra.mxu0 %v3608
        %v5289 = vpop.f32.mrf.mxu0
        %v5290 = vadd.f32 %v5277, %v5289
        %v5291 = vpop.f32.mrf.mxu0
        %5292 = vdwg.mxu0
        %5293 = vmatpush.bf16.msra.mxu0 %v4763
        %5294 = vmatpush.bf16.msra.mxu0 %v4759
        %5295 = vmatpush.bf16.msra.mxu0 %v4755
        %5296 = vmatpush.bf16.msra.mxu0 %v4751
        %5297 = vmatpush.bf16.msra.mxu0 %v4747
        %5298 = vmatpush.bf16.msra.mxu0 %v4743
        %5299 = vmatpush.bf16.msra.mxu0 %v4739
        %5300 = vmatpush.bf16.msra.mxu0 %v4735
        %5301 = vmatmul.bf16.gmra.mxu0 %v3609
        %v5302 = vpop.f32.mrf.mxu0
        %v5303 = vadd.f32 %v5290, %v5302
        %v5304 = vpop.f32.mrf.mxu0
        %5305 = vdwg.mxu0
        %5306 = vmatpush.bf16.msra.mxu0 %v4795
        %5307 = vmatpush.bf16.msra.mxu0 %v4791
        %5308 = vmatpush.bf16.msra.mxu0 %v4787
        %5309 = vmatpush.bf16.msra.mxu0 %v4783
        %5310 = vmatpush.bf16.msra.mxu0 %v4779
        %5311 = vmatpush.bf16.msra.mxu0 %v4775
        %5312 = vmatpush.bf16.msra.mxu0 %v4771
        %5313 = vmatpush.bf16.msra.mxu0 %v4767
        %5314 = vmatmul.bf16.gmra.mxu0 %v3610
        %v5315 = vpop.f32.mrf.mxu0
        %v5316 = vadd.f32 %v5303, %v5315
        %v5317 = vpop.f32.mrf.mxu0
        %5318 = vdwg.mxu0
        %5319 = vmatpush.bf16.msra.mxu0 %v4827
        %5320 = vmatpush.bf16.msra.mxu0 %v4823
        %5321 = vmatpush.bf16.msra.mxu0 %v4819
        %5322 = vmatpush.bf16.msra.mxu0 %v4815
        %5323 = vmatpush.bf16.msra.mxu0 %v4811
        %5324 = vmatpush.bf16.msra.mxu0 %v4807
        %5325 = vmatpush.bf16.msra.mxu0 %v4803
        %5326 = vmatpush.bf16.msra.mxu0 %v4799
        %5327 = vmatmul.bf16.gmra.mxu0 %v3611
        %v5328 = vpop.f32.mrf.mxu0
        %v5329 = vadd.f32 %v5316, %v5328
        %v5330 = vpop.f32.mrf.mxu0
        %5331 = vdwg.mxu0
        %5332 = vmatpush.bf16.msra.mxu0 %v4859
        %5333 = vmatpush.bf16.msra.mxu0 %v4855
        %5334 = vmatpush.bf16.msra.mxu0 %v4851
        %5335 = vmatpush.bf16.msra.mxu0 %v4847
        %5336 = vmatpush.bf16.msra.mxu0 %v4843
        %5337 = vmatpush.bf16.msra.mxu0 %v4839
        %5338 = vmatpush.bf16.msra.mxu0 %v4835
        %5339 = vmatpush.bf16.msra.mxu0 %v4831
        %5340 = vmatmul.bf16.gmra.mxu0 %v3612
        %v5341 = vpop.f32.mrf.mxu0
        %v5342 = vadd.f32 %v5329, %v5341
        %v5343 = vpop.f32.mrf.mxu0
        %5344 = vdwg.mxu0
        %5345 = vmatpush.bf16.msra.mxu0 %v4891
        %5346 = vmatpush.bf16.msra.mxu0 %v4887
        %5347 = vmatpush.bf16.msra.mxu0 %v4883
        %5348 = vmatpush.bf16.msra.mxu0 %v4879
        %5349 = vmatpush.bf16.msra.mxu0 %v4875
        %5350 = vmatpush.bf16.msra.mxu0 %v4871
        %5351 = vmatpush.bf16.msra.mxu0 %v4867
        %5352 = vmatpush.bf16.msra.mxu0 %v4863
        %5353 = vmatmul.bf16.gmra.mxu0 %v3613
        %v5354 = vpop.f32.mrf.mxu0
        %v5355 = vadd.f32 %v5342, %v5354
        %v5356 = vpop.f32.mrf.mxu0
        %5357 = vdwg.mxu0
        %5358 = vmatpush.bf16.msra.mxu0 %v4668
        %5359 = vmatpush.bf16.msra.mxu0 %v4664
        %5360 = vmatpush.bf16.msra.mxu0 %v4660
        %5361 = vmatpush.bf16.msra.mxu0 %v4656
        %5362 = vmatpush.bf16.msra.mxu0 %v4652
        %5363 = vmatpush.bf16.msra.mxu0 %v4648
        %5364 = vmatpush.bf16.msra.mxu0 %v4644
        %5365 = vmatpush.bf16.msra.mxu0 %v4640
        %5366 = vmatmul.bf16.gmra.mxu0 %v3606
        %v5367 = vpop.f32.mrf.mxu0
        %v5368 = vadd.f32 0.0, %v5367
        %v5369 = vpop.f32.mrf.mxu0
        %5370 = vdwg.mxu0
        %5371 = vmatpush.bf16.msra.mxu0 %v4700
        %5372 = vmatpush.bf16.msra.mxu0 %v4696
        %5373 = vmatpush.bf16.msra.mxu0 %v4692
        %5374 = vmatpush.bf16.msra.mxu0 %v4688
        %5375 = vmatpush.bf16.msra.mxu0 %v4684
        %5376 = vmatpush.bf16.msra.mxu0 %v4680
        %5377 = vmatpush.bf16.msra.mxu0 %v4676
        %5378 = vmatpush.bf16.msra.mxu0 %v4672
        %5379 = vmatmul.bf16.gmra.mxu0 %v3607
        %v5380 = vpop.f32.mrf.mxu0
        %v5381 = vadd.f32 %v5368, %v5380
        %v5382 = vpop.f32.mrf.mxu0
        %5383 = vdwg.mxu0
        %5384 = vmatpush.bf16.msra.mxu0 %v4732
        %5385 = vmatpush.bf16.msra.mxu0 %v4728
        %5386 = vmatpush.bf16.msra.mxu0 %v4724
        %5387 = vmatpush.bf16.msra.mxu0 %v4720
        %5388 = vmatpush.bf16.msra.mxu0 %v4716
        %5389 = vmatpush.bf16.msra.mxu0 %v4712
        %5390 = vmatpush.bf16.msra.mxu0 %v4708
        %5391 = vmatpush.bf16.msra.mxu0 %v4704
        %5392 = vmatmul.bf16.gmra.mxu0 %v3608
        %v5393 = vpop.f32.mrf.mxu0
        %v5394 = vadd.f32 %v5381, %v5393
        %v5395 = vpop.f32.mrf.mxu0
        %5396 = vdwg.mxu0
        %5397 = vmatpush.bf16.msra.mxu0 %v4764
        %5398 = vmatpush.bf16.msra.mxu0 %v4760
        %5399 = vmatpush.bf16.msra.mxu0 %v4756
        %5400 = vmatpush.bf16.msra.mxu0 %v4752
        %5401 = vmatpush.bf16.msra.mxu0 %v4748
        %5402 = vmatpush.bf16.msra.mxu0 %v4744
        %5403 = vmatpush.bf16.msra.mxu0 %v4740
        %5404 = vmatpush.bf16.msra.mxu0 %v4736
        %5405 = vmatmul.bf16.gmra.mxu0 %v3609
        %v5406 = vpop.f32.mrf.mxu0
        %v5407 = vadd.f32 %v5394, %v5406
        %v5408 = vpop.f32.mrf.mxu0
        %5409 = vdwg.mxu0
        %5410 = vmatpush.bf16.msra.mxu0 %v4796
        %5411 = vmatpush.bf16.msra.mxu0 %v4792
        %5412 = vmatpush.bf16.msra.mxu0 %v4788
        %5413 = vmatpush.bf16.msra.mxu0 %v4784
        %5414 = vmatpush.bf16.msra.mxu0 %v4780
        %5415 = vmatpush.bf16.msra.mxu0 %v4776
        %5416 = vmatpush.bf16.msra.mxu0 %v4772
        %5417 = vmatpush.bf16.msra.mxu0 %v4768
        %5418 = vmatmul.bf16.gmra.mxu0 %v3610
        %v5419 = vpop.f32.mrf.mxu0
        %v5420 = vadd.f32 %v5407, %v5419
        %v5421 = vpop.f32.mrf.mxu0
        %5422 = vdwg.mxu0
        %5423 = vmatpush.bf16.msra.mxu0 %v4828
        %5424 = vmatpush.bf16.msra.mxu0 %v4824
        %5425 = vmatpush.bf16.msra.mxu0 %v4820
        %5426 = vmatpush.bf16.msra.mxu0 %v4816
        %5427 = vmatpush.bf16.msra.mxu0 %v4812
        %5428 = vmatpush.bf16.msra.mxu0 %v4808
        %5429 = vmatpush.bf16.msra.mxu0 %v4804
        %5430 = vmatpush.bf16.msra.mxu0 %v4800
        %5431 = vmatmul.bf16.gmra.mxu0 %v3611
        %v5432 = vpop.f32.mrf.mxu0
        %v5433 = vadd.f32 %v5420, %v5432
        %v5434 = vpop.f32.mrf.mxu0
        %5435 = vdwg.mxu0
        %5436 = vmatpush.bf16.msra.mxu0 %v4860
        %5437 = vmatpush.bf16.msra.mxu0 %v4856
        %5438 = vmatpush.bf16.msra.mxu0 %v4852
        %5439 = vmatpush.bf16.msra.mxu0 %v4848
        %5440 = vmatpush.bf16.msra.mxu0 %v4844
        %5441 = vmatpush.bf16.msra.mxu0 %v4840
        %5442 = vmatpush.bf16.msra.mxu0 %v4836
        %5443 = vmatpush.bf16.msra.mxu0 %v4832
        %5444 = vmatmul.bf16.gmra.mxu0 %v3612
        %v5445 = vpop.f32.mrf.mxu0
        %v5446 = vadd.f32 %v5433, %v5445
        %v5447 = vpop.f32.mrf.mxu0
        %5448 = vdwg.mxu0
        %5449 = vmatpush.bf16.msra.mxu0 %v4892
        %5450 = vmatpush.bf16.msra.mxu0 %v4888
        %5451 = vmatpush.bf16.msra.mxu0 %v4884
        %5452 = vmatpush.bf16.msra.mxu0 %v4880
        %5453 = vmatpush.bf16.msra.mxu0 %v4876
        %5454 = vmatpush.bf16.msra.mxu0 %v4872
        %5455 = vmatpush.bf16.msra.mxu0 %v4868
        %5456 = vmatpush.bf16.msra.mxu0 %v4864
        %5457 = vmatmul.bf16.gmra.mxu0 %v3613
        %v5458 = vpop.f32.mrf.mxu0
        %v5459 = vadd.f32 %v5446, %v5458
        %v5460 = vpop.f32.mrf.mxu0
        %5461 = vdwg.mxu0
        %5462 = vmatpush.bf16.msra.mxu0 %v4669
        %5463 = vmatpush.bf16.msra.mxu0 %v4665
        %5464 = vmatpush.bf16.msra.mxu0 %v4661
        %5465 = vmatpush.bf16.msra.mxu0 %v4657
        %5466 = vmatpush.bf16.msra.mxu0 %v4653
        %5467 = vmatpush.bf16.msra.mxu0 %v4649
        %5468 = vmatpush.bf16.msra.mxu0 %v4645
        %5469 = vmatpush.bf16.msra.mxu0 %v4641
        %5470 = vmatmul.bf16.gmra.mxu0 %v3606
        %v5471 = vpop.f32.mrf.mxu0
        %v5472 = vadd.f32 0.0, %v5471
        %v5473 = vpop.f32.mrf.mxu0
        %5474 = vdwg.mxu0
        %5475 = vmatpush.bf16.msra.mxu0 %v4701
        %5476 = vmatpush.bf16.msra.mxu0 %v4697
        %5477 = vmatpush.bf16.msra.mxu0 %v4693
        %5478 = vmatpush.bf16.msra.mxu0 %v4689
        %5479 = vmatpush.bf16.msra.mxu0 %v4685
        %5480 = vmatpush.bf16.msra.mxu0 %v4681
        %5481 = vmatpush.bf16.msra.mxu0 %v4677
        %5482 = vmatpush.bf16.msra.mxu0 %v4673
        %5483 = vmatmul.bf16.gmra.mxu0 %v3607
        %v5484 = vpop.f32.mrf.mxu0
        %v5485 = vadd.f32 %v5472, %v5484
        %v5486 = vpop.f32.mrf.mxu0
        %5487 = vdwg.mxu0
        %5488 = vmatpush.bf16.msra.mxu0 %v4733
        %5489 = vmatpush.bf16.msra.mxu0 %v4729
        %5490 = vmatpush.bf16.msra.mxu0 %v4725
        %5491 = vmatpush.bf16.msra.mxu0 %v4721
        %5492 = vmatpush.bf16.msra.mxu0 %v4717
        %5493 = vmatpush.bf16.msra.mxu0 %v4713
        %5494 = vmatpush.bf16.msra.mxu0 %v4709
        %5495 = vmatpush.bf16.msra.mxu0 %v4705
        %5496 = vmatmul.bf16.gmra.mxu0 %v3608
        %v5497 = vpop.f32.mrf.mxu0
        %v5498 = vadd.f32 %v5485, %v5497
        %v5499 = vpop.f32.mrf.mxu0
        %5500 = vdwg.mxu0
        %5501 = vmatpush.bf16.msra.mxu0 %v4765
        %5502 = vmatpush.bf16.msra.mxu0 %v4761
        %5503 = vmatpush.bf16.msra.mxu0 %v4757
        %5504 = vmatpush.bf16.msra.mxu0 %v4753
        %5505 = vmatpush.bf16.msra.mxu0 %v4749
        %5506 = vmatpush.bf16.msra.mxu0 %v4745
        %5507 = vmatpush.bf16.msra.mxu0 %v4741
        %5508 = vmatpush.bf16.msra.mxu0 %v4737
        %5509 = vmatmul.bf16.gmra.mxu0 %v3609
        %v5510 = vpop.f32.mrf.mxu0
        %v5511 = vadd.f32 %v5498, %v5510
        %v5512 = vpop.f32.mrf.mxu0
        %5513 = vdwg.mxu0
        %5514 = vmatpush.bf16.msra.mxu0 %v4797
        %5515 = vmatpush.bf16.msra.mxu0 %v4793
        %5516 = vmatpush.bf16.msra.mxu0 %v4789
        %5517 = vmatpush.bf16.msra.mxu0 %v4785
        %5518 = vmatpush.bf16.msra.mxu0 %v4781
        %5519 = vmatpush.bf16.msra.mxu0 %v4777
        %5520 = vmatpush.bf16.msra.mxu0 %v4773
        %5521 = vmatpush.bf16.msra.mxu0 %v4769
        %5522 = vmatmul.bf16.gmra.mxu0 %v3610
        %v5523 = vpop.f32.mrf.mxu0
        %v5524 = vadd.f32 %v5511, %v5523
        %v5525 = vpop.f32.mrf.mxu0
        %5526 = vdwg.mxu0
        %5527 = vmatpush.bf16.msra.mxu0 %v4829
        %5528 = vmatpush.bf16.msra.mxu0 %v4825
        %5529 = vmatpush.bf16.msra.mxu0 %v4821
        %5530 = vmatpush.bf16.msra.mxu0 %v4817
        %5531 = vmatpush.bf16.msra.mxu0 %v4813
        %5532 = vmatpush.bf16.msra.mxu0 %v4809
        %5533 = vmatpush.bf16.msra.mxu0 %v4805
        %5534 = vmatpush.bf16.msra.mxu0 %v4801
        %5535 = vmatmul.bf16.gmra.mxu0 %v3611
        %v5536 = vpop.f32.mrf.mxu0
        %v5537 = vadd.f32 %v5524, %v5536
        %v5538 = vpop.f32.mrf.mxu0
        %5539 = vdwg.mxu0
        %5540 = vmatpush.bf16.msra.mxu0 %v4861
        %5541 = vmatpush.bf16.msra.mxu0 %v4857
        %5542 = vmatpush.bf16.msra.mxu0 %v4853
        %5543 = vmatpush.bf16.msra.mxu0 %v4849
        %5544 = vmatpush.bf16.msra.mxu0 %v4845
        %5545 = vmatpush.bf16.msra.mxu0 %v4841
        %5546 = vmatpush.bf16.msra.mxu0 %v4837
        %5547 = vmatpush.bf16.msra.mxu0 %v4833
        %5548 = vmatmul.bf16.gmra.mxu0 %v3612
        %v5549 = vpop.f32.mrf.mxu0
        %v5550 = vadd.f32 %v5537, %v5549
        %v5551 = vpop.f32.mrf.mxu0
        %5552 = vdwg.mxu0
        %5553 = vmatpush.bf16.msra.mxu0 %v4893
        %5554 = vmatpush.bf16.msra.mxu0 %v4889
        %5555 = vmatpush.bf16.msra.mxu0 %v4885
        %5556 = vmatpush.bf16.msra.mxu0 %v4881
        %5557 = vmatpush.bf16.msra.mxu0 %v4877
        %5558 = vmatpush.bf16.msra.mxu0 %v4873
        %5559 = vmatpush.bf16.msra.mxu0 %v4869
        %5560 = vmatpush.bf16.msra.mxu0 %v4865
        %5561 = vmatmul.bf16.gmra.mxu0 %v3613
        %v5562 = vpop.f32.mrf.mxu0
        %v5563 = vadd.f32 %v5550, %v5562
        %v5564 = vpop.f32.mrf.mxu0
        %5565 = vdwg.mxu0
        %v5570 = vrot.slane %v5355, 7
        %v5571 = vrot.slane %v5459, 6
        %v5572 = vrot.slane %v5563, 5
        %vm5573 = vcmask 1040384
        %v5574 = vsel %vm5573, %v5251, %v5570
        %vm5575 = vcmask 1042434
        %v5576 = vsel %vm5575, %v5571, %v5572
        %vm5577 = vcmask 1041408
        %v5578 = vsel %vm5577, %v5574, %v5576
        %v5580 = vadd.f32 %v3605, %v5578
        %v5581 = vlaneseq
        %vm5582 = vcmp.ge.s32.totalorder %v5581, 0
        %vm5583 = vcmp.lt.s32.totalorder %v5581, 512
        %vm5584 = vmand %vm5582, %vm5583
        %5585 = vst.msk [vmem:[#allocation2] sm:$0xf] %vm5584, %v5580
        %p5586 = scmp.eq.s32.totalorder %s26, 1
        // Predicated region
        $region76: #{image_only_sentiment_forward.1} parent=66 // pred_check
          %p5587 = pneg %p5586
        $region77: #{image_only_sentiment_forward.1} parent=66 // pred_check_branch
          %5589 = sbr.rel (%p5587) target = $region79
        $region78: #{image_only_sentiment_forward.1} parent=66 // pred_region
          %v5590 = vld [vmem:[#allocation2] sm:$0xf]
          %v5591 = vld [vmem:[%s4] sm:$0xf]
          %v5592 = vadd.f32 %v5590, %v5591
          %v5593 = vld [vmem:[%s5] sm:$0xff]
          %v5594 = vld [vmem:[%s5 + $0x8] sm:$0xff]
          %v5595 = vld [vmem:[%s5 + $0x10] sm:$0xff]
          %v5596 = vld [vmem:[%s5 + $0x18] sm:$0xff]
          %v5597 = vld [vmem:[%s5 + $0x20] sm:$0xff]
          %v5598 = vld [vmem:[%s5 + $0x28] sm:$0xff]
          %v5599 = vld [vmem:[%s5 + $0x30] sm:$0xff]
          %v5600 = vld [vmem:[%s5 + $0x38] sm:$0xff]
          %v5601 = vld [vmem:[%s5 + $0x40] sm:$0xff]
          %v5602 = vld [vmem:[%s5 + $0x48] sm:$0xff]
          %v5603 = vld [vmem:[%s5 + $0x50] sm:$0xff]
          %v5604 = vld [vmem:[%s5 + $0x58] sm:$0xff]
          %v5605 = vld [vmem:[%s5 + $0x60] sm:$0xff]
          %v5606 = vld [vmem:[%s5 + $0x68] sm:$0xff]
          %v5607 = vld [vmem:[%s5 + $0x70] sm:$0xff]
          %v5608 = vld [vmem:[%s5 + $0x78] sm:$0xff]
          %v5609 = vld [vmem:[%s5 + $0x80] sm:$0xff]
          %v5610 = vld [vmem:[%s5 + $0x88] sm:$0xff]
          %v5611 = vld [vmem:[%s5 + $0x90] sm:$0xff]
          %v5612 = vld [vmem:[%s5 + $0x98] sm:$0xff]
          %v5613 = vld [vmem:[%s5 + $0xa0] sm:$0xff]
          %v5614 = vld [vmem:[%s5 + $0xa8] sm:$0xff]
          %v5615 = vld [vmem:[%s5 + $0xb0] sm:$0xff]
          %v5616 = vld [vmem:[%s5 + $0xb8] sm:$0xff]
          %v5617 = vld [vmem:[%s5 + $0xc0] sm:$0xff]
          %v5618 = vld [vmem:[%s5 + $0xc8] sm:$0xff]
          %v5619 = vld [vmem:[%s5 + $0xd0] sm:$0xff]
          %v5620 = vld [vmem:[%s5 + $0xd8] sm:$0xff]
          %v5621 = vld [vmem:[%s5 + $0xe0] sm:$0xff]
          %v5622 = vld [vmem:[%s5 + $0xe8] sm:$0xff]
          %v5623 = vld [vmem:[%s5 + $0xf0] sm:$0xff]
          %v5624 = vld [vmem:[%s5 + $0xf8] sm:$0xff]
          %v5625 = vld [vmem:[%s5 + $0x100] sm:$0xff]
          %v5626 = vld [vmem:[%s5 + $0x108] sm:$0xff]
          %v5627 = vld [vmem:[%s5 + $0x110] sm:$0xff]
          %v5628 = vld [vmem:[%s5 + $0x118] sm:$0xff]
          %v5629 = vld [vmem:[%s5 + $0x120] sm:$0xff]
          %v5630 = vld [vmem:[%s5 + $0x128] sm:$0xff]
          %v5631 = vld [vmem:[%s5 + $0x130] sm:$0xff]
          %v5632 = vld [vmem:[%s5 + $0x138] sm:$0xff]
          %v5633 = vld [vmem:[%s5 + $0x140] sm:$0xff]
          %v5634 = vld [vmem:[%s5 + $0x148] sm:$0xff]
          %v5635 = vld [vmem:[%s5 + $0x150] sm:$0xff]
          %v5636 = vld [vmem:[%s5 + $0x158] sm:$0xff]
          %v5637 = vld [vmem:[%s5 + $0x160] sm:$0xff]
          %v5638 = vld [vmem:[%s5 + $0x168] sm:$0xff]
          %v5639 = vld [vmem:[%s5 + $0x170] sm:$0xff]
          %v5640 = vld [vmem:[%s5 + $0x178] sm:$0xff]
          %v5641 = vld [vmem:[%s5 + $0x180] sm:$0xff]
          %v5642 = vld [vmem:[%s5 + $0x188] sm:$0xff]
          %v5643 = vld [vmem:[%s5 + $0x190] sm:$0xff]
          %v5644 = vld [vmem:[%s5 + $0x198] sm:$0xff]
          %v5645 = vld [vmem:[%s5 + $0x1a0] sm:$0xff]
          %v5646 = vld [vmem:[%s5 + $0x1a8] sm:$0xff]
          %v5647 = vld [vmem:[%s5 + $0x1b0] sm:$0xff]
          %v5648 = vld [vmem:[%s5 + $0x1b8] sm:$0xff]
          %v5649 = vld [vmem:[%s5 + $0x1c0] sm:$0xff]
          %v5650 = vld [vmem:[%s5 + $0x1c8] sm:$0xff]
          %v5651 = vld [vmem:[%s5 + $0x1d0] sm:$0xff]
          %v5652 = vld [vmem:[%s5 + $0x1d8] sm:$0xff]
          %v5653 = vld [vmem:[%s5 + $0x1e0] sm:$0xff]
          %v5654 = vld [vmem:[%s5 + $0x1e8] sm:$0xff]
          %v5655 = vld [vmem:[%s5 + $0x1f0] sm:$0xff]
          %v5656 = vld [vmem:[%s5 + $0x1f8] sm:$0xff]
          %v5657 = vld [vmem:[%s6] sm:$0x1]
          %v5659 = vperm.slane %v5592, 0
          %v5660 = vperm.slane %v5592, 1
          %v5661 = vperm.slane %v5592, 2
          %v5662 = vperm.slane %v5592, 3
          %5667 = vmatpush.msra.mxu0 %v5608
          %5668 = vmatpush.msra.mxu0 %v5607
          %5669 = vmatpush.msra.mxu0 %v5606
          %5670 = vmatpush.msra.mxu0 %v5605
          %5671 = vmatpush.msra.mxu0 %v5604
          %5672 = vmatpush.msra.mxu0 %v5603
          %5673 = vmatpush.msra.mxu0 %v5602
          %5674 = vmatpush.msra.mxu0 %v5601
          %5675 = vmatpush.msra.mxu0 %v5600
          %5676 = vmatpush.msra.mxu0 %v5599
          %5677 = vmatpush.msra.mxu0 %v5598
          %5678 = vmatpush.msra.mxu0 %v5597
          %5679 = vmatpush.msra.mxu0 %v5596
          %5680 = vmatpush.msra.mxu0 %v5595
          %5681 = vmatpush.msra.mxu0 %v5594
          %5682 = vmatpush.msra.mxu0 %v5593
          %5683 = vmatmul.f32.gmra.mxu0 %v5659
          %v5684 = vpop.f32.mrf.mxu0
          %v5685 = vadd.f32 %v5657, %v5684
          %5686 = vdwg.mxu0
          %5687 = vmatpush.msra.mxu0 %v5624
          %5688 = vmatpush.msra.mxu0 %v5623
          %5689 = vmatpush.msra.mxu0 %v5622
          %5690 = vmatpush.msra.mxu0 %v5621
          %5691 = vmatpush.msra.mxu0 %v5620
          %5692 = vmatpush.msra.mxu0 %v5619
          %5693 = vmatpush.msra.mxu0 %v5618
          %5694 = vmatpush.msra.mxu0 %v5617
          %5695 = vmatpush.msra.mxu0 %v5616
          %5696 = vmatpush.msra.mxu0 %v5615
          %5697 = vmatpush.msra.mxu0 %v5614
          %5698 = vmatpush.msra.mxu0 %v5613
          %5699 = vmatpush.msra.mxu0 %v5612
          %5700 = vmatpush.msra.mxu0 %v5611
          %5701 = vmatpush.msra.mxu0 %v5610
          %5702 = vmatpush.msra.mxu0 %v5609
          %5703 = vmatmul.f32.gmra.mxu0 %v5660
          %v5704 = vpop.f32.mrf.mxu0
          %v5705 = vadd.f32 %v5685, %v5704
          %5706 = vdwg.mxu0
          %5707 = vmatpush.msra.mxu0 %v5640
          %5708 = vmatpush.msra.mxu0 %v5639
          %5709 = vmatpush.msra.mxu0 %v5638
          %5710 = vmatpush.msra.mxu0 %v5637
          %5711 = vmatpush.msra.mxu0 %v5636
          %5712 = vmatpush.msra.mxu0 %v5635
          %5713 = vmatpush.msra.mxu0 %v5634
          %5714 = vmatpush.msra.mxu0 %v5633
          %5715 = vmatpush.msra.mxu0 %v5632
          %5716 = vmatpush.msra.mxu0 %v5631
          %5717 = vmatpush.msra.mxu0 %v5630
          %5718 = vmatpush.msra.mxu0 %v5629
          %5719 = vmatpush.msra.mxu0 %v5628
          %5720 = vmatpush.msra.mxu0 %v5627
          %5721 = vmatpush.msra.mxu0 %v5626
          %5722 = vmatpush.msra.mxu0 %v5625
          %5723 = vmatmul.f32.gmra.mxu0 %v5661
          %v5724 = vpop.f32.mrf.mxu0
          %v5725 = vadd.f32 %v5705, %v5724
          %5726 = vdwg.mxu0
          %5727 = vmatpush.msra.mxu0 %v5656
          %5728 = vmatpush.msra.mxu0 %v5655
          %5729 = vmatpush.msra.mxu0 %v5654
          %5730 = vmatpush.msra.mxu0 %v5653
          %5731 = vmatpush.msra.mxu0 %v5652
          %5732 = vmatpush.msra.mxu0 %v5651
          %5733 = vmatpush.msra.mxu0 %v5650
          %5734 = vmatpush.msra.mxu0 %v5649
          %5735 = vmatpush.msra.mxu0 %v5648
          %5736 = vmatpush.msra.mxu0 %v5647
          %5737 = vmatpush.msra.mxu0 %v5646
          %5738 = vmatpush.msra.mxu0 %v5645
          %5739 = vmatpush.msra.mxu0 %v5644
          %5740 = vmatpush.msra.mxu0 %v5643
          %5741 = vmatpush.msra.mxu0 %v5642
          %5742 = vmatpush.msra.mxu0 %v5641
          %5743 = vmatmul.f32.gmra.mxu0 %v5662
          %v5744 = vpop.f32.mrf.mxu0
          %v5745 = vadd.f32 %v5725, %v5744
          %5746 = vdwg.mxu0
          %5747 = vst [vmem:[%s608] sm:$0x1] %v5745
        $region79: #{image_only_sentiment_forward.1} parent=66 // pred_fallthru
          _
        %s5748 = sand.u32 %s208, 1
        %s5749 = scalar_lea.sflag [#allocation5], %s5748
        %s5750 = sand.u32 %s208, 1
        %s5751 = scalar_lea.vmem [#allocation4], %s5750
        // Predicated region
        $region80: #{image_only_sentiment_forward.1} parent=66 // pred_check
          %p5752 = pneg %p218
        $region81: #{image_only_sentiment_forward.1} parent=66 // pred_check_branch
          %5754 = sbr.rel (%p5752) target = $region83
        $region82: #{image_only_sentiment_forward.1} parent=66 // pred_region
          %5756 = vsyncadd %s5749, 0
          %s5757 = scalar_lea.hbm %s7, %s25
          %s5759 = sshll.u32 %s5751, 4
          %s5760 = int_to_ptr.vmem [resolvable:$true] %s5759
          %s5761 = sshll.u32 %s5757, 4
          %s5762 = int_to_ptr.hbm [resolvable:$true] %s5761
          %5764 = dma.vmem_to_hbm [thread:$0]  %s5760, 16, %s5762, %s5749
        $region83: #{image_only_sentiment_forward.1} parent=66 // pred_fallthru
          _
      $region67: #{image_only_sentiment_forward.1} parent=5 // pred_fallthru
        _
      %p5765 = scmp.le.s32.totalorder 2, %s16
      // Predicated region
      $region84: #{image_only_sentiment_forward.1} parent=5 // pred_check
        %p5766 = pneg %p5765
      $region85: #{image_only_sentiment_forward.1} parent=5 // pred_check_branch
        %5768 = sbr.rel (%p5766) target = $region87
      $region86: #{image_only_sentiment_forward.1} parent=5 // pred_region
        %s5769 = ssub.s32 %s16, 2
        // Predicated region
        $region88: #{image_only_sentiment_forward.1} parent=86 // pred_check
          %p5770 = pneg %p224
        $region89: #{image_only_sentiment_forward.1} parent=86 // pred_check_branch
          %5772 = sbr.rel (%p5770) target = $region91
        $region90: #{image_only_sentiment_forward.1} parent=86 // pred_region
          %s5773 = sand.u32 %s209, 1
          %s5774 = scalar_lea.sflag [#allocation5], %s5773
          %s5775 = sand.u32 %s209, 1
          %s5776 = scalar_lea.vmem [#allocation4], %s5775
          %5778 = dma.done %s5774, 16
        $region91: #{image_only_sentiment_forward.1} parent=86 // pred_fallthru
          _
      $region87: #{image_only_sentiment_forward.1} parent=5 // pred_fallthru
        _
    $region6: #{image_only_sentiment_forward.1} parent=1 // loop_footer
      %s20 = sadd.s32 1, %s16
    $region7: #{image_only_sentiment_forward.1} parent=1 // loop_footer_branch
      %15 = sbr.rel target = $region3
    $region8: #{image_only_sentiment_forward.1} parent=1 // loop_exit
      _
    %5779 = vsyncpa [#allocation5], 1
    %s5780 = scalar_lea.sflag [#allocation5], 1
    %5781 = vsyncpa %s5780, 1

</llo_original>
